<compile_context>
chip_gen: v7x
topology: tpu7x:2x2x1
jax: 0.10.0
libtpu: 0.0.40
codegen_flags: <defaults>
</compile_context>

<pallas_src>
import jax
import jax.numpy as jnp
from jax.experimental import pallas as pl
from jax.experimental.pallas import tpu as pltpu

# ---- model dims (module: input_dim=10, hidden_dim=32, latent_dim=64;
#      num_actions shrunk from 140000 to 2048 for the demo -- the kernel is
#      action-tiled, so the production size only changes NUM_ACTIONS, padded to
#      a multiple of TILE_A) ----
INPUT_DIM = 10
HIDDEN_DIM = 32
LATENT_DIM = 64
NUM_ACTIONS = 2048
NUM_NODES = 16

# ---- batching / tiling ----
BATCH = 16          # graphs per call (whole batch lives in one grid instance)
TILE_A = 1024       # action lanes per tile (grid axis 1), multiple of 128

# ---- packed-parameter slab layout (row offsets multiples of 8) ----
_ROW_W1 = 0      # (10, 32)   encoder.conv1 weight
_ROW_B1 = 16     # (1, 32)
_ROW_W2 = 24     # (32, 32)   encoder.conv2 weight
_ROW_B2 = 56     # (1, 32)
_ROW_WENC = 64   # (32, 64)   encoder.fc weight
_ROW_BENC = 96   # (1, 64)
_ROW_WHID = 104  # (64, 128)  fused [forward.fc1 | backward.fc1] weight
_ROW_BHID = 168  # (1, 128)
_ROW_POOL = 176  # (16, 256)  block-diagonal mean-pool matrix (1/N per node)
SLAB_ROWS = 192
SLAB_COLS = BATCH * NUM_NODES   # 256 lanes (pool matrix needs B*N columns)


def _gflownet_kernel(adj_ref, x_ref, slab_ref, w_ref, b_ref,
                     fwd_ref, bwd_ref,
                     z_sc, mf_sc, lf_sc, mb_sc, lb_sc):
    p = pl.program_id(0)   # 0 = statistics pass, 1 = normalize/write pass
    a = pl.program_id(1)   # action tile

    # ---- encoder + fused policy hidden layer: once per call ----
    @pl.when((p == 0) & (a == 0))
    def _encode():
        w1 = slab_ref[_ROW_W1:_ROW_W1 + INPUT_DIM, :HIDDEN_DIM]
        b1 = slab_ref[_ROW_B1:_ROW_B1 + 1, :HIDDEN_DIM]
        w2 = slab_ref[_ROW_W2:_ROW_W2 + HIDDEN_DIM, :HIDDEN_DIM]
        b2 = slab_ref[_ROW_B2:_ROW_B2 + 1, :HIDDEN_DIM]
        wenc = slab_ref[_ROW_WENC:_ROW_WENC + HIDDEN_DIM, :LATENT_DIM]
        benc = slab_ref[_ROW_BENC:_ROW_BENC + 1, :LATENT_DIM]
        whid = slab_ref[_ROW_WHID:_ROW_WHID + LATENT_DIM, :2 * LATENT_DIM]
        bhid = slab_ref[_ROW_BHID:_ROW_BHID + 1, :2 * LATENT_DIM]
        pool = slab_ref[_ROW_POOL:_ROW_POOL + BATCH, :BATCH * NUM_NODES]

        adj = adj_ref[...]                  # (B*N, B*N) block-diagonal
        xg = x_ref[...]                     # (B*N, INPUT_DIM)

        ax = jnp.dot(adj, xg, preferred_element_type=jnp.float32)
        h = jnp.maximum(jnp.dot(ax, w1, preferred_element_type=jnp.float32) + b1, 0.0)
        ah = jnp.dot(adj, h, preferred_element_type=jnp.float32)
        h = jnp.maximum(jnp.dot(ah, w2, preferred_element_type=jnp.float32) + b2, 0.0)
        pooled = jnp.dot(pool, h, preferred_element_type=jnp.float32)        # (B, H)
        latent = jnp.dot(pooled, wenc, preferred_element_type=jnp.float32) + benc
        # fused forward|backward fc1 -> (B, 2*LATENT_DIM), split once into bf16 scratch
        zcat = jnp.maximum(
            jnp.dot(latent, whid, preferred_element_type=jnp.float32) + bhid, 0.0)
        z_sc[0] = zcat[:, :LATENT_DIM].astype(z_sc.dtype)
        z_sc[1] = zcat[:, LATENT_DIM:2 * LATENT_DIM].astype(z_sc.dtype)

        mf_sc[...] = jnp.full(mf_sc.shape, -jnp.inf, mf_sc.dtype)
        mb_sc[...] = jnp.full(mb_sc.shape, -jnp.inf, mb_sc.dtype)
        lf_sc[...] = jnp.zeros(lf_sc.shape, lf_sc.dtype)
        lb_sc[...] = jnp.zeros(lb_sc.shape, lb_sc.dtype)

    # per-head logits for this action tile (bf16 operands, f32 MXU accumulation)
    logit_f = jnp.dot(z_sc[0], w_ref[0], preferred_element_type=jnp.float32) + b_ref[0]
    logit_b = jnp.dot(z_sc[1], w_ref[1], preferred_element_type=jnp.float32) + b_ref[1]

    @pl.when(p == 0)   # pass 0: streaming (online) max / sum across action tiles
    def _stats():
        mf_new = jnp.maximum(mf_sc[...], jnp.max(logit_f, axis=-1, keepdims=True))
        lf_sc[...] = (lf_sc[...] * jnp.exp(mf_sc[...] - mf_new)
                      + jnp.sum(jnp.exp(logit_f - mf_new), axis=-1, keepdims=True))
        mf_sc[...] = mf_new

        mb_new = jnp.maximum(mb_sc[...], jnp.max(logit_b, axis=-1, keepdims=True))
        lb_sc[...] = (lb_sc[...] * jnp.exp(mb_sc[...] - mb_new)
                      + jnp.sum(jnp.exp(logit_b - mb_new), axis=-1, keepdims=True))
        mb_sc[...] = mb_new

    @pl.when(p == 1)   # pass 1: normalize with the global max/sum, lane-dense writes
    def _write():
        fwd_ref[...] = jnp.exp(logit_f - mf_sc[...]) * pl.reciprocal(lf_sc[...], approx=True)
        bwd_ref[...] = jnp.exp(logit_b - mb_sc[...]) * pl.reciprocal(lb_sc[...], approx=True)


@jax.jit
def gflownet_forward(x, adjacency, params):
    """x: (B, N, input_dim), adjacency: (B, N, N).  Returns two (B, num_actions) prob matrices."""
    (w1, b1, w2, b2, wenc, benc,
     wf1, bf1, wf2, bf2, wb1, bb1, wb2, bb2) = params
    B, N, F = x.shape
    gn = B * N
    na = NUM_ACTIONS // TILE_A

    # --- pack the small params (+ block mean-pool matrix) into one f32 slab (one DMA) ---
    whid = jnp.concatenate([wf1, wb1], axis=1)           # fused policy fc1 (64, 128)
    bhid = jnp.concatenate([bf1, bb1], axis=1)           # (1, 128)
    pool = jnp.kron(jnp.eye(B, dtype=jnp.float32),
                    jnp.full((1, N), 1.0 / N, jnp.float32))  # (B, B*N)

    def pad(arr, rows):
        r, c = arr.shape
        return jnp.pad(arr.astype(jnp.float32), ((0, rows - r), (0, SLAB_COLS - c)))

    slab = jnp.concatenate([
        pad(w1, 16), pad(b1, 8), pad(w2, 32), pad(b2, 8),
        pad(wenc, 32), pad(benc, 8), pad(whid, 64), pad(bhid, 8), pad(pool, 16)],
        axis=0)                                          # (SLAB_ROWS, SLAB_COLS)

    # --- block-diagonal adjacency over the whole batch -> pure 2-D matmuls in-kernel ---
    eye_b = jnp.eye(B, dtype=jnp.float32)
    adj_bd = jnp.einsum('bij,bc->bicj', adjacency.astype(jnp.float32),
                        eye_b).reshape(gn, gn)
    x2d = x.reshape(gn, F)

    # --- stack the two heads' output weights/biases -> one streamed operand each ---
    w_heads = jnp.stack([wf2, wb2], axis=0)              # (2, 64, A) bf16
    b_heads = jnp.stack([bf2, bb2], axis=0)              # (2, 1, A) f32

    grid_spec = pltpu.PrefetchScalarGridSpec(
        num_scalar_prefetch=0,
        grid=(2, na),                           # (softmax pass, action tile)
        in_specs=[
            pl.BlockSpec((gn, gn), lambda p, a: (0, 0)),                  # block-diag adj
            pl.BlockSpec((gn, F), lambda p, a: (0, 0)),                   # node features
            pl.BlockSpec((SLAB_ROWS, SLAB_COLS), lambda p, a: (0, 0)),    # packed params
            pl.BlockSpec((2, LATENT_DIM, TILE_A), lambda p, a: (0, 0, a)),  # stacked fc2 W
            pl.BlockSpec((2, 1, TILE_A), lambda p, a: (0, 0, a)),           # stacked fc2 b
        ],
        out_specs=[
            # pass 0 parks on block (0, 0); pass 1 walks (0, a) and writes -> every
            # output block is written exactly once, lane-dense (TILE_A wide).
            pl.BlockSpec((B, TILE_A), lambda p, a: (0, a * p)),
            pl.BlockSpec((B, TILE_A), lambda p, a: (0, a * p)),
        ],
        scratch_shapes=[
            pltpu.VMEM((2, B, LATENT_DIM), jnp.bfloat16),   # per-head hidden activations
            pltpu.VMEM((B, 1), jnp.float32),                # running max (fwd)
            pltpu.VMEM((B, 1), jnp.float32),                # running sum (fwd)
            pltpu.VMEM((B, 1), jnp.float32),                # running max (bwd)
            pltpu.VMEM((B, 1), jnp.float32),                # running sum (bwd)
        ],
    )

    head_bytes = w_heads.size * w_heads.dtype.itemsize
    cost = pl.CostEstimate(
        flops=2 * 2 * 2 * B * LATENT_DIM * NUM_ACTIONS,         # 2 heads x 2 passes
        transcendentals=2 * 2 * B * NUM_ACTIONS,                # exp, 2 heads x 2 passes
        bytes_accessed=int(2 * head_bytes + 2 * b_heads.size * 4
                           + 2 * B * NUM_ACTIONS * 4
                           + adj_bd.size * 4 + x2d.size * 4 + slab.size * 4),
    )

    fwd, bwd = pl.pallas_call(
        _gflownet_kernel,
        out_shape=(jax.ShapeDtypeStruct((B, NUM_ACTIONS), jnp.float32),
                   jax.ShapeDtypeStruct((B, NUM_ACTIONS), jnp.float32)),
        grid_spec=grid_spec,
        compiler_params=pltpu.CompilerParams(
            dimension_semantics=("arbitrary", "arbitrary")),
        cost_estimate=cost,
    )(adj_bd, x2d, slab, w_heads, b_heads)
    return fwd, bwd


def make_params(key):
    """Deterministic init. Linear weights pre-transposed (in, out), biases (1, out).
    Policy output weights (fc2) are stored in bfloat16 (f32 accumulation in-kernel)."""
    def linear(k, din, dout, scale, w_dtype=jnp.float32):
        kw, kb = jax.random.split(k)
        w = (jax.random.normal(kw, (din, dout), jnp.float32) * scale).astype(w_dtype)
        b = jax.random.normal(kb, (1, dout), jnp.float32) * scale
        return w, b

    keys = jax.random.split(key, 7)
    w1, b1 = linear(keys[0], INPUT_DIM, HIDDEN_DIM, 0.3)                         # encoder.conv1
    w2, b2 = linear(keys[1], HIDDEN_DIM, HIDDEN_DIM, 0.2)                        # encoder.conv2
    we, be = linear(keys[2], HIDDEN_DIM, LATENT_DIM, 0.2)                        # encoder.fc
    wf1, bf1 = linear(keys[3], LATENT_DIM, LATENT_DIM, 0.15)                     # forward.fc1
    wf2, bf2 = linear(keys[4], LATENT_DIM, NUM_ACTIONS, 0.15, jnp.bfloat16)      # forward.fc2
    wb1, bb1 = linear(keys[5], LATENT_DIM, LATENT_DIM, 0.15)                     # backward.fc1
    wb2, bb2 = linear(keys[6], LATENT_DIM, NUM_ACTIONS, 0.15, jnp.bfloat16)      # backward.fc2
    return (w1, b1, w2, b2, we, be, wf1, bf1, wf2, bf2, wb1, bb1, wb2, bb2)


def reference_forward(x, adjacency, params):
    """Pure-JAX reference = PyTorch module semantics vmapped over the batch of graphs."""
    (w1, b1, w2, b2, wenc, benc,
     wf1, bf1, wf2, bf2, wb1, bb1, wb2, bb2) = params
    ax = jnp.einsum('bij,bjf->bif', adjacency, x)
    h = jax.nn.relu(ax @ w1 + b1)
    ah = jnp.einsum('bij,bjh->bih', adjacency, h)
    h = jax.nn.relu(ah @ w2 + b2)
    latent = h.mean(axis=1) @ wenc + benc                       # (B, latent)

    def pol(wh, bh, wo, bo):
        z = jax.nn.relu(latent @ wh + bh)
        logits = jnp.dot(z.astype(wo.dtype), wo,
                         preferred_element_type=jnp.float32) + bo
        return jax.nn.softmax(logits, axis=-1)

    return pol(wf1, bf1, wf2, bf2), pol(wb1, bb1, wb2, bb2)


if __name__ == "__main__":
    key = jax.random.PRNGKey(0)
    kx, kadj, kparam = jax.random.split(key, 3)

    x = jax.random.normal(kx, (BATCH, NUM_NODES, INPUT_DIM), jnp.float32)
    # symmetric 0/1 adjacency with self-loops, one per graph
    a = (jax.random.uniform(kadj, (BATCH, NUM_NODES, NUM_NODES)) < 0.3).astype(jnp.float32)
    eye = jnp.eye(NUM_NODES, dtype=jnp.float32)[None, :, :]
    adjacency = jnp.clip(a + jnp.transpose(a, (0, 2, 1)) + eye, 0.0, 1.0)

    params = make_params(kparam)

    fwd_probs, bwd_probs = gflownet_forward(x, adjacency, params)
    jax.block_until_ready((fwd_probs, bwd_probs))

    ref_fwd, ref_bwd = reference_forward(x, adjacency, params)

    assert fwd_probs.shape == (BATCH, NUM_ACTIONS)
    assert bwd_probs.shape == (BATCH, NUM_ACTIONS)
    # tolerances account for bf16 head weights + approx reciprocal in the softmax
    assert jnp.allclose(fwd_probs, ref_fwd, atol=1e-4, rtol=1e-2)
    assert jnp.allclose(bwd_probs, ref_bwd, atol=1e-4, rtol=1e-2)
    assert jnp.allclose(jnp.sum(fwd_probs, axis=-1), 1.0, atol=5e-3)
    assert jnp.allclose(jnp.sum(bwd_probs, axis=-1), 1.0, atol=5e-3)

    print("KERNEL_OK")
</pallas_src>

<mosaic_0001>
module attributes {stable_mosaic.version = 11 : i64} {
  func.func @_gflownet_kernel(%arg0: i32, %arg1: i32, %arg2: memref<256x256xf32, #tpu.memory_space<vmem>>, %arg3: memref<256x10xf32, #tpu.memory_space<vmem>>, %arg4: memref<192x256xf32, #tpu.memory_space<vmem>>, %arg5: memref<2x64x1024xbf16, #tpu.memory_space<vmem>>, %arg6: memref<2x1x1024xf32, #tpu.memory_space<vmem>>, %arg7: memref<16x1024xf32, #tpu.memory_space<vmem>>, %arg8: memref<16x1024xf32, #tpu.memory_space<vmem>>, %arg9: memref<2x16x64xbf16, #tpu.memory_space<vmem>>, %arg10: memref<16x1xf32, #tpu.memory_space<vmem>>, %arg11: memref<16x1xf32, #tpu.memory_space<vmem>>, %arg12: memref<16x1xf32, #tpu.memory_space<vmem>>, %arg13: memref<16x1xf32, #tpu.memory_space<vmem>>) attributes {dimension_semantics = [#tpu.dimension_semantics<arbitrary>, #tpu.dimension_semantics<arbitrary>], iteration_bounds = array<i64: 2, 2>, scalar_prefetch = 0 : i64, scratch_operands = 5 : i64, tpu.core_type = #tpu.core_type<tc>, window_params = [{pipeline_mode = #tpu.pipeline_mode<synchronous>, transform_indices = @transform_0, window_bounds = array<i64: 256, 256>}, {pipeline_mode = #tpu.pipeline_mode<synchronous>, transform_indices = @transform_1, window_bounds = array<i64: 256, 10>}, {pipeline_mode = #tpu.pipeline_mode<synchronous>, transform_indices = @transform_2, window_bounds = array<i64: 192, 256>}, {transform_indices = @transform_3, window_bounds = array<i64: 2, 64, 1024>}, {transform_indices = @transform_4, window_bounds = array<i64: 2, 1, 1024>}, {transform_indices = @transform_5, window_bounds = array<i64: 16, 1024>}, {transform_indices = @transform_6, window_bounds = array<i64: 16, 1024>}]} {
    %c0_i32 = arith.constant 0 : i32
    %0 = arith.cmpi eq, %arg0, %c0_i32 : i32
    %c0_i32_0 = arith.constant 0 : i32
    %1 = arith.cmpi eq, %arg1, %c0_i32_0 : i32
    %2 = arith.andi %0, %1 : i1
    %3 = arith.extui %2 : i1 to i32
    %c0_i32_1 = arith.constant 0 : i32
    %4 = arith.cmpi ne, %3, %c0_i32_1 : i32
    scf.if %4 {
      %c0_22 = arith.constant 0 : index
      %c0_23 = arith.constant 0 : index
      %29 = vector.load %arg4[%c0_22, %c0_23] : memref<192x256xf32, #tpu.memory_space<vmem>>, vector<10x32xf32>
      %c16 = arith.constant 16 : index
      %c0_24 = arith.constant 0 : index
      %30 = vector.load %arg4[%c16, %c0_24] : memref<192x256xf32, #tpu.memory_space<vmem>>, vector<1x32xf32>
      %c24 = arith.constant 24 : index
      %c0_25 = arith.constant 0 : index
      %31 = vector.load %arg4[%c24, %c0_25] : memref<192x256xf32, #tpu.memory_space<vmem>>, vector<32x32xf32>
      %c56 = arith.constant 56 : index
      %c0_26 = arith.constant 0 : index
      %32 = vector.load %arg4[%c56, %c0_26] : memref<192x256xf32, #tpu.memory_space<vmem>>, vector<1x32xf32>
      %c64 = arith.constant 64 : index
      %c0_27 = arith.constant 0 : index
      %33 = vector.load %arg4[%c64, %c0_27] : memref<192x256xf32, #tpu.memory_space<vmem>>, vector<32x64xf32>
      %c96 = arith.constant 96 : index
      %c0_28 = arith.constant 0 : index
      %34 = vector.load %arg4[%c96, %c0_28] : memref<192x256xf32, #tpu.memory_space<vmem>>, vector<1x64xf32>
      %c104 = arith.constant 104 : index
      %c0_29 = arith.constant 0 : index
      %35 = vector.load %arg4[%c104, %c0_29] : memref<192x256xf32, #tpu.memory_space<vmem>>, vector<64x128xf32>
      %c168 = arith.constant 168 : index
      %c0_30 = arith.constant 0 : index
      %36 = vector.load %arg4[%c168, %c0_30] : memref<192x256xf32, #tpu.memory_space<vmem>>, vector<1x128xf32>
      %c176 = arith.constant 176 : index
      %c0_31 = arith.constant 0 : index
      %37 = vector.load %arg4[%c176, %c0_31] : memref<192x256xf32, #tpu.memory_space<vmem>>, vector<16x256xf32>
      %c0_32 = arith.constant 0 : index
      %c0_33 = arith.constant 0 : index
      %38 = vector.load %arg2[%c0_32, %c0_33] : memref<256x256xf32, #tpu.memory_space<vmem>>, vector<256x256xf32>
      %c0_34 = arith.constant 0 : index
      %c0_35 = arith.constant 0 : index
      %39 = vector.load %arg3[%c0_34, %c0_35] : memref<256x10xf32, #tpu.memory_space<vmem>>, vector<256x10xf32>
      %cst_36 = arith.constant dense<0.000000e+00> : vector<256x10xf32>
      %40 = tpu.matmul %38, %39, %cst_36 {dimension_numbers = #tpu.dot_dimension_numbers<[1], [0], [0], [1], [0, 0, 1, 1], [], []>} : vector<256x256xf32>, vector<256x10xf32>, vector<256x10xf32> -> vector<256x10xf32>
      %cst_37 = arith.constant dense<0.000000e+00> : vector<256x32xf32>
      %41 = tpu.matmul %40, %29, %cst_37 {dimension_numbers = #tpu.dot_dimension_numbers<[1], [0], [0], [1], [0, 0, 1, 1], [], []>} : vector<256x10xf32>, vector<10x32xf32>, vector<256x32xf32> -> vector<256x32xf32>
      %42 = vector.broadcast %30 : vector<1x32xf32> to vector<256x32xf32>
      %43 = arith.addf %41, %42 : vector<256x32xf32>
      %cst_38 = arith.constant 0.000000e+00 : f32
      %44 = vector.broadcast %cst_38 : f32 to vector<256x32xf32>
      %45 = arith.maximumf %43, %44 : vector<256x32xf32>
      %cst_39 = arith.constant dense<0.000000e+00> : vector<256x32xf32>
      %46 = tpu.matmul %38, %45, %cst_39 {dimension_numbers = #tpu.dot_dimension_numbers<[1], [0], [0], [1], [0, 0, 1, 1], [], []>} : vector<256x256xf32>, vector<256x32xf32>, vector<256x32xf32> -> vector<256x32xf32>
      %cst_40 = arith.constant dense<0.000000e+00> : vector<256x32xf32>
      %47 = tpu.matmul %46, %31, %cst_40 {dimension_numbers = #tpu.dot_dimension_numbers<[1], [0], [0], [1], [0, 0, 1, 1], [], []>} : vector<256x32xf32>, vector<32x32xf32>, vector<256x32xf32> -> vector<256x32xf32>
      %48 = vector.broadcast %32 : vector<1x32xf32> to vector<256x32xf32>
      %49 = arith.addf %47, %48 : vector<256x32xf32>
      %cst_41 = arith.constant 0.000000e+00 : f32
      %50 = vector.broadcast %cst_41 : f32 to vector<256x32xf32>
      %51 = arith.maximumf %49, %50 : vector<256x32xf32>
      %cst_42 = arith.constant dense<0.000000e+00> : vector<16x32xf32>
      %52 = tpu.matmul %37, %51, %cst_42 {dimension_numbers = #tpu.dot_dimension_numbers<[1], [0], [0], [1], [0, 0, 1, 1], [], []>} : vector<16x256xf32>, vector<256x32xf32>, vector<16x32xf32> -> vector<16x32xf32>
      %cst_43 = arith.constant dense<0.000000e+00> : vector<16x64xf32>
      %53 = tpu.matmul %52, %33, %cst_43 {dimension_numbers = #tpu.dot_dimension_numbers<[1], [0], [0], [1], [0, 0, 1, 1], [], []>} : vector<16x32xf32>, vector<32x64xf32>, vector<16x64xf32> -> vector<16x64xf32>
      %54 = vector.broadcast %34 : vector<1x64xf32> to vector<16x64xf32>
      %55 = arith.addf %53, %54 : vector<16x64xf32>
      %cst_44 = arith.constant dense<0.000000e+00> : vector<16x128xf32>
      %56 = tpu.matmul %55, %35, %cst_44 {dimension_numbers = #tpu.dot_dimension_numbers<[1], [0], [0], [1], [0, 0, 1, 1], [], []>} : vector<16x64xf32>, vector<64x128xf32>, vector<16x128xf32> -> vector<16x128xf32>
      %57 = vector.broadcast %36 : vector<1x128xf32> to vector<16x128xf32>
      %58 = arith.addf %56, %57 : vector<16x128xf32>
      %cst_45 = arith.constant 0.000000e+00 : f32
      %59 = vector.broadcast %cst_45 : f32 to vector<16x128xf32>
      %60 = arith.maximumf %58, %59 : vector<16x128xf32>
      %61 = vector.extract_strided_slice %60 {offsets = [0, 0], sizes = [16, 64], strides = [1, 1]} : vector<16x128xf32> to vector<16x64xf32>
      %62 = arith.truncf %61 : vector<16x64xf32> to vector<16x64xbf16>
      %c0_46 = arith.constant 0 : index
      %c0_47 = arith.constant 0 : index
      %c0_48 = arith.constant 0 : index
      %63 = vector.load %arg9[%c0_46, %c0_47, %c0_48] : memref<2x16x64xbf16, #tpu.memory_space<vmem>>, vector<1x16x64xbf16>
      %64 = vector.shape_cast %63 : vector<1x16x64xbf16> to vector<16x64xbf16>
      %65 = vector.shape_cast %62 : vector<16x64xbf16> to vector<1x16x64xbf16>
      tpu.vector_store %arg9[%c0_46, %c0_47, %c0_48], %65 {strides = array<i32>} : memref<2x16x64xbf16, #tpu.memory_space<vmem>>, vector<1x16x64xbf16>,
      %66 = vector.extract_strided_slice %60 {offsets = [0, 64], sizes = [16, 64], strides = [1, 1]} : vector<16x128xf32> to vector<16x64xf32>
      %67 = arith.truncf %66 : vector<16x64xf32> to vector<16x64xbf16>
      %c1_49 = arith.constant 1 : index
      %c0_50 = arith.constant 0 : index
      %c0_51 = arith.constant 0 : index
      %68 = vector.load %arg9[%c1_49, %c0_50, %c0_51] : memref<2x16x64xbf16, #tpu.memory_space<vmem>>, vector<1x16x64xbf16>
      %69 = vector.shape_cast %68 : vector<1x16x64xbf16> to vector<16x64xbf16>
      %70 = vector.shape_cast %67 : vector<16x64xbf16> to vector<1x16x64xbf16>
      tpu.vector_store %arg9[%c1_49, %c0_50, %c0_51], %70 {strides = array<i32>} : memref<2x16x64xbf16, #tpu.memory_space<vmem>>, vector<1x16x64xbf16>,
      %cst_52 = arith.constant 0xFF800000 : f32
      %71 = vector.broadcast %cst_52 : f32 to vector<16x1xf32>
      %c0_53 = arith.constant 0 : index
      %c0_54 = arith.constant 0 : index
      %72 = vector.load %arg10[%c0_53, %c0_54] : memref<16x1xf32, #tpu.memory_space<vmem>>, vector<16x1xf32>
      tpu.vector_store %arg10[%c0_53, %c0_54], %71 {strides = array<i32>} : memref<16x1xf32, #tpu.memory_space<vmem>>, vector<16x1xf32>,
      %cst_55 = arith.constant 0xFF800000 : f32
      %73 = vector.broadcast %cst_55 : f32 to vector<16x1xf32>
      %c0_56 = arith.constant 0 : index
      %c0_57 = arith.constant 0 : index
      %74 = vector.load %arg12[%c0_56, %c0_57] : memref<16x1xf32, #tpu.memory_space<vmem>>, vector<16x1xf32>
      tpu.vector_store %arg12[%c0_56, %c0_57], %73 {strides = array<i32>} : memref<16x1xf32, #tpu.memory_space<vmem>>, vector<16x1xf32>,
      %cst_58 = arith.constant 0.000000e+00 : f32
      %75 = vector.broadcast %cst_58 : f32 to vector<16x1xf32>
      %c0_59 = arith.constant 0 : index
      %c0_60 = arith.constant 0 : index
      %76 = vector.load %arg11[%c0_59, %c0_60] : memref<16x1xf32, #tpu.memory_space<vmem>>, vector<16x1xf32>
      tpu.vector_store %arg11[%c0_59, %c0_60], %75 {strides = array<i32>} : memref<16x1xf32, #tpu.memory_space<vmem>>, vector<16x1xf32>,
      %cst_61 = arith.constant 0.000000e+00 : f32
      %77 = vector.broadcast %cst_61 : f32 to vector<16x1xf32>
      %c0_62 = arith.constant 0 : index
      %c0_63 = arith.constant 0 : index
      %78 = vector.load %arg13[%c0_62, %c0_63] : memref<16x1xf32, #tpu.memory_space<vmem>>, vector<16x1xf32>
      tpu.vector_store %arg13[%c0_62, %c0_63], %77 {strides = array<i32>} : memref<16x1xf32, #tpu.memory_space<vmem>>, vector<16x1xf32>,
    } else {
    }
    %c0 = arith.constant 0 : index
    %c0_2 = arith.constant 0 : index
    %c0_3 = arith.constant 0 : index
    %5 = vector.load %arg9[%c0, %c0_2, %c0_3] : memref<2x16x64xbf16, #tpu.memory_space<vmem>>, vector<1x16x64xbf16>
    %6 = vector.shape_cast %5 : vector<1x16x64xbf16> to vector<16x64xbf16>
    %c0_4 = arith.constant 0 : index
    %c0_5 = arith.constant 0 : index
    %c0_6 = arith.constant 0 : index
    %7 = vector.load %arg5[%c0_4, %c0_5, %c0_6] : memref<2x64x1024xbf16, #tpu.memory_space<vmem>>, vector<1x64x1024xbf16>
    %8 = vector.shape_cast %7 : vector<1x64x1024xbf16> to vector<64x1024xbf16>
    %cst = arith.constant dense<0.000000e+00> : vector<16x1024xf32>
    %9 = tpu.matmul %6, %8, %cst {dimension_numbers = #tpu.dot_dimension_numbers<[1], [0], [0], [1], [0, 0, 1, 1], [], []>} : vector<16x64xbf16>, vector<64x1024xbf16>, vector<16x1024xf32> -> vector<16x1024xf32>
    %c0_7 = arith.constant 0 : index
    %c0_8 = arith.constant 0 : index
    %c0_9 = arith.constant 0 : index
    %10 = vector.load %arg6[%c0_7, %c0_8, %c0_9] : memref<2x1x1024xf32, #tpu.memory_space<vmem>>, vector<1x1x1024xf32>
    %11 = vector.shape_cast %10 : vector<1x1x1024xf32> to vector<1x1024xf32>
    %12 = vector.broadcast %11 : vector<1x1024xf32> to vector<16x1024xf32>
    %13 = arith.addf %9, %12 : vector<16x1024xf32>
    %c1 = arith.constant 1 : index
    %c0_10 = arith.constant 0 : index
    %c0_11 = arith.constant 0 : index
    %14 = vector.load %arg9[%c1, %c0_10, %c0_11] : memref<2x16x64xbf16, #tpu.memory_space<vmem>>, vector<1x16x64xbf16>
    %15 = vector.shape_cast %14 : vector<1x16x64xbf16> to vector<16x64xbf16>
    %c1_12 = arith.constant 1 : index
    %c0_13 = arith.constant 0 : index
    %c0_14 = arith.constant 0 : index
    %16 = vector.load %arg5[%c1_12, %c0_13, %c0_14] : memref<2x64x1024xbf16, #tpu.memory_space<vmem>>, vector<1x64x1024xbf16>
    %17 = vector.shape_cast %16 : vector<1x64x1024xbf16> to vector<64x1024xbf16>
    %cst_15 = arith.constant dense<0.000000e+00> : vector<16x1024xf32>
    %18 = tpu.matmul %15, %17, %cst_15 {dimension_numbers = #tpu.dot_dimension_numbers<[1], [0], [0], [1], [0, 0, 1, 1], [], []>} : vector<16x64xbf16>, vector<64x1024xbf16>, vector<16x1024xf32> -> vector<16x1024xf32>
    %c1_16 = arith.constant 1 : index
    %c0_17 = arith.constant 0 : index
    %c0_18 = arith.constant 0 : index
    %19 = vector.load %arg6[%c1_16, %c0_17, %c0_18] : memref<2x1x1024xf32, #tpu.memory_space<vmem>>, vector<1x1x1024xf32>
    %20 = vector.shape_cast %19 : vector<1x1x1024xf32> to vector<1x1024xf32>
    %21 = vector.broadcast %20 : vector<1x1024xf32> to vector<16x1024xf32>
    %22 = arith.addf %18, %21 : vector<16x1024xf32>
    %c0_i32_19 = arith.constant 0 : i32
    %23 = arith.cmpi eq, %arg0, %c0_i32_19 : i32
    %24 = arith.extui %23 : i1 to i32
    %c0_i32_20 = arith.constant 0 : i32
    %25 = arith.cmpi ne, %24, %c0_i32_20 : i32
    scf.if %25 {
      %c0_22 = arith.constant 0 : index
      %c0_23 = arith.constant 0 : index
      %29 = vector.load %arg10[%c0_22, %c0_23] : memref<16x1xf32, #tpu.memory_space<vmem>>, vector<16x1xf32>
      %cst_24 = arith.constant dense<0xFF800000> : vector<16xf32>
      %30 = vector.multi_reduction <maximumf>, %13, %cst_24 [1] : vector<16x1024xf32> to vector<16xf32>
      %31 = vector.shape_cast %30 : vector<16xf32> to vector<16x1xf32>
      %32 = arith.maximumf %29, %31 : vector<16x1xf32>
      %c0_25 = arith.constant 0 : index
      %c0_26 = arith.constant 0 : index
      %33 = vector.load %arg11[%c0_25, %c0_26] : memref<16x1xf32, #tpu.memory_space<vmem>>, vector<16x1xf32>
      %c0_27 = arith.constant 0 : index
      %c0_28 = arith.constant 0 : index
      %34 = vector.load %arg10[%c0_27, %c0_28] : memref<16x1xf32, #tpu.memory_space<vmem>>, vector<16x1xf32>
      %35 = arith.subf %34, %32 : vector<16x1xf32>
      %36 = math.exp %35 : vector<16x1xf32>
      %37 = arith.mulf %33, %36 : vector<16x1xf32>
      %38 = vector.broadcast %32 : vector<16x1xf32> to vector<16x1024xf32>
      %39 = arith.subf %13, %38 : vector<16x1024xf32>
      %40 = math.exp %39 : vector<16x1024xf32>
      %cst_29 = arith.constant dense<0.000000e+00> : vector<16xf32>
      %41 = vector.multi_reduction <add>, %40, %cst_29 [1] : vector<16x1024xf32> to vector<16xf32>
      %42 = vector.shape_cast %41 : vector<16xf32> to vector<16x1xf32>
      %43 = arith.addf %37, %42 : vector<16x1xf32>
      %c0_30 = arith.constant 0 : index
      %c0_31 = arith.constant 0 : index
      %44 = vector.load %arg11[%c0_30, %c0_31] : memref<16x1xf32, #tpu.memory_space<vmem>>, vector<16x1xf32>
      tpu.vector_store %arg11[%c0_30, %c0_31], %43 {strides = array<i32>} : memref<16x1xf32, #tpu.memory_space<vmem>>, vector<16x1xf32>,
      %c0_32 = arith.constant 0 : index
      %c0_33 = arith.constant 0 : index
      %45 = vector.load %arg10[%c0_32, %c0_33] : memref<16x1xf32, #tpu.memory_space<vmem>>, vector<16x1xf32>
      tpu.vector_store %arg10[%c0_32, %c0_33], %32 {strides = array<i32>} : memref<16x1xf32, #tpu.memory_space<vmem>>, vector<16x1xf32>,
      %c0_34 = arith.constant 0 : index
      %c0_35 = arith.constant 0 : index
      %46 = vector.load %arg12[%c0_34, %c0_35] : memref<16x1xf32, #tpu.memory_space<vmem>>, vector<16x1xf32>
      %cst_36 = arith.constant dense<0xFF800000> : vector<16xf32>
      %47 = vector.multi_reduction <maximumf>, %22, %cst_36 [1] : vector<16x1024xf32> to vector<16xf32>
      %48 = vector.shape_cast %47 : vector<16xf32> to vector<16x1xf32>
      %49 = arith.maximumf %46, %48 : vector<16x1xf32>
      %c0_37 = arith.constant 0 : index
      %c0_38 = arith.constant 0 : index
      %50 = vector.load %arg13[%c0_37, %c0_38] : memref<16x1xf32, #tpu.memory_space<vmem>>, vector<16x1xf32>
      %c0_39 = arith.constant 0 : index
      %c0_40 = arith.constant 0 : index
      %51 = vector.load %arg12[%c0_39, %c0_40] : memref<16x1xf32, #tpu.memory_space<vmem>>, vector<16x1xf32>
      %52 = arith.subf %51, %49 : vector<16x1xf32>
      %53 = math.exp %52 : vector<16x1xf32>
      %54 = arith.mulf %50, %53 : vector<16x1xf32>
      %55 = vector.broadcast %49 : vector<16x1xf32> to vector<16x1024xf32>
      %56 = arith.subf %22, %55 : vector<16x1024xf32>
      %57 = math.exp %56 : vector<16x1024xf32>
      %cst_41 = arith.constant dense<0.000000e+00> : vector<16xf32>
      %58 = vector.multi_reduction <add>, %57, %cst_41 [1] : vector<16x1024xf32> to vector<16xf32>
      %59 = vector.shape_cast %58 : vector<16xf32> to vector<16x1xf32>
      %60 = arith.addf %54, %59 : vector<16x1xf32>
      %c0_42 = arith.constant 0 : index
      %c0_43 = arith.constant 0 : index
      %61 = vector.load %arg13[%c0_42, %c0_43] : memref<16x1xf32, #tpu.memory_space<vmem>>, vector<16x1xf32>
      tpu.vector_store %arg13[%c0_42, %c0_43], %60 {strides = array<i32>} : memref<16x1xf32, #tpu.memory_space<vmem>>, vector<16x1xf32>,
      %c0_44 = arith.constant 0 : index
      %c0_45 = arith.constant 0 : index
      %62 = vector.load %arg12[%c0_44, %c0_45] : memref<16x1xf32, #tpu.memory_space<vmem>>, vector<16x1xf32>
      tpu.vector_store %arg12[%c0_44, %c0_45], %49 {strides = array<i32>} : memref<16x1xf32, #tpu.memory_space<vmem>>, vector<16x1xf32>,
    } else {
    }
    %c1_i32 = arith.constant 1 : i32
    %26 = arith.cmpi eq, %arg0, %c1_i32 : i32
    %27 = arith.extui %26 : i1 to i32
    %c0_i32_21 = arith.constant 0 : i32
    %28 = arith.cmpi ne, %27, %c0_i32_21 : i32
    scf.if %28 {
      %c0_22 = arith.constant 0 : index
      %c0_23 = arith.constant 0 : index
      %29 = vector.load %arg10[%c0_22, %c0_23] : memref<16x1xf32, #tpu.memory_space<vmem>>, vector<16x1xf32>
      %30 = vector.broadcast %29 : vector<16x1xf32> to vector<16x1024xf32>
      %31 = arith.subf %13, %30 : vector<16x1024xf32>
      %32 = math.exp %31 : vector<16x1024xf32>
      %c0_24 = arith.constant 0 : index
      %c0_25 = arith.constant 0 : index
      %33 = vector.load %arg11[%c0_24, %c0_25] : memref<16x1xf32, #tpu.memory_space<vmem>>, vector<16x1xf32>
      %34 = tpu.reciprocal %33 {approx = true} : vector<16x1xf32> -> vector<16x1xf32>
      %35 = vector.broadcast %34 : vector<16x1xf32> to vector<16x1024xf32>
      %36 = arith.mulf %32, %35 : vector<16x1024xf32>
      %c0_26 = arith.constant 0 : index
      %c0_27 = arith.constant 0 : index
      %37 = vector.load %arg7[%c0_26, %c0_27] : memref<16x1024xf32, #tpu.memory_space<vmem>>, vector<16x1024xf32>
      tpu.vector_store %arg7[%c0_26, %c0_27], %36 {strides = array<i32>} : memref<16x1024xf32, #tpu.memory_space<vmem>>, vector<16x1024xf32>,
      %c0_28 = arith.constant 0 : index
      %c0_29 = arith.constant 0 : index
      %38 = vector.load %arg12[%c0_28, %c0_29] : memref<16x1xf32, #tpu.memory_space<vmem>>, vector<16x1xf32>
      %39 = vector.broadcast %38 : vector<16x1xf32> to vector<16x1024xf32>
      %40 = arith.subf %22, %39 : vector<16x1024xf32>
      %41 = math.exp %40 : vector<16x1024xf32>
      %c0_30 = arith.constant 0 : index
      %c0_31 = arith.constant 0 : index
      %42 = vector.load %arg13[%c0_30, %c0_31] : memref<16x1xf32, #tpu.memory_space<vmem>>, vector<16x1xf32>
      %43 = tpu.reciprocal %42 {approx = true} : vector<16x1xf32> -> vector<16x1xf32>
      %44 = vector.broadcast %43 : vector<16x1xf32> to vector<16x1024xf32>
      %45 = arith.mulf %41, %44 : vector<16x1024xf32>
      %c0_32 = arith.constant 0 : index
      %c0_33 = arith.constant 0 : index
      %46 = vector.load %arg8[%c0_32, %c0_33] : memref<16x1024xf32, #tpu.memory_space<vmem>>, vector<16x1024xf32>
      tpu.vector_store %arg8[%c0_32, %c0_33], %45 {strides = array<i32>} : memref<16x1024xf32, #tpu.memory_space<vmem>>, vector<16x1024xf32>,
    } else {
    }
    return
  }
  func.func @transform_0(%arg0: i32, %arg1: i32) -> (i32, i32) {
    %c0_i32 = arith.constant 0 : i32
    %c0_i32_0 = arith.constant 0 : i32
    %c0_i32_1 = arith.constant 0 : i32
    return %c0_i32, %c0_i32_0 : i32, i32
  }
  func.func @transform_1(%arg0: i32, %arg1: i32) -> (i32, i32) {
    %c0_i32 = arith.constant 0 : i32
    %c0_i32_0 = arith.constant 0 : i32
    %c0_i32_1 = arith.constant 0 : i32
    return %c0_i32, %c0_i32_0 : i32, i32
  }
  func.func @transform_2(%arg0: i32, %arg1: i32) -> (i32, i32) {
    %c0_i32 = arith.constant 0 : i32
    %c0_i32_0 = arith.constant 0 : i32
    %c0_i32_1 = arith.constant 0 : i32
    return %c0_i32, %c0_i32_0 : i32, i32
  }
  func.func @transform_3(%arg0: i32, %arg1: i32) -> (i32, i32, i32) {
    %c0_i32 = arith.constant 0 : i32
    %c0_i32_0 = arith.constant 0 : i32
    %c0_i32_1 = arith.constant 0 : i32
    return %c0_i32, %c0_i32_0, %arg1 : i32, i32, i32
  }
  func.func @transform_4(%arg0: i32, %arg1: i32) -> (i32, i32, i32) {
    %c0_i32 = arith.constant 0 : i32
    %c0_i32_0 = arith.constant 0 : i32
    %c0_i32_1 = arith.constant 0 : i32
    return %c0_i32, %c0_i32_0, %arg1 : i32, i32, i32
  }
  func.func @transform_5(%arg0: i32, %arg1: i32) -> (i32, i32) {
    %0 = arith.muli %arg1, %arg0 : i32
    %c0_i32 = arith.constant 0 : i32
    %c0_i32_0 = arith.constant 0 : i32
    return %c0_i32, %0 : i32, i32
  }
  func.func @transform_6(%arg0: i32, %arg1: i32) -> (i32, i32) {
    %0 = arith.muli %arg1, %arg0 : i32
    %c0_i32 = arith.constant 0 : i32
    %c0_i32_0 = arith.constant 0 : i32
    return %c0_i32, %0 : i32, i32
  }
}

</mosaic_0001>

<llo_original>
// kernel: gflownet_forward.1
$region0: #{gflownet_forward.1}
  #allocation0 [shape = 'u32[]', space=smem, size = 0x4, offset = 0x4, fixed_abs, tag = 'smem constant byte address 0x4 - core index']
  #allocation1 [shape = 'u32[144,128]{1,0:T(1,128)}', space=vmem, size = 0x12000, scoped, tag = 'internal scratch']
  #allocation2 [shape = 'bf16[2,16,64]{2,1,0:T(16,128)(2,1)}', space=vmem, size = 0x2000, scoped, tag = 'scratch operand']
  #allocation3 [shape = 'f32[16,1]{1,0:T(8,128)}', space=vmem, size = 0x2000, scoped, tag = 'scratch operand']
  #allocation4 [shape = 'f32[16,1]{1,0:T(8,128)}', space=vmem, size = 0x2000, scoped, tag = 'scratch operand']
  #allocation5 [shape = 'f32[16,1]{1,0:T(8,128)}', space=vmem, size = 0x2000, scoped, tag = 'scratch operand']
  #allocation6 [shape = 'f32[16,1]{1,0:T(8,128)}', space=vmem, size = 0x2000, scoped, tag = 'scratch operand']
  %s0 = inlined_call_operand.vmem [shape: f32[256,256], index: 0, kind: input, shape index: {}]
  %s1 = inlined_call_operand.vmem [shape: f32[256,10], index: 1, kind: input, shape index: {}]
  %s2 = inlined_call_operand.vmem [shape: f32[192,256], index: 2, kind: input, shape index: {}]
  %s3 = inlined_call_operand.vmem [shape: bf16[2,64,2048], index: 3, kind: input, shape index: {}]
  %s4 = inlined_call_operand.vmem [shape: f32[2,1,2048], index: 4, kind: input, shape index: {}]
  %s5 = inlined_call_operand.hbm [shape: f32[16,2048], index: 5, kind: output, shape index: {0}]
  %s6 = inlined_call_operand.hbm [shape: f32[16,2048], index: 6, kind: output, shape index: {1}]
  %7 = xla_tuple %s5, %s6
  %s8 = sld [smem:[#allocation0]]
  $region134: #{gflownet_forward.1} parent=0
    _
  %s10 = ssub.s32 1, %s8
  %s11 = scalar_select 0, %s10, %s8
  $region1: #{gflownet_forward.1} parent=0
    #allocation7 [shape = 'u8[524288]{0}', space=vmem, size = 0x80000, scoped, tag = 'input window, operand 3']
    #allocation8 [shape = 'u8[16384]{0}', space=vmem, size = 0x4000, scoped, tag = 'input window, operand 4']
    #allocation9 [shape = 'u8[131072]{0}', space=vmem, size = 0x20000, scoped, tag = 'output window, operand 0']
    #allocation10 [shape = 's32[2]{0}', space=sflag, size = 0x8, scoped, tag = 'scoped memory for gflownet_forward.1']
    #allocation11 [shape = 'u8[131072]{0}', space=vmem, size = 0x20000, scoped, tag = 'output window, operand 1']
    #allocation12 [shape = 's32[2]{0}', space=sflag, size = 0x8, scoped, tag = 'scoped memory for gflownet_forward.1']
    %12 = vsyncpa [#allocation10], 0
    %s13 = scalar_lea.sflag [#allocation10], 1
    %14 = vsyncpa %s13, 0
    %15 = vsyncpa [#allocation12], 0
    %s16 = scalar_lea.sflag [#allocation12], 1
    %17 = vsyncpa %s16, 0
    loop: start=0, step=1, limit=6
    $region2: #{gflownet_forward.1} parent=1 // loop_pre_header
      _
    $region3: #{gflownet_forward.1} parent=1 // loop_header
      %s19 = sphi 0, %s23
      %p20 = scmp.ge.s32.totalorder %s19, 6
      %s26 = sphi 0, %s38
      %s27 = sphi 0, %s34
      %s28 = sphi 0, %s26
      %s29 = sphi 0, %s27
      %s30 = sphi 0, %s28
      %s31 = sphi 0, %s29
      %s39 = sphi 0, %s39
      %s41 = sphi 0, %s39
      %s42 = sphi 0, %s41
      %s56 = sphi 0, %s42
      %s60 = sphi 0, %s60
      %s62 = sphi 0, %s60
      %s63 = sphi 0, %s62
      %s77 = sphi 0, %s63
      %s81 = sphi 0, %s81
      %s83 = sphi 0, %s81
      %s84 = sphi 0, %s83
      %s98 = sphi 0, %s84
      %s104 = sphi 0, %s106
      %s107 = sphi 0, %s104
      %s108 = sphi 0, %s107
      %s124 = sphi 0, %s108
      %s130 = sphi 0, %s132
      %s133 = sphi 0, %s130
      %s134 = sphi 0, %s133
      %s150 = sphi 0, %s134
      %s158 = sphi 0, %s160
      %s161 = sphi 0, %s158
      %s162 = sphi 0, %s161
      %s178 = sphi 0, %s162
      %s186 = sphi 0, %s188
      %s189 = sphi 0, %s186
      %s190 = sphi 0, %s189
      %s206 = sphi 0, %s190
    $region4: #{gflownet_forward.1} parent=1 // loop_header_branch
      %22 = sbr.rel (%p20) target = $region8
    $region5: #{gflownet_forward.1} parent=1 // loop_body
      %s24 = ssub.s32 %s19, 1
      %s25 = ssub.s32 %s19, 2
      %s32 = sadd.s32 1, %s27
      %p33 = scmp.ge.s32.totalorder %s32, 2
      %s34 = scalar_select %p33, 0, %s32
      %s35 = sadd.s32 1, %s26
      %s36 = scalar_select %p33, %s35, %s26
      %p37 = scmp.ge.s32.totalorder %s36, 2
      %s38 = scalar_select %p37, 0, %s36
      %s40 = sadd.s32 %s39, 1
      %p43 = scmp.eq.s32.totalorder %s19, 3
      %p44 = scmp.ne.s32.totalorder %s39, %s41
      %p45 = scmp.eq.s32.totalorder %s19, 0
      %p46 = por %p44, %p45
      %p47 = scmp.ne.s32.totalorder %s39, %s41
      %p48 = scmp.eq.s32.totalorder %s24, 3
      %p49 = por %p47, %p48
      %p50 = scmp.ne.s32.totalorder %s41, %s42
      %p51 = scmp.eq.s32.totalorder %s24, 0
      %p52 = por %p50, %p51
      %p53 = scmp.ne.s32.totalorder %s41, %s42
      %p54 = scmp.eq.s32.totalorder %s25, 3
      %p55 = por %p53, %p54
      %p57 = scmp.ne.s32.totalorder %s42, %s56
      %p58 = scmp.eq.s32.totalorder %s25, 0
      %p59 = por %p57, %p58
      %s61 = sadd.s32 %s60, 1
      %p64 = scmp.eq.s32.totalorder %s19, 3
      %p65 = scmp.ne.s32.totalorder %s60, %s62
      %p66 = scmp.eq.s32.totalorder %s19, 0
      %p67 = por %p65, %p66
      %p68 = scmp.ne.s32.totalorder %s60, %s62
      %p69 = scmp.eq.s32.totalorder %s24, 3
      %p70 = por %p68, %p69
      %p71 = scmp.ne.s32.totalorder %s62, %s63
      %p72 = scmp.eq.s32.totalorder %s24, 0
      %p73 = por %p71, %p72
      %p74 = scmp.ne.s32.totalorder %s62, %s63
      %p75 = scmp.eq.s32.totalorder %s25, 3
      %p76 = por %p74, %p75
      %p78 = scmp.ne.s32.totalorder %s63, %s77
      %p79 = scmp.eq.s32.totalorder %s25, 0
      %p80 = por %p78, %p79
      %s82 = sadd.s32 %s81, 1
      %p85 = scmp.eq.s32.totalorder %s19, 3
      %p86 = scmp.ne.s32.totalorder %s81, %s83
      %p87 = scmp.eq.s32.totalorder %s19, 0
      %p88 = por %p86, %p87
      %p89 = scmp.ne.s32.totalorder %s81, %s83
      %p90 = scmp.eq.s32.totalorder %s24, 3
      %p91 = por %p89, %p90
      %p92 = scmp.ne.s32.totalorder %s83, %s84
      %p93 = scmp.eq.s32.totalorder %s24, 0
      %p94 = por %p92, %p93
      %p95 = scmp.ne.s32.totalorder %s83, %s84
      %p96 = scmp.eq.s32.totalorder %s25, 3
      %p97 = por %p95, %p96
      %p99 = scmp.ne.s32.totalorder %s84, %s98
      %p100 = scmp.eq.s32.totalorder %s25, 0
      %p101 = por %p99, %p100
      %s102 = ssub.s32 %s27, %s34
      %p103 = scmp.eq.s32.totalorder %s102, 0
      %s105 = sadd.s32 %s104, 1
      %s106 = scalar_select %p103, %s104, %s105
      %p109 = pneg %p103
      %p110 = scmp.eq.s32.totalorder %s19, 3
      %p111 = por %p109, %p110
      %p112 = scmp.ne.s32.totalorder %s104, %s107
      %p113 = scmp.eq.s32.totalorder %s19, 0
      %p114 = por %p112, %p113
      %p115 = scmp.ne.s32.totalorder %s104, %s107
      %p116 = scmp.eq.s32.totalorder %s24, 3
      %p117 = por %p115, %p116
      %p118 = scmp.ne.s32.totalorder %s107, %s108
      %p119 = scmp.eq.s32.totalorder %s24, 0
      %p120 = por %p118, %p119
      %p121 = scmp.ne.s32.totalorder %s107, %s108
      %p122 = scmp.eq.s32.totalorder %s25, 3
      %p123 = por %p121, %p122
      %p125 = scmp.ne.s32.totalorder %s108, %s124
      %p126 = scmp.eq.s32.totalorder %s25, 0
      %p127 = por %p125, %p126
      %s128 = ssub.s32 %s27, %s34
      %p129 = scmp.eq.s32.totalorder %s128, 0
      %s131 = sadd.s32 %s130, 1
      %s132 = scalar_select %p129, %s130, %s131
      %p135 = pneg %p129
      %p136 = scmp.eq.s32.totalorder %s19, 3
      %p137 = por %p135, %p136
      %p138 = scmp.ne.s32.totalorder %s130, %s133
      %p139 = scmp.eq.s32.totalorder %s19, 0
      %p140 = por %p138, %p139
      %p141 = scmp.ne.s32.totalorder %s130, %s133
      %p142 = scmp.eq.s32.totalorder %s24, 3
      %p143 = por %p141, %p142
      %p144 = scmp.ne.s32.totalorder %s133, %s134
      %p145 = scmp.eq.s32.totalorder %s24, 0
      %p146 = por %p144, %p145
      %p147 = scmp.ne.s32.totalorder %s133, %s134
      %p148 = scmp.eq.s32.totalorder %s25, 3
      %p149 = por %p147, %p148
      %p151 = scmp.ne.s32.totalorder %s134, %s150
      %p152 = scmp.eq.s32.totalorder %s25, 0
      %p153 = por %p151, %p152
      %s154 = smul.u32 %s27, %s26
      %s155 = smul.u32 %s34, %s38
      %s156 = ssub.s32 %s154, %s155
      %p157 = scmp.eq.s32.totalorder %s156, 0
      %s159 = sadd.s32 %s158, 1
      %s160 = scalar_select %p157, %s158, %s159
      %p163 = pneg %p157
      %p164 = scmp.eq.s32.totalorder %s19, 3
      %p165 = por %p163, %p164
      %p166 = scmp.ne.s32.totalorder %s158, %s161
      %p167 = scmp.eq.s32.totalorder %s19, 0
      %p168 = por %p166, %p167
      %p169 = scmp.ne.s32.totalorder %s158, %s161
      %p170 = scmp.eq.s32.totalorder %s24, 3
      %p171 = por %p169, %p170
      %p172 = scmp.ne.s32.totalorder %s161, %s162
      %p173 = scmp.eq.s32.totalorder %s24, 0
      %p174 = por %p172, %p173
      %p175 = scmp.ne.s32.totalorder %s161, %s162
      %p176 = scmp.eq.s32.totalorder %s25, 3
      %p177 = por %p175, %p176
      %p179 = scmp.ne.s32.totalorder %s162, %s178
      %p180 = scmp.eq.s32.totalorder %s25, 0
      %p181 = por %p179, %p180
      %s182 = smul.u32 %s27, %s26
      %s183 = smul.u32 %s34, %s38
      %s184 = ssub.s32 %s182, %s183
      %p185 = scmp.eq.s32.totalorder %s184, 0
      %s187 = sadd.s32 %s186, 1
      %s188 = scalar_select %p185, %s186, %s187
      %p191 = pneg %p185
      %p192 = scmp.eq.s32.totalorder %s19, 3
      %p193 = por %p191, %p192
      %p194 = scmp.ne.s32.totalorder %s186, %s189
      %p195 = scmp.eq.s32.totalorder %s19, 0
      %p196 = por %p194, %p195
      %p197 = scmp.ne.s32.totalorder %s186, %s189
      %p198 = scmp.eq.s32.totalorder %s24, 3
      %p199 = por %p197, %p198
      %p200 = scmp.ne.s32.totalorder %s189, %s190
      %p201 = scmp.eq.s32.totalorder %s24, 0
      %p202 = por %p200, %p201
      %p203 = scmp.ne.s32.totalorder %s189, %s190
      %p204 = scmp.eq.s32.totalorder %s25, 3
      %p205 = por %p203, %p204
      %p207 = scmp.ne.s32.totalorder %s190, %s206
      %p208 = scmp.eq.s32.totalorder %s25, 0
      %p209 = por %p207, %p208
      %p210 = scmp.le.s32.totalorder 1, %s19
      %p211 = scmp.lt.s32.totalorder %s19, 5
      %p212 = pnand %p210, %p211
      %p213 = pneg %p212
      // Predicated region
      $region9: #{gflownet_forward.1} parent=5 // pred_check
        _
      $region10: #{gflownet_forward.1} parent=5 // pred_check_branch
        %215 = sbr.rel (%p212) target = $region12
      $region11: #{gflownet_forward.1} parent=5 // pred_region
        %s216 = ssub.s32 %s19, 1
        // Predicated region
        $region13: #{gflownet_forward.1} parent=11 // pred_check
          %p217 = pneg %p52
        $region14: #{gflownet_forward.1} parent=11 // pred_check_branch
          %219 = sbr.rel (%p217) target = $region16
        $region15: #{gflownet_forward.1} parent=11 // pred_region
          _
        $region16: #{gflownet_forward.1} parent=11 // pred_fallthru
          _
        // Predicated region
        $region17: #{gflownet_forward.1} parent=11 // pred_check
          %p220 = pneg %p73
        $region18: #{gflownet_forward.1} parent=11 // pred_check_branch
          %222 = sbr.rel (%p220) target = $region20
        $region19: #{gflownet_forward.1} parent=11 // pred_region
          _
        $region20: #{gflownet_forward.1} parent=11 // pred_fallthru
          _
        // Predicated region
        $region21: #{gflownet_forward.1} parent=11 // pred_check
          %p223 = pneg %p94
        $region22: #{gflownet_forward.1} parent=11 // pred_check_branch
          %225 = sbr.rel (%p223) target = $region24
        $region23: #{gflownet_forward.1} parent=11 // pred_region
          _
        $region24: #{gflownet_forward.1} parent=11 // pred_fallthru
          _
      $region12: #{gflownet_forward.1} parent=5 // pred_fallthru
        _
      %p226 = scmp.lt.s32.totalorder %s19, 4
      // Predicated region
      $region25: #{gflownet_forward.1} parent=5 // pred_check
        %p227 = pneg %p226
      $region26: #{gflownet_forward.1} parent=5 // pred_check_branch
        %229 = sbr.rel (%p227) target = $region28
      $region27: #{gflownet_forward.1} parent=5 // pred_region
        // Predicated region
        $region29: #{gflownet_forward.1} parent=27 // pred_check
          %p230 = pneg %p114
        $region30: #{gflownet_forward.1} parent=27 // pred_check_branch
          %232 = sbr.rel (%p230) target = $region32
        $region31: #{gflownet_forward.1} parent=27 // pred_region
          %s233 = sand.u32 %s104, 1
          %s234 = sand.u32 %s104, 1
          %s235 = smul.addr %s234, 512
          %s236 = scalar_lea.vmem [#allocation7], %s235
          %s237 = smul.u32 8, %s27
          %s238 = smul.addr %s237, 4
          %s239 = scalar_lea.vmem %s3, %s238
          // Predicated region
          $region33: #{gflownet_forward.1} parent=31 // pred_check
            _
          $region34: #{gflownet_forward.1} parent=31 // pred_check_branch
            %241 = sbr.rel (0) target = $region36
          $region35: #{gflownet_forward.1} parent=31 // pred_region
            // Predicated region
            $region37: #{gflownet_forward.1} parent=35 // pred_check
              _
            $region38: #{gflownet_forward.1} parent=35 // pred_check_branch
              %243 = sbr.rel (0) target = $region40
            $region39: #{gflownet_forward.1} parent=35 // pred_region
              loop: start=0, step=1, limit=1
              $region41: #{gflownet_forward.1} parent=39 // loop_pre_header
                _
              $region42: #{gflownet_forward.1} parent=39 // loop_header
                %s245 = sphi 0, %s249
                %p246 = scmp.ge.s32.totalorder %s245, 1
                %s250 = sphi %s239, %s239
                %s251 = sphi %s236, %s236
              $region43: #{gflownet_forward.1} parent=39 // loop_header_branch
                %248 = sbr.rel (%p246) target = $region47
              $region44: #{gflownet_forward.1} parent=39 // loop_body
                %v252 = vld [vmem:[%s250] sm:$0xff]
                %253 = vst [vmem:[%s251] sm:$0xff] %v252
                %v254 = vld [vmem:[%s250 + $0x8] sm:$0xff]
                %255 = vst [vmem:[%s251 + $0x8] sm:$0xff] %v254
                %v256 = vld [vmem:[%s250 + $0x10] sm:$0xff]
                %257 = vst [vmem:[%s251 + $0x10] sm:$0xff] %v256
                %v258 = vld [vmem:[%s250 + $0x18] sm:$0xff]
                %259 = vst [vmem:[%s251 + $0x18] sm:$0xff] %v258
                %v260 = vld [vmem:[%s250 + $0x40] sm:$0xff]
                %261 = vst [vmem:[%s251 + $0x20] sm:$0xff] %v260
                %v262 = vld [vmem:[%s250 + $0x48] sm:$0xff]
                %263 = vst [vmem:[%s251 + $0x28] sm:$0xff] %v262
                %v264 = vld [vmem:[%s250 + $0x50] sm:$0xff]
                %265 = vst [vmem:[%s251 + $0x30] sm:$0xff] %v264
                %v266 = vld [vmem:[%s250 + $0x58] sm:$0xff]
                %267 = vst [vmem:[%s251 + $0x38] sm:$0xff] %v266
                %v268 = vld [vmem:[%s250 + $0x80] sm:$0xff]
                %269 = vst [vmem:[%s251 + $0x40] sm:$0xff] %v268
                %v270 = vld [vmem:[%s250 + $0x88] sm:$0xff]
                %271 = vst [vmem:[%s251 + $0x48] sm:$0xff] %v270
                %v272 = vld [vmem:[%s250 + $0x90] sm:$0xff]
                %273 = vst [vmem:[%s251 + $0x50] sm:$0xff] %v272
                %v274 = vld [vmem:[%s250 + $0x98] sm:$0xff]
                %275 = vst [vmem:[%s251 + $0x58] sm:$0xff] %v274
                %v276 = vld [vmem:[%s250 + $0xc0] sm:$0xff]
                %277 = vst [vmem:[%s251 + $0x60] sm:$0xff] %v276
                %v278 = vld [vmem:[%s250 + $0xc8] sm:$0xff]
                %279 = vst [vmem:[%s251 + $0x68] sm:$0xff] %v278
                %v280 = vld [vmem:[%s250 + $0xd0] sm:$0xff]
                %281 = vst [vmem:[%s251 + $0x70] sm:$0xff] %v280
                %v282 = vld [vmem:[%s250 + $0xd8] sm:$0xff]
                %283 = vst [vmem:[%s251 + $0x78] sm:$0xff] %v282
                %v284 = vld [vmem:[%s250 + $0x100] sm:$0xff]
                %285 = vst [vmem:[%s251 + $0x80] sm:$0xff] %v284
                %v286 = vld [vmem:[%s250 + $0x108] sm:$0xff]
                %287 = vst [vmem:[%s251 + $0x88] sm:$0xff] %v286
                %v288 = vld [vmem:[%s250 + $0x110] sm:$0xff]
                %289 = vst [vmem:[%s251 + $0x90] sm:$0xff] %v288
                %v290 = vld [vmem:[%s250 + $0x118] sm:$0xff]
                %291 = vst [vmem:[%s251 + $0x98] sm:$0xff] %v290
                %v292 = vld [vmem:[%s250 + $0x140] sm:$0xff]
                %293 = vst [vmem:[%s251 + $0xa0] sm:$0xff] %v292
                %v294 = vld [vmem:[%s250 + $0x148] sm:$0xff]
                %295 = vst [vmem:[%s251 + $0xa8] sm:$0xff] %v294
                %v296 = vld [vmem:[%s250 + $0x150] sm:$0xff]
                %297 = vst [vmem:[%s251 + $0xb0] sm:$0xff] %v296
                %v298 = vld [vmem:[%s250 + $0x158] sm:$0xff]
                %299 = vst [vmem:[%s251 + $0xb8] sm:$0xff] %v298
                %v300 = vld [vmem:[%s250 + $0x180] sm:$0xff]
                %301 = vst [vmem:[%s251 + $0xc0] sm:$0xff] %v300
                %v302 = vld [vmem:[%s250 + $0x188] sm:$0xff]
                %303 = vst [vmem:[%s251 + $0xc8] sm:$0xff] %v302
                %v304 = vld [vmem:[%s250 + $0x190] sm:$0xff]
                %305 = vst [vmem:[%s251 + $0xd0] sm:$0xff] %v304
                %v306 = vld [vmem:[%s250 + $0x198] sm:$0xff]
                %307 = vst [vmem:[%s251 + $0xd8] sm:$0xff] %v306
                %v308 = vld [vmem:[%s250 + $0x1c0] sm:$0xff]
                %309 = vst [vmem:[%s251 + $0xe0] sm:$0xff] %v308
                %v310 = vld [vmem:[%s250 + $0x1c8] sm:$0xff]
                %311 = vst [vmem:[%s251 + $0xe8] sm:$0xff] %v310
                %v312 = vld [vmem:[%s250 + $0x1d0] sm:$0xff]
                %313 = vst [vmem:[%s251 + $0xf0] sm:$0xff] %v312
                %v314 = vld [vmem:[%s250 + $0x1d8] sm:$0xff]
                %315 = vst [vmem:[%s251 + $0xf8] sm:$0xff] %v314
                %v316 = vld [vmem:[%s250 + $0x200] sm:$0xff]
                %317 = vst [vmem:[%s251 + $0x100] sm:$0xff] %v316
                %v318 = vld [vmem:[%s250 + $0x208] sm:$0xff]
                %319 = vst [vmem:[%s251 + $0x108] sm:$0xff] %v318
                %v320 = vld [vmem:[%s250 + $0x210] sm:$0xff]
                %321 = vst [vmem:[%s251 + $0x110] sm:$0xff] %v320
                %v322 = vld [vmem:[%s250 + $0x218] sm:$0xff]
                %323 = vst [vmem:[%s251 + $0x118] sm:$0xff] %v322
                %v324 = vld [vmem:[%s250 + $0x240] sm:$0xff]
                %325 = vst [vmem:[%s251 + $0x120] sm:$0xff] %v324
                %v326 = vld [vmem:[%s250 + $0x248] sm:$0xff]
                %327 = vst [vmem:[%s251 + $0x128] sm:$0xff] %v326
                %v328 = vld [vmem:[%s250 + $0x250] sm:$0xff]
                %329 = vst [vmem:[%s251 + $0x130] sm:$0xff] %v328
                %v330 = vld [vmem:[%s250 + $0x258] sm:$0xff]
                %331 = vst [vmem:[%s251 + $0x138] sm:$0xff] %v330
                %v332 = vld [vmem:[%s250 + $0x280] sm:$0xff]
                %333 = vst [vmem:[%s251 + $0x140] sm:$0xff] %v332
                %v334 = vld [vmem:[%s250 + $0x288] sm:$0xff]
                %335 = vst [vmem:[%s251 + $0x148] sm:$0xff] %v334
                %v336 = vld [vmem:[%s250 + $0x290] sm:$0xff]
                %337 = vst [vmem:[%s251 + $0x150] sm:$0xff] %v336
                %v338 = vld [vmem:[%s250 + $0x298] sm:$0xff]
                %339 = vst [vmem:[%s251 + $0x158] sm:$0xff] %v338
                %v340 = vld [vmem:[%s250 + $0x2c0] sm:$0xff]
                %341 = vst [vmem:[%s251 + $0x160] sm:$0xff] %v340
                %v342 = vld [vmem:[%s250 + $0x2c8] sm:$0xff]
                %343 = vst [vmem:[%s251 + $0x168] sm:$0xff] %v342
                %v344 = vld [vmem:[%s250 + $0x2d0] sm:$0xff]
                %345 = vst [vmem:[%s251 + $0x170] sm:$0xff] %v344
                %v346 = vld [vmem:[%s250 + $0x2d8] sm:$0xff]
                %347 = vst [vmem:[%s251 + $0x178] sm:$0xff] %v346
                %v348 = vld [vmem:[%s250 + $0x300] sm:$0xff]
                %349 = vst [vmem:[%s251 + $0x180] sm:$0xff] %v348
                %v350 = vld [vmem:[%s250 + $0x308] sm:$0xff]
                %351 = vst [vmem:[%s251 + $0x188] sm:$0xff] %v350
                %v352 = vld [vmem:[%s250 + $0x310] sm:$0xff]
                %353 = vst [vmem:[%s251 + $0x190] sm:$0xff] %v352
                %v354 = vld [vmem:[%s250 + $0x318] sm:$0xff]
                %355 = vst [vmem:[%s251 + $0x198] sm:$0xff] %v354
                %v356 = vld [vmem:[%s250 + $0x340] sm:$0xff]
                %357 = vst [vmem:[%s251 + $0x1a0] sm:$0xff] %v356
                %v358 = vld [vmem:[%s250 + $0x348] sm:$0xff]
                %359 = vst [vmem:[%s251 + $0x1a8] sm:$0xff] %v358
                %v360 = vld [vmem:[%s250 + $0x350] sm:$0xff]
                %361 = vst [vmem:[%s251 + $0x1b0] sm:$0xff] %v360
                %v362 = vld [vmem:[%s250 + $0x358] sm:$0xff]
                %363 = vst [vmem:[%s251 + $0x1b8] sm:$0xff] %v362
                %v364 = vld [vmem:[%s250 + $0x380] sm:$0xff]
                %365 = vst [vmem:[%s251 + $0x1c0] sm:$0xff] %v364
                %v366 = vld [vmem:[%s250 + $0x388] sm:$0xff]
                %367 = vst [vmem:[%s251 + $0x1c8] sm:$0xff] %v366
                %v368 = vld [vmem:[%s250 + $0x390] sm:$0xff]
                %369 = vst [vmem:[%s251 + $0x1d0] sm:$0xff] %v368
                %v370 = vld [vmem:[%s250 + $0x398] sm:$0xff]
                %371 = vst [vmem:[%s251 + $0x1d8] sm:$0xff] %v370
                %v372 = vld [vmem:[%s250 + $0x3c0] sm:$0xff]
                %373 = vst [vmem:[%s251 + $0x1e0] sm:$0xff] %v372
                %v374 = vld [vmem:[%s250 + $0x3c8] sm:$0xff]
                %375 = vst [vmem:[%s251 + $0x1e8] sm:$0xff] %v374
                %v376 = vld [vmem:[%s250 + $0x3d0] sm:$0xff]
                %377 = vst [vmem:[%s251 + $0x1f0] sm:$0xff] %v376
                %v378 = vld [vmem:[%s250 + $0x3d8] sm:$0xff]
                %379 = vst [vmem:[%s251 + $0x1f8] sm:$0xff] %v378
              $region45: #{gflownet_forward.1} parent=39 // loop_footer
                %s249 = sadd.s32 1, %s245
              $region46: #{gflownet_forward.1} parent=39 // loop_footer_branch
                %244 = sbr.rel target = $region42
              $region47: #{gflownet_forward.1} parent=39 // loop_exit
                _
            $region40: #{gflownet_forward.1} parent=35 // pred_fallthru
              _
            // Predicated region
            $region48: #{gflownet_forward.1} parent=35 // pred_check
              _
            $region49: #{gflownet_forward.1} parent=35 // pred_check_branch
              %381 = sbr.rel target = $region51
            $region50: #{gflownet_forward.1} parent=35 // pred_region
              _
            $region51: #{gflownet_forward.1} parent=35 // pred_fallthru
              _
          $region36: #{gflownet_forward.1} parent=31 // pred_fallthru
            _
          %382 = vnop
        $region32: #{gflownet_forward.1} parent=27 // pred_fallthru
          _
        // Predicated region
        $region52: #{gflownet_forward.1} parent=27 // pred_check
          %p383 = pneg %p140
        $region53: #{gflownet_forward.1} parent=27 // pred_check_branch
          %385 = sbr.rel (%p383) target = $region55
        $region54: #{gflownet_forward.1} parent=27 // pred_region
          %s386 = sand.u32 %s130, 1
          %s387 = sand.u32 %s130, 1
          %s388 = smul.addr %s387, 16
          %s389 = scalar_lea.vmem [#allocation8], %s388
          %s390 = smul.u32 8, %s27
          %s391 = scalar_lea.vmem %s4, %s390
          // Predicated region
          $region56: #{gflownet_forward.1} parent=54 // pred_check
            _
          $region57: #{gflownet_forward.1} parent=54 // pred_check_branch
            %393 = sbr.rel (0) target = $region59
          $region58: #{gflownet_forward.1} parent=54 // pred_region
            // Predicated region
            $region60: #{gflownet_forward.1} parent=58 // pred_check
              _
            $region61: #{gflownet_forward.1} parent=58 // pred_check_branch
              %395 = sbr.rel (0) target = $region63
            $region62: #{gflownet_forward.1} parent=58 // pred_region
              // Predicated region
              $region75: #{gflownet_forward.1} parent=62 // pred_check
                _
              $region76: #{gflownet_forward.1} parent=62 // pred_check_branch
                %412 = sbr.rel (0) target = $region78
              $region77: #{gflownet_forward.1} parent=62 // pred_region
                loop: start=0, step=1, limit=1
                $region79: #{gflownet_forward.1} parent=77 // loop_pre_header
                  _
                $region80: #{gflownet_forward.1} parent=77 // loop_header
                  %s414 = sphi 0, %s418
                  %p415 = scmp.ge.s32.totalorder %s414, 1
                  %s419 = sphi %s391, %s391
                  %s420 = sphi %s389, %s389
                $region81: #{gflownet_forward.1} parent=77 // loop_header_branch
                  %417 = sbr.rel (%p415) target = $region85
                $region82: #{gflownet_forward.1} parent=77 // loop_body
                  %v421 = vld [vmem:[%s419] sm:$0xff]
                  %422 = vst [vmem:[%s420] sm:$0xff] %v421
                  %v423 = vld [vmem:[%s419 + $0x10] sm:$0xff]
                  %424 = vst [vmem:[%s420 + $0x8] sm:$0xff] %v423
                $region83: #{gflownet_forward.1} parent=77 // loop_footer
                  %s418 = sadd.s32 1, %s414
                $region84: #{gflownet_forward.1} parent=77 // loop_footer_branch
                  %413 = sbr.rel target = $region80
                $region85: #{gflownet_forward.1} parent=77 // loop_exit
                  _
              $region78: #{gflownet_forward.1} parent=62 // pred_fallthru
                _
              // Predicated region
              $region86: #{gflownet_forward.1} parent=62 // pred_check
                _
              $region87: #{gflownet_forward.1} parent=62 // pred_check_branch
                %426 = sbr.rel target = $region89
              $region88: #{gflownet_forward.1} parent=62 // pred_region
                _
              $region89: #{gflownet_forward.1} parent=62 // pred_fallthru
                _
            $region63: #{gflownet_forward.1} parent=58 // pred_fallthru
              _
            // Predicated region
            $region64: #{gflownet_forward.1} parent=58 // pred_check
              _
            $region65: #{gflownet_forward.1} parent=58 // pred_check_branch
              %397 = sbr.rel target = $region67
            $region66: #{gflownet_forward.1} parent=58 // pred_region
              loop: start=0, step=1, limit=1
              $region68: #{gflownet_forward.1} parent=66 // loop_pre_header
                _
              $region69: #{gflownet_forward.1} parent=66 // loop_header
                %s400 = sphi 0, %s404
                %p401 = scmp.ge.s32.totalorder %s400, 1
                %s405 = sphi %s391, %s391
                %s406 = sphi %s389, %s389
              $region70: #{gflownet_forward.1} parent=66 // loop_header_branch
                %403 = sbr.rel (%p401) target = $region74
              $region71: #{gflownet_forward.1} parent=66 // loop_body
                %v407 = vld [vmem:[%s405] sm:$0xff]
                %408 = vst [vmem:[%s406] sm:$0xff] %v407
                %v409 = vld [vmem:[%s405 + $0x10] sm:$0xff]
                %410 = vst [vmem:[%s406 + $0x8] sm:$0xff] %v409
              $region72: #{gflownet_forward.1} parent=66 // loop_footer
                %s404 = sadd.s32 1, %s400
              $region73: #{gflownet_forward.1} parent=66 // loop_footer_branch
                %399 = sbr.rel target = $region69
              $region74: #{gflownet_forward.1} parent=66 // loop_exit
                _
            $region67: #{gflownet_forward.1} parent=58 // pred_fallthru
              _
          $region59: #{gflownet_forward.1} parent=54 // pred_fallthru
            _
          %427 = vnop
        $region55: #{gflownet_forward.1} parent=27 // pred_fallthru
          _
      $region28: #{gflownet_forward.1} parent=5 // pred_fallthru
        _
      %p428 = scmp.le.s32.totalorder 1, %s19
      %p429 = scmp.lt.s32.totalorder %s19, 5
      %p430 = pnand %p428, %p429
      %p431 = pneg %p430
      // Predicated region
      $region90: #{gflownet_forward.1} parent=5 // pred_check
        _
      $region91: #{gflownet_forward.1} parent=5 // pred_check_branch
        %433 = sbr.rel (%p430) target = $region93
      $region92: #{gflownet_forward.1} parent=5 // pred_region
        %s434 = ssub.s32 %s19, 1
        %s435 = sand.u32 %s107, 1
        %s436 = sand.u32 %s107, 1
        %s437 = smul.addr %s436, 512
        %s438 = scalar_lea.vmem [#allocation7], %s437
        // Predicated region
        $region94: #{gflownet_forward.1} parent=92 // pred_check
          %p439 = pneg %p120
        $region95: #{gflownet_forward.1} parent=92 // pred_check_branch
          %441 = sbr.rel (%p439) target = $region97
        $region96: #{gflownet_forward.1} parent=92 // pred_region
          _
        $region97: #{gflownet_forward.1} parent=92 // pred_fallthru
          _
        %s442 = sand.u32 %s133, 1
        %s443 = sand.u32 %s133, 1
        %s444 = smul.addr %s443, 16
        %s445 = scalar_lea.vmem [#allocation8], %s444
        // Predicated region
        $region98: #{gflownet_forward.1} parent=92 // pred_check
          %p446 = pneg %p146
        $region99: #{gflownet_forward.1} parent=92 // pred_check_branch
          %448 = sbr.rel (%p446) target = $region101
        $region100: #{gflownet_forward.1} parent=92 // pred_region
          _
        $region101: #{gflownet_forward.1} parent=92 // pred_fallthru
          _
        %p449 = pneg %p52
        %p450 = pneg %p49
        %p451 = pneg %p73
        %p452 = pneg %p70
        %p453 = pneg %p94
        %p454 = pneg %p91
        %s455 = sand.u32 %s107, 1
        %s456 = sand.u32 %s107, 1
        %s457 = smul.addr %s456, 512
        %s458 = scalar_lea.vmem [#allocation7], %s457
        %p459 = pneg %p120
        %p460 = pneg %p117
        %s461 = sand.u32 %s133, 1
        %s462 = sand.u32 %s133, 1
        %s463 = smul.addr %s462, 16
        %s464 = scalar_lea.vmem [#allocation8], %s463
        %p465 = pneg %p146
        %p466 = pneg %p143
        %p467 = pneg %p174
        %p468 = pneg %p171
        %s469 = sand.u32 %s161, 1
        %s470 = scalar_lea.sflag [#allocation10], %s469
        %s471 = sand.u32 %s161, 1
        %s472 = smul.addr %s471, 128
        %s473 = scalar_lea.vmem [#allocation9], %s472
        %p474 = pneg %p202
        %p475 = pneg %p199
        %s476 = sand.u32 %s189, 1
        %s477 = scalar_lea.sflag [#allocation12], %s476
        %s478 = sand.u32 %s189, 1
        %s479 = smul.addr %s478, 128
        %s480 = scalar_lea.vmem [#allocation11], %s479
        %s481 = smul.u32 8, %s29
        %s482 = smul.u32 8, %s29
        %s483 = smul.u32 %s29, %s28
        %s484 = smul.u32 8, %s483
        %s485 = smul.u32 %s29, %s28
        %s486 = smul.u32 8, %s485
        %p488 = scmp.eq.s32.totalorder %s28, 0
        %p489 = scmp.eq.s32.totalorder %s29, 0
        %p490 = pnand %p488, %p489
        %p491 = pneg %p490
        // Predicated region
        $region102: #{gflownet_forward.1} parent=92 // pred_check
          _
        $region103: #{gflownet_forward.1} parent=92 // pred_check_branch
          %493 = sbr.rel (%p490) target = $region105
        $region104: #{gflownet_forward.1} parent=92 // pred_region
          %v494 = vld [vmem:[%s2] sm:$0xff]
          %v495 = vld [vmem:[%s2 + $0x10] sm:$0x3]
          %v496 = vld [vmem:[%s2 + $0x20] ss:$0 sm:$0xff]
          %v497 = vld [vmem:[%s2 + $0x30] sm:$0xff]
          %v498 = vld [vmem:[%s2 + $0x40] sm:$0xff]
          %v499 = vld [vmem:[%s2 + $0x50] sm:$0xff]
          %v500 = vld [vmem:[%s2 + $0x60] sm:$0xff]
          %v501 = vld [vmem:[%s2 + $0x70] ss:$0 sm:$0xff]
          %v502 = vld [vmem:[%s2 + $0x80] sm:$0xff]
          %v503 = vld [vmem:[%s2 + $0x90] sm:$0xff]
          %v504 = vld [vmem:[%s2 + $0xa0] sm:$0xff]
          %v505 = vld [vmem:[%s2 + $0xb0] sm:$0xff]
          %v506 = vld [vmem:[%s2 + $0xc0] ss:$0 sm:$0xff]
          %v507 = vld [vmem:[%s2 + $0xd0] sm:$0xff]
          %v508 = vld [vmem:[%s2 + $0xe0] sm:$0xff]
          %v509 = vld [vmem:[%s2 + $0xf0] sm:$0xff]
          %v510 = vld [vmem:[%s2 + $0x100] sm:$0xff]
          %v511 = vld [vmem:[%s2 + $0x110] sm:$0xff]
          %v512 = vld [vmem:[%s2 + $0x120] sm:$0xff]
          %v513 = vld [vmem:[%s2 + $0x130] sm:$0xff]
          %v514 = vld [vmem:[%s2 + $0x140] sm:$0xff]
          %v515 = vld [vmem:[%s2 + $0x150] ss:$0 sm:$0xff]
          %v516 = vld [vmem:[%s2 + $0x160] sm:$0xff]
          %v517 = vld [vmem:[%s2 + $0x168] sm:$0xff]
          %v518 = vld [vmem:[%s2 + $0x170] sm:$0xff]
          %v519 = vld [vmem:[%s2 + $0x178] sm:$0xff]
          %v520 = vld [vmem:[%s0] sm:$0xff]
          %v521 = vld [vmem:[%s0 + $0x8] sm:$0xff]
          %v522 = vld [vmem:[%s0 + $0x10] sm:$0xff]
          %v523 = vld [vmem:[%s0 + $0x18] sm:$0xff]
          %v524 = vld [vmem:[%s0 + $0x20] sm:$0xff]
          %v525 = vld [vmem:[%s0 + $0x28] sm:$0xff]
          %v526 = vld [vmem:[%s0 + $0x30] sm:$0xff]
          %v527 = vld [vmem:[%s0 + $0x38] sm:$0xff]
          %v528 = vld [vmem:[%s0 + $0x40] sm:$0xff]
          %v529 = vld [vmem:[%s0 + $0x48] sm:$0xff]
          %v530 = vld [vmem:[%s0 + $0x50] sm:$0xff]
          %v531 = vld [vmem:[%s0 + $0x58] sm:$0xff]
          %v532 = vld [vmem:[%s0 + $0x60] sm:$0xff]
          %v533 = vld [vmem:[%s0 + $0x68] sm:$0xff]
          %v534 = vld [vmem:[%s0 + $0x70] sm:$0xff]
          %v535 = vld [vmem:[%s0 + $0x78] sm:$0xff]
          %v536 = vld [vmem:[%s0 + $0x80] sm:$0xff]
          %v537 = vld [vmem:[%s0 + $0x88] sm:$0xff]
          %v538 = vld [vmem:[%s0 + $0x90] sm:$0xff]
          %v539 = vld [vmem:[%s0 + $0x98] sm:$0xff]
          %v540 = vld [vmem:[%s0 + $0xa0] sm:$0xff]
          %v541 = vld [vmem:[%s0 + $0xa8] sm:$0xff]
          %v542 = vld [vmem:[%s0 + $0xb0] sm:$0xff]
          %v543 = vld [vmem:[%s0 + $0xb8] sm:$0xff]
          %v544 = vld [vmem:[%s0 + $0xc0] sm:$0xff]
          %v545 = vld [vmem:[%s0 + $0xc8] sm:$0xff]
          %v546 = vld [vmem:[%s0 + $0xd0] sm:$0xff]
          %v547 = vld [vmem:[%s0 + $0xd8] sm:$0xff]
          %v548 = vld [vmem:[%s0 + $0xe0] sm:$0xff]
          %v549 = vld [vmem:[%s0 + $0xe8] sm:$0xff]
          %v550 = vld [vmem:[%s0 + $0xf0] sm:$0xff]
          %v551 = vld [vmem:[%s0 + $0xf8] sm:$0xff]
          %v552 = vld [vmem:[%s0 + $0x100] sm:$0xff]
          %v553 = vld [vmem:[%s0 + $0x108] sm:$0xff]
          %v554 = vld [vmem:[%s0 + $0x110] sm:$0xff]
          %v555 = vld [vmem:[%s0 + $0x118] sm:$0xff]
          %v556 = vld [vmem:[%s0 + $0x120] sm:$0xff]
          %v557 = vld [vmem:[%s0 + $0x128] sm:$0xff]
          %v558 = vld [vmem:[%s0 + $0x130] sm:$0xff]
          %v559 = vld [vmem:[%s0 + $0x138] sm:$0xff]
          %v560 = vld [vmem:[%s0 + $0x140] sm:$0xff]
          %v561 = vld [vmem:[%s0 + $0x148] sm:$0xff]
          %v562 = vld [vmem:[%s0 + $0x150] sm:$0xff]
          %v563 = vld [vmem:[%s0 + $0x158] sm:$0xff]
          %v564 = vld [vmem:[%s0 + $0x160] sm:$0xff]
          %v565 = vld [vmem:[%s0 + $0x168] sm:$0xff]
          %v566 = vld [vmem:[%s0 + $0x170] sm:$0xff]
          %v567 = vld [vmem:[%s0 + $0x178] sm:$0xff]
          %v568 = vld [vmem:[%s0 + $0x180] sm:$0xff]
          %v569 = vld [vmem:[%s0 + $0x188] sm:$0xff]
          %v570 = vld [vmem:[%s0 + $0x190] sm:$0xff]
          %v571 = vld [vmem:[%s0 + $0x198] sm:$0xff]
          %v572 = vld [vmem:[%s0 + $0x1a0] sm:$0xff]
          %v573 = vld [vmem:[%s0 + $0x1a8] sm:$0xff]
          %v574 = vld [vmem:[%s0 + $0x1b0] sm:$0xff]
          %v575 = vld [vmem:[%s0 + $0x1b8] sm:$0xff]
          %v576 = vld [vmem:[%s0 + $0x1c0] sm:$0xff]
          %v577 = vld [vmem:[%s0 + $0x1c8] sm:$0xff]
          %v578 = vld [vmem:[%s0 + $0x1d0] sm:$0xff]
          %v579 = vld [vmem:[%s0 + $0x1d8] sm:$0xff]
          %v580 = vld [vmem:[%s0 + $0x1e0] sm:$0xff]
          %v581 = vld [vmem:[%s0 + $0x1e8] sm:$0xff]
          %v582 = vld [vmem:[%s0 + $0x1f0] sm:$0xff]
          %v583 = vld [vmem:[%s0 + $0x1f8] sm:$0xff]
          %v584 = vld [vmem:[%s1] sm:$0xff]
          %v585 = vld [vmem:[%s1 + $0x8] sm:$0xff]
          %v586 = vld [vmem:[%s1 + $0x10] sm:$0xff]
          %v587 = vld [vmem:[%s1 + $0x18] sm:$0xff]
          %v588 = vld [vmem:[%s1 + $0x20] sm:$0xff]
          %v589 = vld [vmem:[%s1 + $0x28] sm:$0xff]
          %v590 = vld [vmem:[%s1 + $0x30] sm:$0xff]
          %v591 = vld [vmem:[%s1 + $0x38] sm:$0xff]
          %v592 = vld [vmem:[%s1 + $0x40] sm:$0xff]
          %v593 = vld [vmem:[%s1 + $0x48] sm:$0xff]
          %v594 = vld [vmem:[%s1 + $0x50] sm:$0xff]
          %v595 = vld [vmem:[%s1 + $0x58] sm:$0xff]
          %v596 = vld [vmem:[%s1 + $0x60] sm:$0xff]
          %v597 = vld [vmem:[%s1 + $0x68] sm:$0xff]
          %v598 = vld [vmem:[%s1 + $0x70] sm:$0xff]
          %v599 = vld [vmem:[%s1 + $0x78] sm:$0xff]
          %v600 = vld [vmem:[%s1 + $0x80] sm:$0xff]
          %v601 = vld [vmem:[%s1 + $0x88] sm:$0xff]
          %v602 = vld [vmem:[%s1 + $0x90] sm:$0xff]
          %v603 = vld [vmem:[%s1 + $0x98] sm:$0xff]
          %v604 = vld [vmem:[%s1 + $0xa0] sm:$0xff]
          %v605 = vld [vmem:[%s1 + $0xa8] sm:$0xff]
          %v606 = vld [vmem:[%s1 + $0xb0] sm:$0xff]
          %v607 = vld [vmem:[%s1 + $0xb8] sm:$0xff]
          %v608 = vld [vmem:[%s1 + $0xc0] sm:$0xff]
          %v609 = vld [vmem:[%s1 + $0xc8] sm:$0xff]
          %v610 = vld [vmem:[%s1 + $0xd0] sm:$0xff]
          %v611 = vld [vmem:[%s1 + $0xd8] sm:$0xff]
          %v612 = vld [vmem:[%s1 + $0xe0] sm:$0xff]
          %v613 = vld [vmem:[%s1 + $0xe8] sm:$0xff]
          %v614 = vld [vmem:[%s1 + $0xf0] sm:$0xff]
          %v615 = vld [vmem:[%s1 + $0xf8] sm:$0xff]
          %616 = vmatprep.subr.mxu0 0.0
          %617 = vmatpush1.msra.mxu0 %v584
          %618 = vmatprep.subr.mxu0 0.0
          %619 = vmatpush1.msra.mxu0 %v585
          %620 = vmatprep.subr.mxu0 0.0
          %621 = vmatpush1.msra.mxu0 %v586
          %622 = vmatprep.subr.mxu0 0.0
          %623 = vmatpush1.msra.mxu0 %v587
          %624 = vmatprep.subr.mxu0 0.0
          %625 = vmatpush1.msra.mxu0 %v588
          %626 = vmatprep.subr.mxu0 0.0
          %627 = vmatpush1.msra.mxu0 %v589
          %628 = vmatprep.subr.mxu0 0.0
          %629 = vmatpush1.msra.mxu0 %v590
          %630 = vmatprep.subr.mxu0 0.0
          %631 = vmatpush1.msra.mxu0 %v591
          %632 = vmatprep.subr.mxu0 0.0
          %633 = vmatpush1.msra.mxu0 %v592
          %634 = vmatprep.subr.mxu0 0.0
          %635 = vmatpush1.msra.mxu0 %v593
          %636 = vmatprep.subr.mxu0 0.0
          %637 = vmatpush1.msra.mxu0 %v594
          %638 = vmatprep.subr.mxu0 0.0
          %639 = vmatpush1.msra.mxu0 %v595
          %640 = vmatprep.subr.mxu0 0.0
          %641 = vmatpush1.msra.mxu0 %v596
          %642 = vmatprep.subr.mxu0 0.0
          %643 = vmatpush1.msra.mxu0 %v597
          %644 = vmatprep.subr.mxu0 0.0
          %645 = vmatpush1.msra.mxu0 %v598
          %646 = vmatprep.subr.mxu0 0.0
          %647 = vmatpush1.msra.mxu0 %v599
          %648 = vmatprep.subr.mxu0 0.0
          %649 = vmatpush1.msra.mxu0 %v600
          %650 = vmatprep.subr.mxu0 0.0
          %651 = vmatpush1.msra.mxu0 %v601
          %652 = vmatprep.subr.mxu0 0.0
          %653 = vmatpush1.msra.mxu0 %v602
          %654 = vmatprep.subr.mxu0 0.0
          %655 = vmatpush1.msra.mxu0 %v603
          %656 = vmatprep.subr.mxu0 0.0
          %657 = vmatpush1.msra.mxu0 %v604
          %658 = vmatprep.subr.mxu0 0.0
          %659 = vmatpush1.msra.mxu0 %v605
          %660 = vmatprep.subr.mxu0 0.0
          %661 = vmatpush1.msra.mxu0 %v606
          %662 = vmatprep.subr.mxu0 0.0
          %663 = vmatpush1.msra.mxu0 %v607
          %664 = vmatprep.subr.mxu0 0.0
          %665 = vmatpush1.msra.mxu0 %v608
          %666 = vmatprep.subr.mxu0 0.0
          %667 = vmatpush1.msra.mxu0 %v609
          %668 = vmatprep.subr.mxu0 0.0
          %669 = vmatpush1.msra.mxu0 %v610
          %670 = vmatprep.subr.mxu0 0.0
          %671 = vmatpush1.msra.mxu0 %v611
          %672 = vmatprep.subr.mxu0 0.0
          %673 = vmatpush1.msra.mxu0 %v612
          %674 = vmatprep.subr.mxu0 0.0
          %675 = vmatpush1.msra.mxu0 %v613
          %676 = vmatprep.subr.mxu0 0.0
          %677 = vmatpush1.msra.mxu0 %v614
          %678 = vmatprep.subr.mxu0 0.0
          %679 = vmatpush1.msra.mxu0 %v615
          %680 = vmatprep.mubr.f32.mxu0 %v521
          %681 = vmatmul.mubr.f32.gmra.mrb[0].mxu0 %v520
          %v682 = vpop.f32.mrb[0].mxu0
          %v683 = vadd.f32 0.0, %v682
          %v684 = vpop.f32.mrb[0].mxu0
          %685 = vmatprep.mubr.f32.mxu0 %v523
          %686 = vmatmul.mubr.f32.gmra.mrb[0].mxu0 %v522
          %v687 = vpop.f32.mrb[0].mxu0
          %v688 = vadd.f32 0.0, %v687
          %v689 = vpop.f32.mrb[0].mxu0
          %690 = vmatprep.mubr.f32.mxu0 %v525
          %691 = vmatmul.mubr.f32.gmra.mrb[0].mxu0 %v524
          %v692 = vpop.f32.mrb[0].mxu0
          %v693 = vadd.f32 0.0, %v692
          %v694 = vpop.f32.mrb[0].mxu0
          %695 = vmatprep.mubr.f32.mxu0 %v527
          %696 = vmatmul.mubr.f32.gmra.mrb[0].mxu0 %v526
          %v697 = vpop.f32.mrb[0].mxu0
          %v698 = vadd.f32 0.0, %v697
          %v699 = vpop.f32.mrb[0].mxu0
          %700 = vmatprep.mubr.f32.mxu0 %v529
          %701 = vmatmul.mubr.f32.gmra.mrb[0].mxu0 %v528
          %v702 = vpop.f32.mrb[0].mxu0
          %v703 = vadd.f32 0.0, %v702
          %v704 = vpop.f32.mrb[0].mxu0
          %705 = vmatprep.mubr.f32.mxu0 %v531
          %706 = vmatmul.mubr.f32.gmra.mrb[0].mxu0 %v530
          %v707 = vpop.f32.mrb[0].mxu0
          %v708 = vadd.f32 0.0, %v707
          %v709 = vpop.f32.mrb[0].mxu0
          %710 = vmatprep.mubr.f32.mxu0 %v533
          %711 = vmatmul.mubr.f32.gmra.mrb[0].mxu0 %v532
          %v712 = vpop.f32.mrb[0].mxu0
          %v713 = vadd.f32 0.0, %v712
          %v714 = vpop.f32.mrb[0].mxu0
          %715 = vmatprep.mubr.f32.mxu0 %v535
          %716 = vmatmul.mubr.f32.gmra.mrb[0].mxu0 %v534
          %v717 = vpop.f32.mrb[0].mxu0
          %v718 = vadd.f32 0.0, %v717
          %v719 = vpop.f32.mrb[0].mxu0
          %720 = vmatprep.mubr.f32.mxu0 %v537
          %721 = vmatmul.mubr.f32.gmra.mrb[0].mxu0 %v536
          %v722 = vpop.f32.mrb[0].mxu0
          %v723 = vadd.f32 0.0, %v722
          %v724 = vpop.f32.mrb[0].mxu0
          %725 = vmatprep.mubr.f32.mxu0 %v539
          %726 = vmatmul.mubr.f32.gmra.mrb[0].mxu0 %v538
          %v727 = vpop.f32.mrb[0].mxu0
          %v728 = vadd.f32 0.0, %v727
          %v729 = vpop.f32.mrb[0].mxu0
          %730 = vmatprep.mubr.f32.mxu0 %v541
          %731 = vmatmul.mubr.f32.gmra.mrb[0].mxu0 %v540
          %v732 = vpop.f32.mrb[0].mxu0
          %v733 = vadd.f32 0.0, %v732
          %v734 = vpop.f32.mrb[0].mxu0
          %735 = vmatprep.mubr.f32.mxu0 %v543
          %736 = vmatmul.mubr.f32.gmra.mrb[0].mxu0 %v542
          %v737 = vpop.f32.mrb[0].mxu0
          %v738 = vadd.f32 0.0, %v737
          %v739 = vpop.f32.mrb[0].mxu0
          %740 = vmatprep.mubr.f32.mxu0 %v545
          %741 = vmatmul.mubr.f32.gmra.mrb[0].mxu0 %v544
          %v742 = vpop.f32.mrb[0].mxu0
          %v743 = vadd.f32 0.0, %v742
          %v744 = vpop.f32.mrb[0].mxu0
          %745 = vmatprep.mubr.f32.mxu0 %v547
          %746 = vmatmul.mubr.f32.gmra.mrb[0].mxu0 %v546
          %v747 = vpop.f32.mrb[0].mxu0
          %v748 = vadd.f32 0.0, %v747
          %v749 = vpop.f32.mrb[0].mxu0
          %750 = vmatprep.mubr.f32.mxu0 %v549
          %751 = vmatmul.mubr.f32.gmra.mrb[0].mxu0 %v548
          %v752 = vpop.f32.mrb[0].mxu0
          %v753 = vadd.f32 0.0, %v752
          %v754 = vpop.f32.mrb[0].mxu0
          %755 = vmatprep.mubr.f32.mxu0 %v551
          %756 = vmatmul.mubr.f32.gmra.mrb[0].mxu0 %v550
          %v757 = vpop.f32.mrb[0].mxu0
          %v758 = vadd.f32 0.0, %v757
          %v759 = vpop.f32.mrb[0].mxu0
          %760 = vmatprep.mubr.f32.mxu0 %v553
          %761 = vmatmul.mubr.f32.gmra.mrb[0].mxu0 %v552
          %v762 = vpop.f32.mrb[0].mxu0
          %v763 = vadd.f32 0.0, %v762
          %v764 = vpop.f32.mrb[0].mxu0
          %765 = vmatprep.mubr.f32.mxu0 %v555
          %766 = vmatmul.mubr.f32.gmra.mrb[0].mxu0 %v554
          %v767 = vpop.f32.mrb[0].mxu0
          %v768 = vadd.f32 0.0, %v767
          %v769 = vpop.f32.mrb[0].mxu0
          %770 = vmatprep.mubr.f32.mxu0 %v557
          %771 = vmatmul.mubr.f32.gmra.mrb[0].mxu0 %v556
          %v772 = vpop.f32.mrb[0].mxu0
          %v773 = vadd.f32 0.0, %v772
          %v774 = vpop.f32.mrb[0].mxu0
          %775 = vmatprep.mubr.f32.mxu0 %v559
          %776 = vmatmul.mubr.f32.gmra.mrb[0].mxu0 %v558
          %v777 = vpop.f32.mrb[0].mxu0
          %v778 = vadd.f32 0.0, %v777
          %v779 = vpop.f32.mrb[0].mxu0
          %780 = vmatprep.mubr.f32.mxu0 %v561
          %781 = vmatmul.mubr.f32.gmra.mrb[0].mxu0 %v560
          %v782 = vpop.f32.mrb[0].mxu0
          %v783 = vadd.f32 0.0, %v782
          %v784 = vpop.f32.mrb[0].mxu0
          %785 = vmatprep.mubr.f32.mxu0 %v563
          %786 = vmatmul.mubr.f32.gmra.mrb[0].mxu0 %v562
          %v787 = vpop.f32.mrb[0].mxu0
          %v788 = vadd.f32 0.0, %v787
          %v789 = vpop.f32.mrb[0].mxu0
          %790 = vmatprep.mubr.f32.mxu0 %v565
          %791 = vmatmul.mubr.f32.gmra.mrb[0].mxu0 %v564
          %v792 = vpop.f32.mrb[0].mxu0
          %v793 = vadd.f32 0.0, %v792
          %v794 = vpop.f32.mrb[0].mxu0
          %795 = vmatprep.mubr.f32.mxu0 %v567
          %796 = vmatmul.mubr.f32.gmra.mrb[0].mxu0 %v566
          %v797 = vpop.f32.mrb[0].mxu0
          %v798 = vadd.f32 0.0, %v797
          %v799 = vpop.f32.mrb[0].mxu0
          %800 = vmatprep.mubr.f32.mxu0 %v569
          %801 = vmatmul.mubr.f32.gmra.mrb[0].mxu0 %v568
          %v802 = vpop.f32.mrb[0].mxu0
          %v803 = vadd.f32 0.0, %v802
          %v804 = vpop.f32.mrb[0].mxu0
          %805 = vmatprep.mubr.f32.mxu0 %v571
          %806 = vmatmul.mubr.f32.gmra.mrb[0].mxu0 %v570
          %v807 = vpop.f32.mrb[0].mxu0
          %v808 = vadd.f32 0.0, %v807
          %v809 = vpop.f32.mrb[0].mxu0
          %810 = vmatprep.mubr.f32.mxu0 %v573
          %811 = vmatmul.mubr.f32.gmra.mrb[0].mxu0 %v572
          %v812 = vpop.f32.mrb[0].mxu0
          %v813 = vadd.f32 0.0, %v812
          %v814 = vpop.f32.mrb[0].mxu0
          %815 = vmatprep.mubr.f32.mxu0 %v575
          %816 = vmatmul.mubr.f32.gmra.mrb[0].mxu0 %v574
          %v817 = vpop.f32.mrb[0].mxu0
          %v818 = vadd.f32 0.0, %v817
          %v819 = vpop.f32.mrb[0].mxu0
          %820 = vmatprep.mubr.f32.mxu0 %v577
          %821 = vmatmul.mubr.f32.gmra.mrb[0].mxu0 %v576
          %v822 = vpop.f32.mrb[0].mxu0
          %v823 = vadd.f32 0.0, %v822
          %v824 = vpop.f32.mrb[0].mxu0
          %825 = vmatprep.mubr.f32.mxu0 %v579
          %826 = vmatmul.mubr.f32.gmra.mrb[0].mxu0 %v578
          %v827 = vpop.f32.mrb[0].mxu0
          %v828 = vadd.f32 0.0, %v827
          %v829 = vpop.f32.mrb[0].mxu0
          %830 = vmatprep.mubr.f32.mxu0 %v581
          %831 = vmatmul.mubr.f32.gmra.mrb[0].mxu0 %v580
          %v832 = vpop.f32.mrb[0].mxu0
          %v833 = vadd.f32 0.0, %v832
          %v834 = vpop.f32.mrb[0].mxu0
          %835 = vmatprep.mubr.f32.mxu0 %v583
          %836 = vmatmul.mubr.f32.gmra.mrb[0].mxu0 %v582
          %v837 = vpop.f32.mrb[0].mxu0
          %v838 = vadd.f32 0.0, %v837
          %v839 = vpop.f32.mrb[0].mxu0
          %840 = vdwg.mxu0
          %vm841 = vcmask 80896
          %v843 = vsel %vm841, %v683, 0
          %v846 = vsel %vm841, %v688, 0
          %v849 = vsel %vm841, %v693, 0
          %v852 = vsel %vm841, %v698, 0
          %v855 = vsel %vm841, %v703, 0
          %v858 = vsel %vm841, %v708, 0
          %v861 = vsel %vm841, %v713, 0
          %v864 = vsel %vm841, %v718, 0
          %v867 = vsel %vm841, %v723, 0
          %v870 = vsel %vm841, %v728, 0
          %v873 = vsel %vm841, %v733, 0
          %v876 = vsel %vm841, %v738, 0
          %v879 = vsel %vm841, %v743, 0
          %v882 = vsel %vm841, %v748, 0
          %v885 = vsel %vm841, %v753, 0
          %v888 = vsel %vm841, %v758, 0
          %v891 = vsel %vm841, %v763, 0
          %v894 = vsel %vm841, %v768, 0
          %v897 = vsel %vm841, %v773, 0
          %v900 = vsel %vm841, %v778, 0
          %v903 = vsel %vm841, %v783, 0
          %v906 = vsel %vm841, %v788, 0
          %v909 = vsel %vm841, %v793, 0
          %v912 = vsel %vm841, %v798, 0
          %v915 = vsel %vm841, %v803, 0
          %v918 = vsel %vm841, %v808, 0
          %v921 = vsel %vm841, %v813, 0
          %v924 = vsel %vm841, %v818, 0
          %v927 = vsel %vm841, %v823, 0
          %v930 = vsel %vm841, %v828, 0
          %v933 = vsel %vm841, %v833, 0
          %v936 = vsel %vm841, %v838, 0
          %vm938 = vcmask 1041408
          %v940 = vsel %vm938, %v495, 0
          %942 = vmatprep.subr.mxu0 0.0
          %943 = vmatpush1.msra.mxu0 %v494
          %944 = vmatprep.subr.mxu0 0.0
          %945 = vmatpush1.msra.mxu0 %v940
          %946 = vmatprep.subr.mxu0 0.0
          %947 = vmatpush1.msra.mxu0 0.0
          %948 = vmatprep.subr.mxu0 0.0
          %949 = vmatpush1.msra.mxu0 0.0
          %950 = vmatprep.subr.mxu0 0.0
          %951 = vmatpush1.msra.mxu0 0.0
          %952 = vmatprep.subr.mxu0 0.0
          %953 = vmatpush1.msra.mxu0 0.0
          %954 = vmatprep.subr.mxu0 0.0
          %955 = vmatpush1.msra.mxu0 0.0
          %956 = vmatprep.subr.mxu0 0.0
          %957 = vmatpush1.msra.mxu0 0.0
          %958 = vmatprep.subr.mxu0 0.0
          %959 = vmatpush1.msra.mxu0 0.0
          %960 = vmatprep.subr.mxu0 0.0
          %961 = vmatpush1.msra.mxu0 0.0
          %962 = vmatprep.subr.mxu0 0.0
          %963 = vmatpush1.msra.mxu0 0.0
          %964 = vmatprep.subr.mxu0 0.0
          %965 = vmatpush1.msra.mxu0 0.0
          %966 = vmatprep.subr.mxu0 0.0
          %967 = vmatpush1.msra.mxu0 0.0
          %968 = vmatprep.subr.mxu0 0.0
          %969 = vmatpush1.msra.mxu0 0.0
          %970 = vmatprep.subr.mxu0 0.0
          %971 = vmatpush1.msra.mxu0 0.0
          %972 = vmatprep.subr.mxu0 0.0
          %973 = vmatpush1.msra.mxu0 0.0
          %974 = vmatprep.subr.mxu0 0.0
          %975 = vmatpush1.msra.mxu0 0.0
          %976 = vmatprep.subr.mxu0 0.0
          %977 = vmatpush1.msra.mxu0 0.0
          %978 = vmatprep.subr.mxu0 0.0
          %979 = vmatpush1.msra.mxu0 0.0
          %980 = vmatprep.subr.mxu0 0.0
          %981 = vmatpush1.msra.mxu0 0.0
          %982 = vmatprep.subr.mxu0 0.0
          %983 = vmatpush1.msra.mxu0 0.0
          %984 = vmatprep.subr.mxu0 0.0
          %985 = vmatpush1.msra.mxu0 0.0
          %986 = vmatprep.subr.mxu0 0.0
          %987 = vmatpush1.msra.mxu0 0.0
          %988 = vmatprep.subr.mxu0 0.0
          %989 = vmatpush1.msra.mxu0 0.0
          %990 = vmatprep.subr.mxu0 0.0
          %991 = vmatpush1.msra.mxu0 0.0
          %992 = vmatprep.subr.mxu0 0.0
          %993 = vmatpush1.msra.mxu0 0.0
          %994 = vmatprep.subr.mxu0 0.0
          %995 = vmatpush1.msra.mxu0 0.0
          %996 = vmatprep.subr.mxu0 0.0
          %997 = vmatpush1.msra.mxu0 0.0
          %998 = vmatprep.subr.mxu0 0.0
          %999 = vmatpush1.msra.mxu0 0.0
          %1000 = vmatprep.subr.mxu0 0.0
          %1001 = vmatpush1.msra.mxu0 0.0
          %1002 = vmatprep.subr.mxu0 0.0
          %1003 = vmatpush1.msra.mxu0 0.0
          %1004 = vmatprep.subr.mxu0 0.0
          %1005 = vmatpush1.msra.mxu0 0.0
          %1006 = vmatprep.mubr.f32.mxu0 0.0
          %1007 = vmatmul.mubr.f32.gmra.mrb[0].mxu0 %v843
          %v1008 = vpop.f32.mrb[0].mxu0
          %v1009 = vadd.f32 %v496, %v1008
          %v1010 = vpop.f32.mrb[0].mxu0
          %1011 = vmatprep.mubr.f32.mxu0 0.0
          %1012 = vmatmul.mubr.f32.gmra.mrb[0].mxu0 %v846
          %v1013 = vpop.f32.mrb[0].mxu0
          %v1014 = vadd.f32 %v496, %v1013
          %v1015 = vpop.f32.mrb[0].mxu0
          %1016 = vmatprep.mubr.f32.mxu0 0.0
          %1017 = vmatmul.mubr.f32.gmra.mrb[0].mxu0 %v849
          %v1018 = vpop.f32.mrb[0].mxu0
          %v1019 = vadd.f32 %v496, %v1018
          %v1020 = vpop.f32.mrb[0].mxu0
          %1021 = vmatprep.mubr.f32.mxu0 0.0
          %1022 = vmatmul.mubr.f32.gmra.mrb[0].mxu0 %v852
          %v1023 = vpop.f32.mrb[0].mxu0
          %v1024 = vadd.f32 %v496, %v1023
          %v1025 = vpop.f32.mrb[0].mxu0
          %1026 = vmatprep.mubr.f32.mxu0 0.0
          %1027 = vmatmul.mubr.f32.gmra.mrb[0].mxu0 %v855
          %v1028 = vpop.f32.mrb[0].mxu0
          %v1029 = vadd.f32 %v496, %v1028
          %v1030 = vpop.f32.mrb[0].mxu0
          %1031 = vmatprep.mubr.f32.mxu0 0.0
          %1032 = vmatmul.mubr.f32.gmra.mrb[0].mxu0 %v858
          %v1033 = vpop.f32.mrb[0].mxu0
          %v1034 = vadd.f32 %v496, %v1033
          %v1035 = vpop.f32.mrb[0].mxu0
          %1036 = vmatprep.mubr.f32.mxu0 0.0
          %1037 = vmatmul.mubr.f32.gmra.mrb[0].mxu0 %v861
          %v1038 = vpop.f32.mrb[0].mxu0
          %v1039 = vadd.f32 %v496, %v1038
          %v1040 = vpop.f32.mrb[0].mxu0
          %1041 = vmatprep.mubr.f32.mxu0 0.0
          %1042 = vmatmul.mubr.f32.gmra.mrb[0].mxu0 %v864
          %v1043 = vpop.f32.mrb[0].mxu0
          %v1044 = vadd.f32 %v496, %v1043
          %v1045 = vpop.f32.mrb[0].mxu0
          %1046 = vmatprep.mubr.f32.mxu0 0.0
          %1047 = vmatmul.mubr.f32.gmra.mrb[0].mxu0 %v867
          %v1048 = vpop.f32.mrb[0].mxu0
          %v1049 = vadd.f32 %v496, %v1048
          %v1050 = vpop.f32.mrb[0].mxu0
          %1051 = vmatprep.mubr.f32.mxu0 0.0
          %1052 = vmatmul.mubr.f32.gmra.mrb[0].mxu0 %v870
          %v1053 = vpop.f32.mrb[0].mxu0
          %v1054 = vadd.f32 %v496, %v1053
          %v1055 = vpop.f32.mrb[0].mxu0
          %1056 = vmatprep.mubr.f32.mxu0 0.0
          %1057 = vmatmul.mubr.f32.gmra.mrb[0].mxu0 %v873
          %v1058 = vpop.f32.mrb[0].mxu0
          %v1059 = vadd.f32 %v496, %v1058
          %v1060 = vpop.f32.mrb[0].mxu0
          %1061 = vmatprep.mubr.f32.mxu0 0.0
          %1062 = vmatmul.mubr.f32.gmra.mrb[0].mxu0 %v876
          %v1063 = vpop.f32.mrb[0].mxu0
          %v1064 = vadd.f32 %v496, %v1063
          %v1065 = vpop.f32.mrb[0].mxu0
          %1066 = vmatprep.mubr.f32.mxu0 0.0
          %1067 = vmatmul.mubr.f32.gmra.mrb[0].mxu0 %v879
          %v1068 = vpop.f32.mrb[0].mxu0
          %v1069 = vadd.f32 %v496, %v1068
          %v1070 = vpop.f32.mrb[0].mxu0
          %1071 = vmatprep.mubr.f32.mxu0 0.0
          %1072 = vmatmul.mubr.f32.gmra.mrb[0].mxu0 %v882
          %v1073 = vpop.f32.mrb[0].mxu0
          %v1074 = vadd.f32 %v496, %v1073
          %v1075 = vpop.f32.mrb[0].mxu0
          %1076 = vmatprep.mubr.f32.mxu0 0.0
          %1077 = vmatmul.mubr.f32.gmra.mrb[0].mxu0 %v885
          %v1078 = vpop.f32.mrb[0].mxu0
          %v1079 = vadd.f32 %v496, %v1078
          %v1080 = vpop.f32.mrb[0].mxu0
          %1081 = vmatprep.mubr.f32.mxu0 0.0
          %1082 = vmatmul.mubr.f32.gmra.mrb[0].mxu0 %v888
          %v1083 = vpop.f32.mrb[0].mxu0
          %v1084 = vadd.f32 %v496, %v1083
          %v1085 = vpop.f32.mrb[0].mxu0
          %1086 = vmatprep.mubr.f32.mxu0 0.0
          %1087 = vmatmul.mubr.f32.gmra.mrb[0].mxu0 %v891
          %v1088 = vpop.f32.mrb[0].mxu0
          %v1089 = vadd.f32 %v496, %v1088
          %v1090 = vpop.f32.mrb[0].mxu0
          %1091 = vmatprep.mubr.f32.mxu0 0.0
          %1092 = vmatmul.mubr.f32.gmra.mrb[0].mxu0 %v894
          %v1093 = vpop.f32.mrb[0].mxu0
          %v1094 = vadd.f32 %v496, %v1093
          %v1095 = vpop.f32.mrb[0].mxu0
          %1096 = vmatprep.mubr.f32.mxu0 0.0
          %1097 = vmatmul.mubr.f32.gmra.mrb[0].mxu0 %v897
          %v1098 = vpop.f32.mrb[0].mxu0
          %v1099 = vadd.f32 %v496, %v1098
          %v1100 = vpop.f32.mrb[0].mxu0
          %1101 = vmatprep.mubr.f32.mxu0 0.0
          %1102 = vmatmul.mubr.f32.gmra.mrb[0].mxu0 %v900
          %v1103 = vpop.f32.mrb[0].mxu0
          %v1104 = vadd.f32 %v496, %v1103
          %v1105 = vpop.f32.mrb[0].mxu0
          %1106 = vmatprep.mubr.f32.mxu0 0.0
          %1107 = vmatmul.mubr.f32.gmra.mrb[0].mxu0 %v903
          %v1108 = vpop.f32.mrb[0].mxu0
          %v1109 = vadd.f32 %v496, %v1108
          %v1110 = vpop.f32.mrb[0].mxu0
          %1111 = vmatprep.mubr.f32.mxu0 0.0
          %1112 = vmatmul.mubr.f32.gmra.mrb[0].mxu0 %v906
          %v1113 = vpop.f32.mrb[0].mxu0
          %v1114 = vadd.f32 %v496, %v1113
          %v1115 = vpop.f32.mrb[0].mxu0
          %1116 = vmatprep.mubr.f32.mxu0 0.0
          %1117 = vmatmul.mubr.f32.gmra.mrb[0].mxu0 %v909
          %v1118 = vpop.f32.mrb[0].mxu0
          %v1119 = vadd.f32 %v496, %v1118
          %v1120 = vpop.f32.mrb[0].mxu0
          %1121 = vmatprep.mubr.f32.mxu0 0.0
          %1122 = vmatmul.mubr.f32.gmra.mrb[0].mxu0 %v912
          %v1123 = vpop.f32.mrb[0].mxu0
          %v1124 = vadd.f32 %v496, %v1123
          %v1125 = vpop.f32.mrb[0].mxu0
          %1126 = vmatprep.mubr.f32.mxu0 0.0
          %1127 = vmatmul.mubr.f32.gmra.mrb[0].mxu0 %v915
          %v1128 = vpop.f32.mrb[0].mxu0
          %v1129 = vadd.f32 %v496, %v1128
          %v1130 = vpop.f32.mrb[0].mxu0
          %1131 = vmatprep.mubr.f32.mxu0 0.0
          %1132 = vmatmul.mubr.f32.gmra.mrb[0].mxu0 %v918
          %v1133 = vpop.f32.mrb[0].mxu0
          %v1134 = vadd.f32 %v496, %v1133
          %v1135 = vpop.f32.mrb[0].mxu0
          %1136 = vmatprep.mubr.f32.mxu0 0.0
          %1137 = vmatmul.mubr.f32.gmra.mrb[0].mxu0 %v921
          %v1138 = vpop.f32.mrb[0].mxu0
          %v1139 = vadd.f32 %v496, %v1138
          %v1140 = vpop.f32.mrb[0].mxu0
          %1141 = vmatprep.mubr.f32.mxu0 0.0
          %1142 = vmatmul.mubr.f32.gmra.mrb[0].mxu0 %v924
          %v1143 = vpop.f32.mrb[0].mxu0
          %v1144 = vadd.f32 %v496, %v1143
          %v1145 = vpop.f32.mrb[0].mxu0
          %1146 = vmatprep.mubr.f32.mxu0 0.0
          %1147 = vmatmul.mubr.f32.gmra.mrb[0].mxu0 %v927
          %v1148 = vpop.f32.mrb[0].mxu0
          %v1149 = vadd.f32 %v496, %v1148
          %v1150 = vpop.f32.mrb[0].mxu0
          %1151 = vmatprep.mubr.f32.mxu0 0.0
          %1152 = vmatmul.mubr.f32.gmra.mrb[0].mxu0 %v930
          %v1153 = vpop.f32.mrb[0].mxu0
          %v1154 = vadd.f32 %v496, %v1153
          %v1155 = vpop.f32.mrb[0].mxu0
          %1156 = vmatprep.mubr.f32.mxu0 0.0
          %1157 = vmatmul.mubr.f32.gmra.mrb[0].mxu0 %v933
          %v1158 = vpop.f32.mrb[0].mxu0
          %v1159 = vadd.f32 %v496, %v1158
          %v1160 = vpop.f32.mrb[0].mxu0
          %1161 = vmatprep.mubr.f32.mxu0 0.0
          %1162 = vmatmul.mubr.f32.gmra.mrb[0].mxu0 %v936
          %v1163 = vpop.f32.mrb[0].mxu0
          %v1164 = vadd.f32 %v496, %v1163
          %v1165 = vpop.f32.mrb[0].mxu0
          %1166 = vdwg.mxu0
          %v1167 = vmax.f32 %v1009, 0.0
          %v1168 = vmax.f32 %v1014, 0.0
          %v1169 = vmax.f32 %v1019, 0.0
          %v1170 = vmax.f32 %v1024, 0.0
          %v1171 = vmax.f32 %v1029, 0.0
          %v1172 = vmax.f32 %v1034, 0.0
          %v1173 = vmax.f32 %v1039, 0.0
          %v1174 = vmax.f32 %v1044, 0.0
          %v1175 = vmax.f32 %v1049, 0.0
          %v1176 = vmax.f32 %v1054, 0.0
          %v1177 = vmax.f32 %v1059, 0.0
          %v1178 = vmax.f32 %v1064, 0.0
          %v1179 = vmax.f32 %v1069, 0.0
          %v1180 = vmax.f32 %v1074, 0.0
          %v1181 = vmax.f32 %v1079, 0.0
          %v1182 = vmax.f32 %v1084, 0.0
          %v1183 = vmax.f32 %v1089, 0.0
          %v1184 = vmax.f32 %v1094, 0.0
          %v1185 = vmax.f32 %v1099, 0.0
          %v1186 = vmax.f32 %v1104, 0.0
          %v1187 = vmax.f32 %v1109, 0.0
          %v1188 = vmax.f32 %v1114, 0.0
          %v1189 = vmax.f32 %v1119, 0.0
          %v1190 = vmax.f32 %v1124, 0.0
          %v1191 = vmax.f32 %v1129, 0.0
          %v1192 = vmax.f32 %v1134, 0.0
          %v1193 = vmax.f32 %v1139, 0.0
          %v1194 = vmax.f32 %v1144, 0.0
          %v1195 = vmax.f32 %v1149, 0.0
          %v1196 = vmax.f32 %v1154, 0.0
          %v1197 = vmax.f32 %v1159, 0.0
          %v1198 = vmax.f32 %v1164, 0.0
          %1199 = vmatprep.subr.mxu0 0.0
          %1200 = vmatpush1.msra.mxu0 %v1167
          %1201 = vmatprep.subr.mxu0 0.0
          %1202 = vmatpush1.msra.mxu0 %v1168
          %1203 = vmatprep.subr.mxu0 0.0
          %1204 = vmatpush1.msra.mxu0 %v1169
          %1205 = vmatprep.subr.mxu0 0.0
          %1206 = vmatpush1.msra.mxu0 %v1170
          %1207 = vmatprep.subr.mxu0 0.0
          %1208 = vmatpush1.msra.mxu0 %v1171
          %1209 = vmatprep.subr.mxu0 0.0
          %1210 = vmatpush1.msra.mxu0 %v1172
          %1211 = vmatprep.subr.mxu0 0.0
          %1212 = vmatpush1.msra.mxu0 %v1173
          %1213 = vmatprep.subr.mxu0 0.0
          %1214 = vmatpush1.msra.mxu0 %v1174
          %1215 = vmatprep.subr.mxu0 0.0
          %1216 = vmatpush1.msra.mxu0 %v1175
          %1217 = vmatprep.subr.mxu0 0.0
          %1218 = vmatpush1.msra.mxu0 %v1176
          %1219 = vmatprep.subr.mxu0 0.0
          %1220 = vmatpush1.msra.mxu0 %v1177
          %1221 = vmatprep.subr.mxu0 0.0
          %1222 = vmatpush1.msra.mxu0 %v1178
          %1223 = vmatprep.subr.mxu0 0.0
          %1224 = vmatpush1.msra.mxu0 %v1179
          %1225 = vmatprep.subr.mxu0 0.0
          %1226 = vmatpush1.msra.mxu0 %v1180
          %1227 = vmatprep.subr.mxu0 0.0
          %1228 = vmatpush1.msra.mxu0 %v1181
          %1229 = vmatprep.subr.mxu0 0.0
          %1230 = vmatpush1.msra.mxu0 %v1182
          %1231 = vmatprep.subr.mxu0 0.0
          %1232 = vmatpush1.msra.mxu0 %v1183
          %1233 = vmatprep.subr.mxu0 0.0
          %1234 = vmatpush1.msra.mxu0 %v1184
          %1235 = vmatprep.subr.mxu0 0.0
          %1236 = vmatpush1.msra.mxu0 %v1185
          %1237 = vmatprep.subr.mxu0 0.0
          %1238 = vmatpush1.msra.mxu0 %v1186
          %1239 = vmatprep.subr.mxu0 0.0
          %1240 = vmatpush1.msra.mxu0 %v1187
          %1241 = vmatprep.subr.mxu0 0.0
          %1242 = vmatpush1.msra.mxu0 %v1188
          %1243 = vmatprep.subr.mxu0 0.0
          %1244 = vmatpush1.msra.mxu0 %v1189
          %1245 = vmatprep.subr.mxu0 0.0
          %1246 = vmatpush1.msra.mxu0 %v1190
          %1247 = vmatprep.subr.mxu0 0.0
          %1248 = vmatpush1.msra.mxu0 %v1191
          %1249 = vmatprep.subr.mxu0 0.0
          %1250 = vmatpush1.msra.mxu0 %v1192
          %1251 = vmatprep.subr.mxu0 0.0
          %1252 = vmatpush1.msra.mxu0 %v1193
          %1253 = vmatprep.subr.mxu0 0.0
          %1254 = vmatpush1.msra.mxu0 %v1194
          %1255 = vmatprep.subr.mxu0 0.0
          %1256 = vmatpush1.msra.mxu0 %v1195
          %1257 = vmatprep.subr.mxu0 0.0
          %1258 = vmatpush1.msra.mxu0 %v1196
          %1259 = vmatprep.subr.mxu0 0.0
          %1260 = vmatpush1.msra.mxu0 %v1197
          %1261 = vmatprep.subr.mxu0 0.0
          %1262 = vmatpush1.msra.mxu0 %v1198
          %1263 = vmatprep.mubr.f32.mxu0 %v521
          %1264 = vmatmul.mubr.f32.gmra.mrb[0].mxu0 %v520
          %v1265 = vpop.f32.mrb[0].mxu0
          %v1266 = vadd.f32 0.0, %v1265
          %v1267 = vpop.f32.mrb[0].mxu0
          %1268 = vmatprep.mubr.f32.mxu0 %v523
          %1269 = vmatmul.mubr.f32.gmra.mrb[0].mxu0 %v522
          %v1270 = vpop.f32.mrb[0].mxu0
          %v1271 = vadd.f32 0.0, %v1270
          %v1272 = vpop.f32.mrb[0].mxu0
          %1273 = vmatprep.mubr.f32.mxu0 %v525
          %1274 = vmatmul.mubr.f32.gmra.mrb[0].mxu0 %v524
          %v1275 = vpop.f32.mrb[0].mxu0
          %v1276 = vadd.f32 0.0, %v1275
          %v1277 = vpop.f32.mrb[0].mxu0
          %1278 = vmatprep.mubr.f32.mxu0 %v527
          %1279 = vmatmul.mubr.f32.gmra.mrb[0].mxu0 %v526
          %v1280 = vpop.f32.mrb[0].mxu0
          %v1281 = vadd.f32 0.0, %v1280
          %v1282 = vpop.f32.mrb[0].mxu0
          %1283 = vmatprep.mubr.f32.mxu0 %v529
          %1284 = vmatmul.mubr.f32.gmra.mrb[0].mxu0 %v528
          %v1285 = vpop.f32.mrb[0].mxu0
          %v1286 = vadd.f32 0.0, %v1285
          %v1287 = vpop.f32.mrb[0].mxu0
          %1288 = vmatprep.mubr.f32.mxu0 %v531
          %1289 = vmatmul.mubr.f32.gmra.mrb[0].mxu0 %v530
          %v1290 = vpop.f32.mrb[0].mxu0
          %v1291 = vadd.f32 0.0, %v1290
          %v1292 = vpop.f32.mrb[0].mxu0
          %1293 = vmatprep.mubr.f32.mxu0 %v533
          %1294 = vmatmul.mubr.f32.gmra.mrb[0].mxu0 %v532
          %v1295 = vpop.f32.mrb[0].mxu0
          %v1296 = vadd.f32 0.0, %v1295
          %v1297 = vpop.f32.mrb[0].mxu0
          %1298 = vmatprep.mubr.f32.mxu0 %v535
          %1299 = vmatmul.mubr.f32.gmra.mrb[0].mxu0 %v534
          %v1300 = vpop.f32.mrb[0].mxu0
          %v1301 = vadd.f32 0.0, %v1300
          %v1302 = vpop.f32.mrb[0].mxu0
          %1303 = vmatprep.mubr.f32.mxu0 %v537
          %1304 = vmatmul.mubr.f32.gmra.mrb[0].mxu0 %v536
          %v1305 = vpop.f32.mrb[0].mxu0
          %v1306 = vadd.f32 0.0, %v1305
          %v1307 = vpop.f32.mrb[0].mxu0
          %1308 = vmatprep.mubr.f32.mxu0 %v539
          %1309 = vmatmul.mubr.f32.gmra.mrb[0].mxu0 %v538
          %v1310 = vpop.f32.mrb[0].mxu0
          %v1311 = vadd.f32 0.0, %v1310
          %v1312 = vpop.f32.mrb[0].mxu0
          %1313 = vmatprep.mubr.f32.mxu0 %v541
          %1314 = vmatmul.mubr.f32.gmra.mrb[0].mxu0 %v540
          %v1315 = vpop.f32.mrb[0].mxu0
          %v1316 = vadd.f32 0.0, %v1315
          %v1317 = vpop.f32.mrb[0].mxu0
          %1318 = vmatprep.mubr.f32.mxu0 %v543
          %1319 = vmatmul.mubr.f32.gmra.mrb[0].mxu0 %v542
          %v1320 = vpop.f32.mrb[0].mxu0
          %v1321 = vadd.f32 0.0, %v1320
          %v1322 = vpop.f32.mrb[0].mxu0
          %1323 = vmatprep.mubr.f32.mxu0 %v545
          %1324 = vmatmul.mubr.f32.gmra.mrb[0].mxu0 %v544
          %v1325 = vpop.f32.mrb[0].mxu0
          %v1326 = vadd.f32 0.0, %v1325
          %v1327 = vpop.f32.mrb[0].mxu0
          %1328 = vmatprep.mubr.f32.mxu0 %v547
          %1329 = vmatmul.mubr.f32.gmra.mrb[0].mxu0 %v546
          %v1330 = vpop.f32.mrb[0].mxu0
          %v1331 = vadd.f32 0.0, %v1330
          %v1332 = vpop.f32.mrb[0].mxu0
          %1333 = vmatprep.mubr.f32.mxu0 %v549
          %1334 = vmatmul.mubr.f32.gmra.mrb[0].mxu0 %v548
          %v1335 = vpop.f32.mrb[0].mxu0
          %v1336 = vadd.f32 0.0, %v1335
          %v1337 = vpop.f32.mrb[0].mxu0
          %1338 = vmatprep.mubr.f32.mxu0 %v551
          %1339 = vmatmul.mubr.f32.gmra.mrb[0].mxu0 %v550
          %v1340 = vpop.f32.mrb[0].mxu0
          %v1341 = vadd.f32 0.0, %v1340
          %v1342 = vpop.f32.mrb[0].mxu0
          %1343 = vmatprep.mubr.f32.mxu0 %v553
          %1344 = vmatmul.mubr.f32.gmra.mrb[0].mxu0 %v552
          %v1345 = vpop.f32.mrb[0].mxu0
          %v1346 = vadd.f32 0.0, %v1345
          %v1347 = vpop.f32.mrb[0].mxu0
          %1348 = vmatprep.mubr.f32.mxu0 %v555
          %1349 = vmatmul.mubr.f32.gmra.mrb[0].mxu0 %v554
          %v1350 = vpop.f32.mrb[0].mxu0
          %v1351 = vadd.f32 0.0, %v1350
          %v1352 = vpop.f32.mrb[0].mxu0
          %1353 = vmatprep.mubr.f32.mxu0 %v557
          %1354 = vmatmul.mubr.f32.gmra.mrb[0].mxu0 %v556
          %v1355 = vpop.f32.mrb[0].mxu0
          %v1356 = vadd.f32 0.0, %v1355
          %v1357 = vpop.f32.mrb[0].mxu0
          %1358 = vmatprep.mubr.f32.mxu0 %v559
          %1359 = vmatmul.mubr.f32.gmra.mrb[0].mxu0 %v558
          %v1360 = vpop.f32.mrb[0].mxu0
          %v1361 = vadd.f32 0.0, %v1360
          %v1362 = vpop.f32.mrb[0].mxu0
          %1363 = vmatprep.mubr.f32.mxu0 %v561
          %1364 = vmatmul.mubr.f32.gmra.mrb[0].mxu0 %v560
          %v1365 = vpop.f32.mrb[0].mxu0
          %v1366 = vadd.f32 0.0, %v1365
          %v1367 = vpop.f32.mrb[0].mxu0
          %1368 = vmatprep.mubr.f32.mxu0 %v563
          %1369 = vmatmul.mubr.f32.gmra.mrb[0].mxu0 %v562
          %v1370 = vpop.f32.mrb[0].mxu0
          %v1371 = vadd.f32 0.0, %v1370
          %v1372 = vpop.f32.mrb[0].mxu0
          %1373 = vmatprep.mubr.f32.mxu0 %v565
          %1374 = vmatmul.mubr.f32.gmra.mrb[0].mxu0 %v564
          %v1375 = vpop.f32.mrb[0].mxu0
          %v1376 = vadd.f32 0.0, %v1375
          %v1377 = vpop.f32.mrb[0].mxu0
          %1378 = vmatprep.mubr.f32.mxu0 %v567
          %1379 = vmatmul.mubr.f32.gmra.mrb[0].mxu0 %v566
          %v1380 = vpop.f32.mrb[0].mxu0
          %v1381 = vadd.f32 0.0, %v1380
          %v1382 = vpop.f32.mrb[0].mxu0
          %1383 = vmatprep.mubr.f32.mxu0 %v569
          %1384 = vmatmul.mubr.f32.gmra.mrb[0].mxu0 %v568
          %v1385 = vpop.f32.mrb[0].mxu0
          %v1386 = vadd.f32 0.0, %v1385
          %v1387 = vpop.f32.mrb[0].mxu0
          %1388 = vmatprep.mubr.f32.mxu0 %v571
          %1389 = vmatmul.mubr.f32.gmra.mrb[0].mxu0 %v570
          %v1390 = vpop.f32.mrb[0].mxu0
          %v1391 = vadd.f32 0.0, %v1390
          %v1392 = vpop.f32.mrb[0].mxu0
          %1393 = vmatprep.mubr.f32.mxu0 %v573
          %1394 = vmatmul.mubr.f32.gmra.mrb[0].mxu0 %v572
          %v1395 = vpop.f32.mrb[0].mxu0
          %v1396 = vadd.f32 0.0, %v1395
          %v1397 = vpop.f32.mrb[0].mxu0
          %1398 = vmatprep.mubr.f32.mxu0 %v575
          %1399 = vmatmul.mubr.f32.gmra.mrb[0].mxu0 %v574
          %v1400 = vpop.f32.mrb[0].mxu0
          %v1401 = vadd.f32 0.0, %v1400
          %v1402 = vpop.f32.mrb[0].mxu0
          %1403 = vmatprep.mubr.f32.mxu0 %v577
          %1404 = vmatmul.mubr.f32.gmra.mrb[0].mxu0 %v576
          %v1405 = vpop.f32.mrb[0].mxu0
          %v1406 = vadd.f32 0.0, %v1405
          %v1407 = vpop.f32.mrb[0].mxu0
          %1408 = vmatprep.mubr.f32.mxu0 %v579
          %1409 = vmatmul.mubr.f32.gmra.mrb[0].mxu0 %v578
          %v1410 = vpop.f32.mrb[0].mxu0
          %v1411 = vadd.f32 0.0, %v1410
          %v1412 = vpop.f32.mrb[0].mxu0
          %1413 = vmatprep.mubr.f32.mxu0 %v581
          %1414 = vmatmul.mubr.f32.gmra.mrb[0].mxu0 %v580
          %v1415 = vpop.f32.mrb[0].mxu0
          %v1416 = vadd.f32 0.0, %v1415
          %v1417 = vpop.f32.mrb[0].mxu0
          %1418 = vmatprep.mubr.f32.mxu0 %v583
          %1419 = vmatmul.mubr.f32.gmra.mrb[0].mxu0 %v582
          %v1420 = vpop.f32.mrb[0].mxu0
          %v1421 = vadd.f32 0.0, %v1420
          %v1422 = vpop.f32.mrb[0].mxu0
          %1423 = vdwg.mxu0
          %vm1424 = vcmask 261120
          %v1426 = vsel %vm1424, %v1266, 0
          %v1429 = vsel %vm1424, %v1271, 0
          %v1432 = vsel %vm1424, %v1276, 0
          %v1435 = vsel %vm1424, %v1281, 0
          %v1438 = vsel %vm1424, %v1286, 0
          %v1441 = vsel %vm1424, %v1291, 0
          %v1444 = vsel %vm1424, %v1296, 0
          %v1447 = vsel %vm1424, %v1301, 0
          %v1450 = vsel %vm1424, %v1306, 0
          %v1453 = vsel %vm1424, %v1311, 0
          %v1456 = vsel %vm1424, %v1316, 0
          %v1459 = vsel %vm1424, %v1321, 0
          %v1462 = vsel %vm1424, %v1326, 0
          %v1465 = vsel %vm1424, %v1331, 0
          %v1468 = vsel %vm1424, %v1336, 0
          %v1471 = vsel %vm1424, %v1341, 0
          %v1474 = vsel %vm1424, %v1346, 0
          %v1477 = vsel %vm1424, %v1351, 0
          %v1480 = vsel %vm1424, %v1356, 0
          %v1483 = vsel %vm1424, %v1361, 0
          %v1486 = vsel %vm1424, %v1366, 0
          %v1489 = vsel %vm1424, %v1371, 0
          %v1492 = vsel %vm1424, %v1376, 0
          %v1495 = vsel %vm1424, %v1381, 0
          %v1498 = vsel %vm1424, %v1386, 0
          %v1501 = vsel %vm1424, %v1391, 0
          %v1504 = vsel %vm1424, %v1396, 0
          %v1507 = vsel %vm1424, %v1401, 0
          %v1510 = vsel %vm1424, %v1406, 0
          %v1513 = vsel %vm1424, %v1411, 0
          %v1516 = vsel %vm1424, %v1416, 0
          %v1519 = vsel %vm1424, %v1421, 0
          %1521 = vmatprep.subr.mxu0 0.0
          %1522 = vmatpush1.msra.mxu0 %v497
          %1523 = vmatprep.subr.mxu0 0.0
          %1524 = vmatpush1.msra.mxu0 %v498
          %1525 = vmatprep.subr.mxu0 0.0
          %1526 = vmatpush1.msra.mxu0 %v499
          %1527 = vmatprep.subr.mxu0 0.0
          %1528 = vmatpush1.msra.mxu0 %v500
          %1529 = vmatprep.subr.mxu0 0.0
          %1530 = vmatpush1.msra.mxu0 0.0
          %1531 = vmatprep.subr.mxu0 0.0
          %1532 = vmatpush1.msra.mxu0 0.0
          %1533 = vmatprep.subr.mxu0 0.0
          %1534 = vmatpush1.msra.mxu0 0.0
          %1535 = vmatprep.subr.mxu0 0.0
          %1536 = vmatpush1.msra.mxu0 0.0
          %1537 = vmatprep.subr.mxu0 0.0
          %1538 = vmatpush1.msra.mxu0 0.0
          %1539 = vmatprep.subr.mxu0 0.0
          %1540 = vmatpush1.msra.mxu0 0.0
          %1541 = vmatprep.subr.mxu0 0.0
          %1542 = vmatpush1.msra.mxu0 0.0
          %1543 = vmatprep.subr.mxu0 0.0
          %1544 = vmatpush1.msra.mxu0 0.0
          %1545 = vmatprep.subr.mxu0 0.0
          %1546 = vmatpush1.msra.mxu0 0.0
          %1547 = vmatprep.subr.mxu0 0.0
          %1548 = vmatpush1.msra.mxu0 0.0
          %1549 = vmatprep.subr.mxu0 0.0
          %1550 = vmatpush1.msra.mxu0 0.0
          %1551 = vmatprep.subr.mxu0 0.0
          %1552 = vmatpush1.msra.mxu0 0.0
          %1553 = vmatprep.subr.mxu0 0.0
          %1554 = vmatpush1.msra.mxu0 0.0
          %1555 = vmatprep.subr.mxu0 0.0
          %1556 = vmatpush1.msra.mxu0 0.0
          %1557 = vmatprep.subr.mxu0 0.0
          %1558 = vmatpush1.msra.mxu0 0.0
          %1559 = vmatprep.subr.mxu0 0.0
          %1560 = vmatpush1.msra.mxu0 0.0
          %1561 = vmatprep.subr.mxu0 0.0
          %1562 = vmatpush1.msra.mxu0 0.0
          %1563 = vmatprep.subr.mxu0 0.0
          %1564 = vmatpush1.msra.mxu0 0.0
          %1565 = vmatprep.subr.mxu0 0.0
          %1566 = vmatpush1.msra.mxu0 0.0
          %1567 = vmatprep.subr.mxu0 0.0
          %1568 = vmatpush1.msra.mxu0 0.0
          %1569 = vmatprep.subr.mxu0 0.0
          %1570 = vmatpush1.msra.mxu0 0.0
          %1571 = vmatprep.subr.mxu0 0.0
          %1572 = vmatpush1.msra.mxu0 0.0
          %1573 = vmatprep.subr.mxu0 0.0
          %1574 = vmatpush1.msra.mxu0 0.0
          %1575 = vmatprep.subr.mxu0 0.0
          %1576 = vmatpush1.msra.mxu0 0.0
          %1577 = vmatprep.subr.mxu0 0.0
          %1578 = vmatpush1.msra.mxu0 0.0
          %1579 = vmatprep.subr.mxu0 0.0
          %1580 = vmatpush1.msra.mxu0 0.0
          %1581 = vmatprep.subr.mxu0 0.0
          %1582 = vmatpush1.msra.mxu0 0.0
          %1583 = vmatprep.subr.mxu0 0.0
          %1584 = vmatpush1.msra.mxu0 0.0
          %1585 = vmatprep.mubr.f32.mxu0 0.0
          %1586 = vmatmul.mubr.f32.gmra.mrb[0].mxu0 %v1426
          %v1587 = vpop.f32.mrb[0].mxu0
          %v1588 = vadd.f32 %v501, %v1587
          %v1589 = vpop.f32.mrb[0].mxu0
          %1590 = vmatprep.mubr.f32.mxu0 0.0
          %1591 = vmatmul.mubr.f32.gmra.mrb[0].mxu0 %v1429
          %v1592 = vpop.f32.mrb[0].mxu0
          %v1593 = vadd.f32 %v501, %v1592
          %v1594 = vpop.f32.mrb[0].mxu0
          %1595 = vmatprep.mubr.f32.mxu0 0.0
          %1596 = vmatmul.mubr.f32.gmra.mrb[0].mxu0 %v1432
          %v1597 = vpop.f32.mrb[0].mxu0
          %v1598 = vadd.f32 %v501, %v1597
          %v1599 = vpop.f32.mrb[0].mxu0
          %1600 = vmatprep.mubr.f32.mxu0 0.0
          %1601 = vmatmul.mubr.f32.gmra.mrb[0].mxu0 %v1435
          %v1602 = vpop.f32.mrb[0].mxu0
          %v1603 = vadd.f32 %v501, %v1602
          %v1604 = vpop.f32.mrb[0].mxu0
          %1605 = vmatprep.mubr.f32.mxu0 0.0
          %1606 = vmatmul.mubr.f32.gmra.mrb[0].mxu0 %v1438
          %v1607 = vpop.f32.mrb[0].mxu0
          %v1608 = vadd.f32 %v501, %v1607
          %v1609 = vpop.f32.mrb[0].mxu0
          %1610 = vmatprep.mubr.f32.mxu0 0.0
          %1611 = vmatmul.mubr.f32.gmra.mrb[0].mxu0 %v1441
          %v1612 = vpop.f32.mrb[0].mxu0
          %v1613 = vadd.f32 %v501, %v1612
          %v1614 = vpop.f32.mrb[0].mxu0
          %1615 = vmatprep.mubr.f32.mxu0 0.0
          %1616 = vmatmul.mubr.f32.gmra.mrb[0].mxu0 %v1444
          %v1617 = vpop.f32.mrb[0].mxu0
          %v1618 = vadd.f32 %v501, %v1617
          %v1619 = vpop.f32.mrb[0].mxu0
          %1620 = vmatprep.mubr.f32.mxu0 0.0
          %1621 = vmatmul.mubr.f32.gmra.mrb[0].mxu0 %v1447
          %v1622 = vpop.f32.mrb[0].mxu0
          %v1623 = vadd.f32 %v501, %v1622
          %v1624 = vpop.f32.mrb[0].mxu0
          %1625 = vmatprep.mubr.f32.mxu0 0.0
          %1626 = vmatmul.mubr.f32.gmra.mrb[0].mxu0 %v1450
          %v1627 = vpop.f32.mrb[0].mxu0
          %v1628 = vadd.f32 %v501, %v1627
          %v1629 = vpop.f32.mrb[0].mxu0
          %1630 = vmatprep.mubr.f32.mxu0 0.0
          %1631 = vmatmul.mubr.f32.gmra.mrb[0].mxu0 %v1453
          %v1632 = vpop.f32.mrb[0].mxu0
          %v1633 = vadd.f32 %v501, %v1632
          %v1634 = vpop.f32.mrb[0].mxu0
          %1635 = vmatprep.mubr.f32.mxu0 0.0
          %1636 = vmatmul.mubr.f32.gmra.mrb[0].mxu0 %v1456
          %v1637 = vpop.f32.mrb[0].mxu0
          %v1638 = vadd.f32 %v501, %v1637
          %v1639 = vpop.f32.mrb[0].mxu0
          %1640 = vmatprep.mubr.f32.mxu0 0.0
          %1641 = vmatmul.mubr.f32.gmra.mrb[0].mxu0 %v1459
          %v1642 = vpop.f32.mrb[0].mxu0
          %v1643 = vadd.f32 %v501, %v1642
          %v1644 = vpop.f32.mrb[0].mxu0
          %1645 = vmatprep.mubr.f32.mxu0 0.0
          %1646 = vmatmul.mubr.f32.gmra.mrb[0].mxu0 %v1462
          %v1647 = vpop.f32.mrb[0].mxu0
          %v1648 = vadd.f32 %v501, %v1647
          %v1649 = vpop.f32.mrb[0].mxu0
          %1650 = vmatprep.mubr.f32.mxu0 0.0
          %1651 = vmatmul.mubr.f32.gmra.mrb[0].mxu0 %v1465
          %v1652 = vpop.f32.mrb[0].mxu0
          %v1653 = vadd.f32 %v501, %v1652
          %v1654 = vpop.f32.mrb[0].mxu0
          %1655 = vmatprep.mubr.f32.mxu0 0.0
          %1656 = vmatmul.mubr.f32.gmra.mrb[0].mxu0 %v1468
          %v1657 = vpop.f32.mrb[0].mxu0
          %v1658 = vadd.f32 %v501, %v1657
          %v1659 = vpop.f32.mrb[0].mxu0
          %1660 = vmatprep.mubr.f32.mxu0 0.0
          %1661 = vmatmul.mubr.f32.gmra.mrb[0].mxu0 %v1471
          %v1662 = vpop.f32.mrb[0].mxu0
          %v1663 = vadd.f32 %v501, %v1662
          %v1664 = vpop.f32.mrb[0].mxu0
          %1665 = vmatprep.mubr.f32.mxu0 0.0
          %1666 = vmatmul.mubr.f32.gmra.mrb[0].mxu0 %v1474
          %v1667 = vpop.f32.mrb[0].mxu0
          %v1668 = vadd.f32 %v501, %v1667
          %v1669 = vpop.f32.mrb[0].mxu0
          %1670 = vmatprep.mubr.f32.mxu0 0.0
          %1671 = vmatmul.mubr.f32.gmra.mrb[0].mxu0 %v1477
          %v1672 = vpop.f32.mrb[0].mxu0
          %v1673 = vadd.f32 %v501, %v1672
          %v1674 = vpop.f32.mrb[0].mxu0
          %1675 = vmatprep.mubr.f32.mxu0 0.0
          %1676 = vmatmul.mubr.f32.gmra.mrb[0].mxu0 %v1480
          %v1677 = vpop.f32.mrb[0].mxu0
          %v1678 = vadd.f32 %v501, %v1677
          %v1679 = vpop.f32.mrb[0].mxu0
          %1680 = vmatprep.mubr.f32.mxu0 0.0
          %1681 = vmatmul.mubr.f32.gmra.mrb[0].mxu0 %v1483
          %v1682 = vpop.f32.mrb[0].mxu0
          %v1683 = vadd.f32 %v501, %v1682
          %v1684 = vpop.f32.mrb[0].mxu0
          %1685 = vmatprep.mubr.f32.mxu0 0.0
          %1686 = vmatmul.mubr.f32.gmra.mrb[0].mxu0 %v1486
          %v1687 = vpop.f32.mrb[0].mxu0
          %v1688 = vadd.f32 %v501, %v1687
          %v1689 = vpop.f32.mrb[0].mxu0
          %1690 = vmatprep.mubr.f32.mxu0 0.0
          %1691 = vmatmul.mubr.f32.gmra.mrb[0].mxu0 %v1489
          %v1692 = vpop.f32.mrb[0].mxu0
          %v1693 = vadd.f32 %v501, %v1692
          %v1694 = vpop.f32.mrb[0].mxu0
          %1695 = vmatprep.mubr.f32.mxu0 0.0
          %1696 = vmatmul.mubr.f32.gmra.mrb[0].mxu0 %v1492
          %v1697 = vpop.f32.mrb[0].mxu0
          %v1698 = vadd.f32 %v501, %v1697
          %v1699 = vpop.f32.mrb[0].mxu0
          %1700 = vmatprep.mubr.f32.mxu0 0.0
          %1701 = vmatmul.mubr.f32.gmra.mrb[0].mxu0 %v1495
          %v1702 = vpop.f32.mrb[0].mxu0
          %v1703 = vadd.f32 %v501, %v1702
          %v1704 = vpop.f32.mrb[0].mxu0
          %1705 = vmatprep.mubr.f32.mxu0 0.0
          %1706 = vmatmul.mubr.f32.gmra.mrb[0].mxu0 %v1498
          %v1707 = vpop.f32.mrb[0].mxu0
          %v1708 = vadd.f32 %v501, %v1707
          %v1709 = vpop.f32.mrb[0].mxu0
          %1710 = vmatprep.mubr.f32.mxu0 0.0
          %1711 = vmatmul.mubr.f32.gmra.mrb[0].mxu0 %v1501
          %v1712 = vpop.f32.mrb[0].mxu0
          %v1713 = vadd.f32 %v501, %v1712
          %v1714 = vpop.f32.mrb[0].mxu0
          %1715 = vmatprep.mubr.f32.mxu0 0.0
          %1716 = vmatmul.mubr.f32.gmra.mrb[0].mxu0 %v1504
          %v1717 = vpop.f32.mrb[0].mxu0
          %v1718 = vadd.f32 %v501, %v1717
          %v1719 = vpop.f32.mrb[0].mxu0
          %1720 = vmatprep.mubr.f32.mxu0 0.0
          %1721 = vmatmul.mubr.f32.gmra.mrb[0].mxu0 %v1507
          %v1722 = vpop.f32.mrb[0].mxu0
          %v1723 = vadd.f32 %v501, %v1722
          %v1724 = vpop.f32.mrb[0].mxu0
          %1725 = vmatprep.mubr.f32.mxu0 0.0
          %1726 = vmatmul.mubr.f32.gmra.mrb[0].mxu0 %v1510
          %v1727 = vpop.f32.mrb[0].mxu0
          %v1728 = vadd.f32 %v501, %v1727
          %v1729 = vpop.f32.mrb[0].mxu0
          %1730 = vmatprep.mubr.f32.mxu0 0.0
          %1731 = vmatmul.mubr.f32.gmra.mrb[0].mxu0 %v1513
          %v1732 = vpop.f32.mrb[0].mxu0
          %v1733 = vadd.f32 %v501, %v1732
          %v1734 = vpop.f32.mrb[0].mxu0
          %1735 = vmatprep.mubr.f32.mxu0 0.0
          %1736 = vmatmul.mubr.f32.gmra.mrb[0].mxu0 %v1516
          %v1737 = vpop.f32.mrb[0].mxu0
          %v1738 = vadd.f32 %v501, %v1737
          %v1739 = vpop.f32.mrb[0].mxu0
          %1740 = vmatprep.mubr.f32.mxu0 0.0
          %1741 = vmatmul.mubr.f32.gmra.mrb[0].mxu0 %v1519
          %v1742 = vpop.f32.mrb[0].mxu0
          %v1743 = vadd.f32 %v501, %v1742
          %v1744 = vpop.f32.mrb[0].mxu0
          %1745 = vdwg.mxu0
          %v1746 = vmax.f32 %v1588, 0.0
          %v1747 = vmax.f32 %v1593, 0.0
          %v1748 = vmax.f32 %v1598, 0.0
          %v1749 = vmax.f32 %v1603, 0.0
          %v1750 = vmax.f32 %v1608, 0.0
          %v1751 = vmax.f32 %v1613, 0.0
          %v1752 = vmax.f32 %v1618, 0.0
          %v1753 = vmax.f32 %v1623, 0.0
          %v1754 = vmax.f32 %v1628, 0.0
          %v1755 = vmax.f32 %v1633, 0.0
          %v1756 = vmax.f32 %v1638, 0.0
          %v1757 = vmax.f32 %v1643, 0.0
          %v1758 = vmax.f32 %v1648, 0.0
          %v1759 = vmax.f32 %v1653, 0.0
          %v1760 = vmax.f32 %v1658, 0.0
          %v1761 = vmax.f32 %v1663, 0.0
          %v1762 = vmax.f32 %v1668, 0.0
          %v1763 = vmax.f32 %v1673, 0.0
          %v1764 = vmax.f32 %v1678, 0.0
          %v1765 = vmax.f32 %v1683, 0.0
          %v1766 = vmax.f32 %v1688, 0.0
          %v1767 = vmax.f32 %v1693, 0.0
          %v1768 = vmax.f32 %v1698, 0.0
          %v1769 = vmax.f32 %v1703, 0.0
          %v1770 = vmax.f32 %v1708, 0.0
          %v1771 = vmax.f32 %v1713, 0.0
          %v1772 = vmax.f32 %v1718, 0.0
          %v1773 = vmax.f32 %v1723, 0.0
          %v1774 = vmax.f32 %v1728, 0.0
          %v1775 = vmax.f32 %v1733, 0.0
          %v1776 = vmax.f32 %v1738, 0.0
          %v1777 = vmax.f32 %v1743, 0.0
          %1778 = vmatprep.subr.mxu0 0.0
          %1779 = vmatpush1.msra.mxu0 %v1746
          %1780 = vmatprep.subr.mxu0 0.0
          %1781 = vmatpush1.msra.mxu0 %v1747
          %1782 = vmatprep.subr.mxu0 0.0
          %1783 = vmatpush1.msra.mxu0 %v1748
          %1784 = vmatprep.subr.mxu0 0.0
          %1785 = vmatpush1.msra.mxu0 %v1749
          %1786 = vmatprep.subr.mxu0 0.0
          %1787 = vmatpush1.msra.mxu0 %v1750
          %1788 = vmatprep.subr.mxu0 0.0
          %1789 = vmatpush1.msra.mxu0 %v1751
          %1790 = vmatprep.subr.mxu0 0.0
          %1791 = vmatpush1.msra.mxu0 %v1752
          %1792 = vmatprep.subr.mxu0 0.0
          %1793 = vmatpush1.msra.mxu0 %v1753
          %1794 = vmatprep.subr.mxu0 0.0
          %1795 = vmatpush1.msra.mxu0 %v1754
          %1796 = vmatprep.subr.mxu0 0.0
          %1797 = vmatpush1.msra.mxu0 %v1755
          %1798 = vmatprep.subr.mxu0 0.0
          %1799 = vmatpush1.msra.mxu0 %v1756
          %1800 = vmatprep.subr.mxu0 0.0
          %1801 = vmatpush1.msra.mxu0 %v1757
          %1802 = vmatprep.subr.mxu0 0.0
          %1803 = vmatpush1.msra.mxu0 %v1758
          %1804 = vmatprep.subr.mxu0 0.0
          %1805 = vmatpush1.msra.mxu0 %v1759
          %1806 = vmatprep.subr.mxu0 0.0
          %1807 = vmatpush1.msra.mxu0 %v1760
          %1808 = vmatprep.subr.mxu0 0.0
          %1809 = vmatpush1.msra.mxu0 %v1761
          %1810 = vmatprep.subr.mxu0 0.0
          %1811 = vmatpush1.msra.mxu0 %v1762
          %1812 = vmatprep.subr.mxu0 0.0
          %1813 = vmatpush1.msra.mxu0 %v1763
          %1814 = vmatprep.subr.mxu0 0.0
          %1815 = vmatpush1.msra.mxu0 %v1764
          %1816 = vmatprep.subr.mxu0 0.0
          %1817 = vmatpush1.msra.mxu0 %v1765
          %1818 = vmatprep.subr.mxu0 0.0
          %1819 = vmatpush1.msra.mxu0 %v1766
          %1820 = vmatprep.subr.mxu0 0.0
          %1821 = vmatpush1.msra.mxu0 %v1767
          %1822 = vmatprep.subr.mxu0 0.0
          %1823 = vmatpush1.msra.mxu0 %v1768
          %1824 = vmatprep.subr.mxu0 0.0
          %1825 = vmatpush1.msra.mxu0 %v1769
          %1826 = vmatprep.subr.mxu0 0.0
          %1827 = vmatpush1.msra.mxu0 %v1770
          %1828 = vmatprep.subr.mxu0 0.0
          %1829 = vmatpush1.msra.mxu0 %v1771
          %1830 = vmatprep.subr.mxu0 0.0
          %1831 = vmatpush1.msra.mxu0 %v1772
          %1832 = vmatprep.subr.mxu0 0.0
          %1833 = vmatpush1.msra.mxu0 %v1773
          %1834 = vmatprep.subr.mxu0 0.0
          %1835 = vmatpush1.msra.mxu0 %v1774
          %1836 = vmatprep.subr.mxu0 0.0
          %1837 = vmatpush1.msra.mxu0 %v1775
          %1838 = vmatprep.subr.mxu0 0.0
          %1839 = vmatpush1.msra.mxu0 %v1776
          %1840 = vmatprep.subr.mxu0 0.0
          %1841 = vmatpush1.msra.mxu0 %v1777
          %1842 = vmatprep.mubr.f32.mxu0 %v517
          %1843 = vmatmul.mubr.f32.gmra.mrb[0].mxu0 %v516
          %v1844 = vpop.f32.mrb[0].mxu0
          %v1845 = vadd.f32 0.0, %v1844
          %v1846 = vpop.f32.mrb[0].mxu0
          %1847 = vmatprep.mubr.f32.mxu0 %v519
          %1848 = vmatmul.mubr.f32.gmra.mrb[0].mxu0 %v518
          %v1849 = vpop.f32.mrb[0].mxu0
          %v1850 = vadd.f32 0.0, %v1849
          %v1851 = vpop.f32.mrb[0].mxu0
          %1852 = vdwg.mxu0
          %v1854 = vsel %vm1424, %v1845, 0
          %v1857 = vsel %vm1424, %v1850, 0
          %1859 = vmatprep.subr.mxu0 0.0
          %1860 = vmatpush1.msra.mxu0 %v502
          %1861 = vmatprep.subr.mxu0 0.0
          %1862 = vmatpush1.msra.mxu0 %v503
          %1863 = vmatprep.subr.mxu0 0.0
          %1864 = vmatpush1.msra.mxu0 %v504
          %1865 = vmatprep.subr.mxu0 0.0
          %1866 = vmatpush1.msra.mxu0 %v505
          %1867 = vmatprep.subr.mxu0 0.0
          %1868 = vmatpush1.msra.mxu0 0.0
          %1869 = vmatprep.subr.mxu0 0.0
          %1870 = vmatpush1.msra.mxu0 0.0
          %1871 = vmatprep.subr.mxu0 0.0
          %1872 = vmatpush1.msra.mxu0 0.0
          %1873 = vmatprep.subr.mxu0 0.0
          %1874 = vmatpush1.msra.mxu0 0.0
          %1875 = vmatprep.subr.mxu0 0.0
          %1876 = vmatpush1.msra.mxu0 0.0
          %1877 = vmatprep.subr.mxu0 0.0
          %1878 = vmatpush1.msra.mxu0 0.0
          %1879 = vmatprep.subr.mxu0 0.0
          %1880 = vmatpush1.msra.mxu0 0.0
          %1881 = vmatprep.subr.mxu0 0.0
          %1882 = vmatpush1.msra.mxu0 0.0
          %1883 = vmatprep.subr.mxu0 0.0
          %1884 = vmatpush1.msra.mxu0 0.0
          %1885 = vmatprep.subr.mxu0 0.0
          %1886 = vmatpush1.msra.mxu0 0.0
          %1887 = vmatprep.subr.mxu0 0.0
          %1888 = vmatpush1.msra.mxu0 0.0
          %1889 = vmatprep.subr.mxu0 0.0
          %1890 = vmatpush1.msra.mxu0 0.0
          %1891 = vmatprep.subr.mxu0 0.0
          %1892 = vmatpush1.msra.mxu0 0.0
          %1893 = vmatprep.subr.mxu0 0.0
          %1894 = vmatpush1.msra.mxu0 0.0
          %1895 = vmatprep.subr.mxu0 0.0
          %1896 = vmatpush1.msra.mxu0 0.0
          %1897 = vmatprep.subr.mxu0 0.0
          %1898 = vmatpush1.msra.mxu0 0.0
          %1899 = vmatprep.subr.mxu0 0.0
          %1900 = vmatpush1.msra.mxu0 0.0
          %1901 = vmatprep.subr.mxu0 0.0
          %1902 = vmatpush1.msra.mxu0 0.0
          %1903 = vmatprep.subr.mxu0 0.0
          %1904 = vmatpush1.msra.mxu0 0.0
          %1905 = vmatprep.subr.mxu0 0.0
          %1906 = vmatpush1.msra.mxu0 0.0
          %1907 = vmatprep.subr.mxu0 0.0
          %1908 = vmatpush1.msra.mxu0 0.0
          %1909 = vmatprep.subr.mxu0 0.0
          %1910 = vmatpush1.msra.mxu0 0.0
          %1911 = vmatprep.subr.mxu0 0.0
          %1912 = vmatpush1.msra.mxu0 0.0
          %1913 = vmatprep.subr.mxu0 0.0
          %1914 = vmatpush1.msra.mxu0 0.0
          %1915 = vmatprep.subr.mxu0 0.0
          %1916 = vmatpush1.msra.mxu0 0.0
          %1917 = vmatprep.subr.mxu0 0.0
          %1918 = vmatpush1.msra.mxu0 0.0
          %1919 = vmatprep.subr.mxu0 0.0
          %1920 = vmatpush1.msra.mxu0 0.0
          %1921 = vmatprep.subr.mxu0 0.0
          %1922 = vmatpush1.msra.mxu0 0.0
          %1923 = vmatprep.mubr.f32.mxu0 0.0
          %1924 = vmatmul.mubr.f32.gmra.mrb[0].mxu0 %v1854
          %v1925 = vpop.f32.mrb[0].mxu0
          %v1926 = vadd.f32 %v506, %v1925
          %v1927 = vpop.f32.mrb[0].mxu0
          %1928 = vmatprep.mubr.f32.mxu0 0.0
          %1929 = vmatmul.mubr.f32.gmra.mrb[0].mxu0 %v1857
          %v1930 = vpop.f32.mrb[0].mxu0
          %v1931 = vadd.f32 %v506, %v1930
          %v1932 = vpop.f32.mrb[0].mxu0
          %1933 = vdwg.mxu0
          %vm1934 = vcmask 523264
          %v1936 = vsel %vm1934, %v1926, 0
          %v1939 = vsel %vm1934, %v1931, 0
          %1941 = vmatprep.subr.mxu0 0.0
          %1942 = vmatpush1.msra.mxu0 %v507
          %1943 = vmatprep.subr.mxu0 0.0
          %1944 = vmatpush1.msra.mxu0 %v508
          %1945 = vmatprep.subr.mxu0 0.0
          %1946 = vmatpush1.msra.mxu0 %v509
          %1947 = vmatprep.subr.mxu0 0.0
          %1948 = vmatpush1.msra.mxu0 %v510
          %1949 = vmatprep.subr.mxu0 0.0
          %1950 = vmatpush1.msra.mxu0 %v511
          %1951 = vmatprep.subr.mxu0 0.0
          %1952 = vmatpush1.msra.mxu0 %v512
          %1953 = vmatprep.subr.mxu0 0.0
          %1954 = vmatpush1.msra.mxu0 %v513
          %1955 = vmatprep.subr.mxu0 0.0
          %1956 = vmatpush1.msra.mxu0 %v514
          %1957 = vmatprep.subr.mxu0 0.0
          %1958 = vmatpush1.msra.mxu0 0.0
          %1959 = vmatprep.subr.mxu0 0.0
          %1960 = vmatpush1.msra.mxu0 0.0
          %1961 = vmatprep.subr.mxu0 0.0
          %1962 = vmatpush1.msra.mxu0 0.0
          %1963 = vmatprep.subr.mxu0 0.0
          %1964 = vmatpush1.msra.mxu0 0.0
          %1965 = vmatprep.subr.mxu0 0.0
          %1966 = vmatpush1.msra.mxu0 0.0
          %1967 = vmatprep.subr.mxu0 0.0
          %1968 = vmatpush1.msra.mxu0 0.0
          %1969 = vmatprep.subr.mxu0 0.0
          %1970 = vmatpush1.msra.mxu0 0.0
          %1971 = vmatprep.subr.mxu0 0.0
          %1972 = vmatpush1.msra.mxu0 0.0
          %1973 = vmatprep.subr.mxu0 0.0
          %1974 = vmatpush1.msra.mxu0 0.0
          %1975 = vmatprep.subr.mxu0 0.0
          %1976 = vmatpush1.msra.mxu0 0.0
          %1977 = vmatprep.subr.mxu0 0.0
          %1978 = vmatpush1.msra.mxu0 0.0
          %1979 = vmatprep.subr.mxu0 0.0
          %1980 = vmatpush1.msra.mxu0 0.0
          %1981 = vmatprep.subr.mxu0 0.0
          %1982 = vmatpush1.msra.mxu0 0.0
          %1983 = vmatprep.subr.mxu0 0.0
          %1984 = vmatpush1.msra.mxu0 0.0
          %1985 = vmatprep.subr.mxu0 0.0
          %1986 = vmatpush1.msra.mxu0 0.0
          %1987 = vmatprep.subr.mxu0 0.0
          %1988 = vmatpush1.msra.mxu0 0.0
          %1989 = vmatprep.subr.mxu0 0.0
          %1990 = vmatpush1.msra.mxu0 0.0
          %1991 = vmatprep.subr.mxu0 0.0
          %1992 = vmatpush1.msra.mxu0 0.0
          %1993 = vmatprep.subr.mxu0 0.0
          %1994 = vmatpush1.msra.mxu0 0.0
          %1995 = vmatprep.subr.mxu0 0.0
          %1996 = vmatpush1.msra.mxu0 0.0
          %1997 = vmatprep.subr.mxu0 0.0
          %1998 = vmatpush1.msra.mxu0 0.0
          %1999 = vmatprep.subr.mxu0 0.0
          %2000 = vmatpush1.msra.mxu0 0.0
          %2001 = vmatprep.subr.mxu0 0.0
          %2002 = vmatpush1.msra.mxu0 0.0
          %2003 = vmatprep.subr.mxu0 0.0
          %2004 = vmatpush1.msra.mxu0 0.0
          %2005 = vmatprep.mubr.f32.mxu0 0.0
          %2006 = vmatmul.mubr.f32.gmra.mrb[0].mxu0 %v1936
          %v2007 = vpop.f32.mrb[0].mxu0
          %v2008 = vadd.f32 %v515, %v2007
          %v2009 = vpop.f32.mrb[0].mxu0
          %2010 = vmatprep.mubr.f32.mxu0 0.0
          %2011 = vmatmul.mubr.f32.gmra.mrb[0].mxu0 %v1939
          %v2012 = vpop.f32.mrb[0].mxu0
          %v2013 = vadd.f32 %v515, %v2012
          %v2014 = vpop.f32.mrb[0].mxu0
          %2015 = vdwg.mxu0
          %v2016 = vmax.f32 %v2008, 0.0
          %v2017 = vmax.f32 %v2013, 0.0
          %v2018 = vpack.c.bf16 %v2017, %v2016
          %2019 = vst.msk [vmem:[#allocation2] sm:$0xff] %vm1934, %v2018
          %2021 = vrot.lane.b32.xlu0 %v2018, 64
          %v2022 = vpop.permute.xlu0 %2021
          %s2024 = scalar_lea.vmem [#allocation2], 8
          %2025 = vst.msk [vmem:[%s2024] sm:$0xff] %vm1934, %v2022
          %vm2026 = vcmask 7168
          %2027 = vst.msk [vmem:[#allocation3] sm:$0xff] %vm2026, -inf
          %2028 = vst.msk [vmem:[#allocation3 + $0x8] sm:$0xff] %vm2026, -inf
          %2029 = vst.msk [vmem:[#allocation5] sm:$0xff] %vm2026, -inf
          %2030 = vst.msk [vmem:[#allocation5 + $0x8] sm:$0xff] %vm2026, -inf
          %2031 = vst.msk [vmem:[#allocation4] sm:$0xff] %vm2026, 0.0
          %2032 = vst.msk [vmem:[#allocation4 + $0x8] sm:$0xff] %vm2026, 0.0
          %2033 = vst.msk [vmem:[#allocation6] sm:$0xff] %vm2026, 0.0
          %2034 = vst.msk [vmem:[#allocation6 + $0x8] sm:$0xff] %vm2026, 0.0
        $region105: #{gflownet_forward.1} parent=92 // pred_fallthru
          _
        %v2035 = vld [vmem:[#allocation2] sm:$0xff]
        %v2036 = vld [vmem:[%s438] sm:$0xff]
        %v2037 = vld [vmem:[%s438 + $0x8] sm:$0xff]
        %v2038 = vld [vmem:[%s438 + $0x10] sm:$0xff]
        %v2039 = vld [vmem:[%s438 + $0x18] sm:$0xff]
        %v2040 = vld [vmem:[%s438 + $0x20] sm:$0xff]
        %v2041 = vld [vmem:[%s438 + $0x28] sm:$0xff]
        %v2042 = vld [vmem:[%s438 + $0x30] sm:$0xff]
        %v2043 = vld [vmem:[%s438 + $0x38] sm:$0xff]
        %v2044 = vld [vmem:[%s438 + $0x40] sm:$0xff]
        %v2045 = vld [vmem:[%s438 + $0x48] sm:$0xff]
        %v2046 = vld [vmem:[%s438 + $0x50] sm:$0xff]
        %v2047 = vld [vmem:[%s438 + $0x58] sm:$0xff]
        %v2048 = vld [vmem:[%s438 + $0x60] sm:$0xff]
        %v2049 = vld [vmem:[%s438 + $0x68] sm:$0xff]
        %v2050 = vld [vmem:[%s438 + $0x70] sm:$0xff]
        %v2051 = vld [vmem:[%s438 + $0x78] sm:$0xff]
        %v2052 = vld [vmem:[%s438 + $0x80] sm:$0xff]
        %v2053 = vld [vmem:[%s438 + $0x88] sm:$0xff]
        %v2054 = vld [vmem:[%s438 + $0x90] sm:$0xff]
        %v2055 = vld [vmem:[%s438 + $0x98] sm:$0xff]
        %v2056 = vld [vmem:[%s438 + $0xa0] sm:$0xff]
        %v2057 = vld [vmem:[%s438 + $0xa8] sm:$0xff]
        %v2058 = vld [vmem:[%s438 + $0xb0] sm:$0xff]
        %v2059 = vld [vmem:[%s438 + $0xb8] sm:$0xff]
        %v2060 = vld [vmem:[%s438 + $0xc0] sm:$0xff]
        %v2061 = vld [vmem:[%s438 + $0xc8] sm:$0xff]
        %v2062 = vld [vmem:[%s438 + $0xd0] sm:$0xff]
        %v2063 = vld [vmem:[%s438 + $0xd8] sm:$0xff]
        %v2064 = vld [vmem:[%s438 + $0xe0] sm:$0xff]
        %v2065 = vld [vmem:[%s438 + $0xe8] sm:$0xff]
        %v2066 = vld [vmem:[%s438 + $0xf0] sm:$0xff]
        %v2067 = vld [vmem:[%s438 + $0xf8] sm:$0xff]
        %v2068 = vld [vmem:[%s445] sm:$0xff]
        %v2070 = vlaneseq
        %v2071 = vshrl.u32 %v2070, 7
        %v2072 = vsub.s32 0, %v2071
        %v2073 = vrot.slane %v2068, %v2072
        %v2074 = vlaneseq
        %v2075 = vshrl.u32 %v2074, 7
        %v2076 = vsub.s32 1, %v2075
        %v2077 = vrot.slane %v2068, %v2076
        %v2078 = vlaneseq
        %v2079 = vshrl.u32 %v2078, 7
        %v2080 = vsub.s32 2, %v2079
        %v2081 = vrot.slane %v2068, %v2080
        %v2082 = vlaneseq
        %v2083 = vshrl.u32 %v2082, 7
        %v2084 = vsub.s32 3, %v2083
        %v2085 = vrot.slane %v2068, %v2084
        %v2086 = vlaneseq
        %v2087 = vshrl.u32 %v2086, 7
        %v2088 = vsub.s32 4, %v2087
        %v2089 = vrot.slane %v2068, %v2088
        %v2090 = vlaneseq
        %v2091 = vshrl.u32 %v2090, 7
        %v2092 = vsub.s32 5, %v2091
        %v2093 = vrot.slane %v2068, %v2092
        %v2094 = vlaneseq
        %v2095 = vshrl.u32 %v2094, 7
        %v2096 = vsub.s32 6, %v2095
        %v2097 = vrot.slane %v2068, %v2096
        %v2098 = vlaneseq
        %v2099 = vshrl.u32 %v2098, 7
        %v2100 = vsub.s32 7, %v2099
        %v2101 = vrot.slane %v2068, %v2100
        %v2142 = vunpack.c.l.b16 %v2036
        %v2143 = vunpack.c.h.b16 %v2036
        %v2144 = vunpack.c.l.b16 %v2037
        %v2145 = vunpack.c.h.b16 %v2037
        %v2146 = vunpack.c.l.b16 %v2038
        %v2147 = vunpack.c.h.b16 %v2038
        %v2148 = vunpack.c.l.b16 %v2039
        %v2149 = vunpack.c.h.b16 %v2039
        %v2150 = vunpack.c.l.b16 %v2040
        %v2151 = vunpack.c.h.b16 %v2040
        %v2152 = vunpack.c.l.b16 %v2041
        %v2153 = vunpack.c.h.b16 %v2041
        %v2154 = vunpack.c.l.b16 %v2042
        %v2155 = vunpack.c.h.b16 %v2042
        %v2156 = vunpack.c.l.b16 %v2043
        %v2157 = vunpack.c.h.b16 %v2043
        %v2158 = vunpack.c.l.b16 %v2044
        %v2159 = vunpack.c.h.b16 %v2044
        %v2160 = vunpack.c.l.b16 %v2045
        %v2161 = vunpack.c.h.b16 %v2045
        %v2162 = vunpack.c.l.b16 %v2046
        %v2163 = vunpack.c.h.b16 %v2046
        %v2164 = vunpack.c.l.b16 %v2047
        %v2165 = vunpack.c.h.b16 %v2047
        %v2166 = vunpack.c.l.b16 %v2048
        %v2167 = vunpack.c.h.b16 %v2048
        %v2168 = vunpack.c.l.b16 %v2049
        %v2169 = vunpack.c.h.b16 %v2049
        %v2170 = vunpack.c.l.b16 %v2050
        %v2171 = vunpack.c.h.b16 %v2050
        %v2172 = vunpack.c.l.b16 %v2051
        %v2173 = vunpack.c.h.b16 %v2051
        %v2174 = vunpack.c.l.b16 %v2052
        %v2175 = vunpack.c.h.b16 %v2052
        %v2176 = vunpack.c.l.b16 %v2053
        %v2177 = vunpack.c.h.b16 %v2053
        %v2178 = vunpack.c.l.b16 %v2054
        %v2179 = vunpack.c.h.b16 %v2054
        %v2180 = vunpack.c.l.b16 %v2055
        %v2181 = vunpack.c.h.b16 %v2055
        %v2182 = vunpack.c.l.b16 %v2056
        %v2183 = vunpack.c.h.b16 %v2056
        %v2184 = vunpack.c.l.b16 %v2057
        %v2185 = vunpack.c.h.b16 %v2057
        %v2186 = vunpack.c.l.b16 %v2058
        %v2187 = vunpack.c.h.b16 %v2058
        %v2188 = vunpack.c.l.b16 %v2059
        %v2189 = vunpack.c.h.b16 %v2059
        %v2190 = vunpack.c.l.b16 %v2060
        %v2191 = vunpack.c.h.b16 %v2060
        %v2192 = vunpack.c.l.b16 %v2061
        %v2193 = vunpack.c.h.b16 %v2061
        %v2194 = vunpack.c.l.b16 %v2062
        %v2195 = vunpack.c.h.b16 %v2062
        %v2196 = vunpack.c.l.b16 %v2063
        %v2197 = vunpack.c.h.b16 %v2063
        %v2198 = vunpack.c.l.b16 %v2064
        %v2199 = vunpack.c.h.b16 %v2064
        %v2200 = vunpack.c.l.b16 %v2065
        %v2201 = vunpack.c.h.b16 %v2065
        %v2202 = vunpack.c.l.b16 %v2066
        %v2203 = vunpack.c.h.b16 %v2066
        %v2204 = vunpack.c.l.b16 %v2067
        %v2205 = vunpack.c.h.b16 %v2067
        %v2206 = vpack.c.b16 %v2150, %v2142
        %v2207 = vpack.c.b16 %v2151, %v2143
        %v2208 = vpack.c.b16 %v2152, %v2144
        %v2209 = vpack.c.b16 %v2153, %v2145
        %v2210 = vpack.c.b16 %v2154, %v2146
        %v2211 = vpack.c.b16 %v2155, %v2147
        %v2212 = vpack.c.b16 %v2156, %v2148
        %v2213 = vpack.c.b16 %v2157, %v2149
        %v2214 = vpack.c.b16 %v2166, %v2158
        %v2215 = vpack.c.b16 %v2167, %v2159
        %v2216 = vpack.c.b16 %v2168, %v2160
        %v2217 = vpack.c.b16 %v2169, %v2161
        %v2218 = vpack.c.b16 %v2170, %v2162
        %v2219 = vpack.c.b16 %v2171, %v2163
        %v2220 = vpack.c.b16 %v2172, %v2164
        %v2221 = vpack.c.b16 %v2173, %v2165
        %v2222 = vpack.c.b16 %v2182, %v2174
        %v2223 = vpack.c.b16 %v2183, %v2175
        %v2224 = vpack.c.b16 %v2184, %v2176
        %v2225 = vpack.c.b16 %v2185, %v2177
        %v2226 = vpack.c.b16 %v2186, %v2178
        %v2227 = vpack.c.b16 %v2187, %v2179
        %v2228 = vpack.c.b16 %v2188, %v2180
        %v2229 = vpack.c.b16 %v2189, %v2181
        %v2230 = vpack.c.b16 %v2198, %v2190
        %v2231 = vpack.c.b16 %v2199, %v2191
        %v2232 = vpack.c.b16 %v2200, %v2192
        %v2233 = vpack.c.b16 %v2201, %v2193
        %v2234 = vpack.c.b16 %v2202, %v2194
        %v2235 = vpack.c.b16 %v2203, %v2195
        %v2236 = vpack.c.b16 %v2204, %v2196
        %v2237 = vpack.c.b16 %v2205, %v2197
        %vm2270 = vcmask 523264
        %v2272 = vsel %vm2270, %v2035, 0
        %2274 = vmatprep.subr.bf16.mxu0 %v2207
        %2275 = vmatpush1.bf16.msra.mxu0 %v2206
        %2276 = vmatprep.subr.bf16.mxu0 %v2215
        %2277 = vmatpush1.bf16.msra.mxu0 %v2214
        %2278 = vmatprep.subr.bf16.mxu0 %v2223
        %2279 = vmatpush1.bf16.msra.mxu0 %v2222
        %2280 = vmatprep.subr.bf16.mxu0 %v2231
        %2281 = vmatpush1.bf16.msra.mxu0 %v2230
        %2282 = vmatprep.subr.bf16.mxu0 0
        %2283 = vmatpush1.bf16.msra.mxu0 0
        %2284 = vmatprep.subr.bf16.mxu0 0
        %2285 = vmatpush1.bf16.msra.mxu0 0
        %2286 = vmatprep.subr.bf16.mxu0 0
        %2287 = vmatpush1.bf16.msra.mxu0 0
        %2288 = vmatprep.subr.bf16.mxu0 0
        %2289 = vmatpush1.bf16.msra.mxu0 0
        %2290 = vmatprep.subr.bf16.mxu0 0
        %2291 = vmatpush1.bf16.msra.mxu0 0
        %2292 = vmatprep.subr.bf16.mxu0 0
        %2293 = vmatpush1.bf16.msra.mxu0 0
        %2294 = vmatprep.subr.bf16.mxu0 0
        %2295 = vmatpush1.bf16.msra.mxu0 0
        %2296 = vmatprep.subr.bf16.mxu0 0
        %2297 = vmatpush1.bf16.msra.mxu0 0
        %2298 = vmatprep.subr.bf16.mxu0 0
        %2299 = vmatpush1.bf16.msra.mxu0 0
        %2300 = vmatprep.subr.bf16.mxu0 0
        %2301 = vmatpush1.bf16.msra.mxu0 0
        %2302 = vmatprep.subr.bf16.mxu0 0
        %2303 = vmatpush1.bf16.msra.mxu0 0
        %2304 = vmatprep.subr.bf16.mxu0 0
        %2305 = vmatpush1.bf16.msra.mxu0 0
        %2306 = vmatprep.mubr.bf16.mxu0 0
        %2307 = vmatmul.mubr.bf16.gmra.mrb[0].mxu0 %v2272
        %v2308 = vpop.f32.mrb[0].mxu0
        %v2309 = vadd.f32 %v2073, %v2308
        %v2310 = vpop.f32.mrb[0].mxu0
        %v2311 = vadd.f32 %v2077, %v2310
        %v2312 = vpop.f32.mrb[0].mxu0
        %v2313 = vadd.f32 %v2073, %v2312
        %v2314 = vpop.f32.mrb[0].mxu0
        %v2315 = vadd.f32 %v2077, %v2314
        %2316 = vdwg.mxu0
        %2317 = vmatprep.subr.bf16.mxu0 %v2209
        %2318 = vmatpush1.bf16.msra.mxu0 %v2208
        %2319 = vmatprep.subr.bf16.mxu0 %v2217
        %2320 = vmatpush1.bf16.msra.mxu0 %v2216
        %2321 = vmatprep.subr.bf16.mxu0 %v2225
        %2322 = vmatpush1.bf16.msra.mxu0 %v2224
        %2323 = vmatprep.subr.bf16.mxu0 %v2233
        %2324 = vmatpush1.bf16.msra.mxu0 %v2232
        %2325 = vmatprep.subr.bf16.mxu0 0
        %2326 = vmatpush1.bf16.msra.mxu0 0
        %2327 = vmatprep.subr.bf16.mxu0 0
        %2328 = vmatpush1.bf16.msra.mxu0 0
        %2329 = vmatprep.subr.bf16.mxu0 0
        %2330 = vmatpush1.bf16.msra.mxu0 0
        %2331 = vmatprep.subr.bf16.mxu0 0
        %2332 = vmatpush1.bf16.msra.mxu0 0
        %2333 = vmatprep.subr.bf16.mxu0 0
        %2334 = vmatpush1.bf16.msra.mxu0 0
        %2335 = vmatprep.subr.bf16.mxu0 0
        %2336 = vmatpush1.bf16.msra.mxu0 0
        %2337 = vmatprep.subr.bf16.mxu0 0
        %2338 = vmatpush1.bf16.msra.mxu0 0
        %2339 = vmatprep.subr.bf16.mxu0 0
        %2340 = vmatpush1.bf16.msra.mxu0 0
        %2341 = vmatprep.subr.bf16.mxu0 0
        %2342 = vmatpush1.bf16.msra.mxu0 0
        %2343 = vmatprep.subr.bf16.mxu0 0
        %2344 = vmatpush1.bf16.msra.mxu0 0
        %2345 = vmatprep.subr.bf16.mxu0 0
        %2346 = vmatpush1.bf16.msra.mxu0 0
        %2347 = vmatprep.subr.bf16.mxu0 0
        %2348 = vmatpush1.bf16.msra.mxu0 0
        %2349 = vmatprep.mubr.bf16.mxu0 0
        %2350 = vmatmul.mubr.bf16.gmra.mrb[0].mxu0 %v2272
        %v2351 = vpop.f32.mrb[0].mxu0
        %v2352 = vadd.f32 %v2081, %v2351
        %v2353 = vpop.f32.mrb[0].mxu0
        %v2354 = vadd.f32 %v2085, %v2353
        %v2355 = vpop.f32.mrb[0].mxu0
        %v2356 = vadd.f32 %v2081, %v2355
        %v2357 = vpop.f32.mrb[0].mxu0
        %v2358 = vadd.f32 %v2085, %v2357
        %2359 = vdwg.mxu0
        %2360 = vmatprep.subr.bf16.mxu0 %v2211
        %2361 = vmatpush1.bf16.msra.mxu0 %v2210
        %2362 = vmatprep.subr.bf16.mxu0 %v2219
        %2363 = vmatpush1.bf16.msra.mxu0 %v2218
        %2364 = vmatprep.subr.bf16.mxu0 %v2227
        %2365 = vmatpush1.bf16.msra.mxu0 %v2226
        %2366 = vmatprep.subr.bf16.mxu0 %v2235
        %2367 = vmatpush1.bf16.msra.mxu0 %v2234
        %2368 = vmatprep.subr.bf16.mxu0 0
        %2369 = vmatpush1.bf16.msra.mxu0 0
        %2370 = vmatprep.subr.bf16.mxu0 0
        %2371 = vmatpush1.bf16.msra.mxu0 0
        %2372 = vmatprep.subr.bf16.mxu0 0
        %2373 = vmatpush1.bf16.msra.mxu0 0
        %2374 = vmatprep.subr.bf16.mxu0 0
        %2375 = vmatpush1.bf16.msra.mxu0 0
        %2376 = vmatprep.subr.bf16.mxu0 0
        %2377 = vmatpush1.bf16.msra.mxu0 0
        %2378 = vmatprep.subr.bf16.mxu0 0
        %2379 = vmatpush1.bf16.msra.mxu0 0
        %2380 = vmatprep.subr.bf16.mxu0 0
        %2381 = vmatpush1.bf16.msra.mxu0 0
        %2382 = vmatprep.subr.bf16.mxu0 0
        %2383 = vmatpush1.bf16.msra.mxu0 0
        %2384 = vmatprep.subr.bf16.mxu0 0
        %2385 = vmatpush1.bf16.msra.mxu0 0
        %2386 = vmatprep.subr.bf16.mxu0 0
        %2387 = vmatpush1.bf16.msra.mxu0 0
        %2388 = vmatprep.subr.bf16.mxu0 0
        %2389 = vmatpush1.bf16.msra.mxu0 0
        %2390 = vmatprep.subr.bf16.mxu0 0
        %2391 = vmatpush1.bf16.msra.mxu0 0
        %2392 = vmatprep.mubr.bf16.mxu0 0
        %2393 = vmatmul.mubr.bf16.gmra.mrb[0].mxu0 %v2272
        %v2394 = vpop.f32.mrb[0].mxu0
        %v2395 = vadd.f32 %v2089, %v2394
        %v2396 = vpop.f32.mrb[0].mxu0
        %v2397 = vadd.f32 %v2093, %v2396
        %v2398 = vpop.f32.mrb[0].mxu0
        %v2399 = vadd.f32 %v2089, %v2398
        %v2400 = vpop.f32.mrb[0].mxu0
        %v2401 = vadd.f32 %v2093, %v2400
        %2402 = vdwg.mxu0
        %2403 = vmatprep.subr.bf16.mxu0 %v2213
        %2404 = vmatpush1.bf16.msra.mxu0 %v2212
        %2405 = vmatprep.subr.bf16.mxu0 %v2221
        %2406 = vmatpush1.bf16.msra.mxu0 %v2220
        %2407 = vmatprep.subr.bf16.mxu0 %v2229
        %2408 = vmatpush1.bf16.msra.mxu0 %v2228
        %2409 = vmatprep.subr.bf16.mxu0 %v2237
        %2410 = vmatpush1.bf16.msra.mxu0 %v2236
        %2411 = vmatprep.subr.bf16.mxu0 0
        %2412 = vmatpush1.bf16.msra.mxu0 0
        %2413 = vmatprep.subr.bf16.mxu0 0
        %2414 = vmatpush1.bf16.msra.mxu0 0
        %2415 = vmatprep.subr.bf16.mxu0 0
        %2416 = vmatpush1.bf16.msra.mxu0 0
        %2417 = vmatprep.subr.bf16.mxu0 0
        %2418 = vmatpush1.bf16.msra.mxu0 0
        %2419 = vmatprep.subr.bf16.mxu0 0
        %2420 = vmatpush1.bf16.msra.mxu0 0
        %2421 = vmatprep.subr.bf16.mxu0 0
        %2422 = vmatpush1.bf16.msra.mxu0 0
        %2423 = vmatprep.subr.bf16.mxu0 0
        %2424 = vmatpush1.bf16.msra.mxu0 0
        %2425 = vmatprep.subr.bf16.mxu0 0
        %2426 = vmatpush1.bf16.msra.mxu0 0
        %2427 = vmatprep.subr.bf16.mxu0 0
        %2428 = vmatpush1.bf16.msra.mxu0 0
        %2429 = vmatprep.subr.bf16.mxu0 0
        %2430 = vmatpush1.bf16.msra.mxu0 0
        %2431 = vmatprep.subr.bf16.mxu0 0
        %2432 = vmatpush1.bf16.msra.mxu0 0
        %2433 = vmatprep.subr.bf16.mxu0 0
        %2434 = vmatpush1.bf16.msra.mxu0 0
        %2435 = vmatprep.mubr.bf16.mxu0 0
        %2436 = vmatmul.mubr.bf16.gmra.mrb[0].mxu0 %v2272
        %v2437 = vpop.f32.mrb[0].mxu0
        %v2438 = vadd.f32 %v2097, %v2437
        %v2439 = vpop.f32.mrb[0].mxu0
        %v2440 = vadd.f32 %v2101, %v2439
        %v2441 = vpop.f32.mrb[0].mxu0
        %v2442 = vadd.f32 %v2097, %v2441
        %v2443 = vpop.f32.mrb[0].mxu0
        %v2444 = vadd.f32 %v2101, %v2443
        %2445 = vdwg.mxu0
        %s2446 = scalar_lea.vmem [#allocation2], 8
        %v2447 = vld [vmem:[%s2446] sm:$0xff]
        %s2448 = scalar_lea.vmem %s438, 256 [#allocation7]
        %v2449 = vld [vmem:[%s2448] sm:$0xff]
        %v2450 = vld [vmem:[%s2448 + $0x8] sm:$0xff]
        %v2451 = vld [vmem:[%s2448 + $0x10] sm:$0xff]
        %v2452 = vld [vmem:[%s2448 + $0x18] sm:$0xff]
        %v2453 = vld [vmem:[%s2448 + $0x20] sm:$0xff]
        %v2454 = vld [vmem:[%s2448 + $0x28] sm:$0xff]
        %v2455 = vld [vmem:[%s2448 + $0x30] sm:$0xff]
        %v2456 = vld [vmem:[%s2448 + $0x38] sm:$0xff]
        %v2457 = vld [vmem:[%s2448 + $0x40] sm:$0xff]
        %v2458 = vld [vmem:[%s2448 + $0x48] sm:$0xff]
        %v2459 = vld [vmem:[%s2448 + $0x50] sm:$0xff]
        %v2460 = vld [vmem:[%s2448 + $0x58] sm:$0xff]
        %v2461 = vld [vmem:[%s2448 + $0x60] sm:$0xff]
        %v2462 = vld [vmem:[%s2448 + $0x68] sm:$0xff]
        %v2463 = vld [vmem:[%s2448 + $0x70] sm:$0xff]
        %v2464 = vld [vmem:[%s2448 + $0x78] sm:$0xff]
        %v2465 = vld [vmem:[%s2448 + $0x80] sm:$0xff]
        %v2466 = vld [vmem:[%s2448 + $0x88] sm:$0xff]
        %v2467 = vld [vmem:[%s2448 + $0x90] sm:$0xff]
        %v2468 = vld [vmem:[%s2448 + $0x98] sm:$0xff]
        %v2469 = vld [vmem:[%s2448 + $0xa0] sm:$0xff]
        %v2470 = vld [vmem:[%s2448 + $0xa8] sm:$0xff]
        %v2471 = vld [vmem:[%s2448 + $0xb0] sm:$0xff]
        %v2472 = vld [vmem:[%s2448 + $0xb8] sm:$0xff]
        %v2473 = vld [vmem:[%s2448 + $0xc0] sm:$0xff]
        %v2474 = vld [vmem:[%s2448 + $0xc8] sm:$0xff]
        %v2475 = vld [vmem:[%s2448 + $0xd0] sm:$0xff]
        %v2476 = vld [vmem:[%s2448 + $0xd8] sm:$0xff]
        %v2477 = vld [vmem:[%s2448 + $0xe0] sm:$0xff]
        %v2478 = vld [vmem:[%s2448 + $0xe8] sm:$0xff]
        %v2479 = vld [vmem:[%s2448 + $0xf0] sm:$0xff]
        %v2480 = vld [vmem:[%s2448 + $0xf8] sm:$0xff]
        %s2481 = scalar_lea.vmem %s445, 8 [#allocation8]
        %v2482 = vld [vmem:[%s2481] sm:$0xff]
        %v2484 = vlaneseq
        %v2485 = vshrl.u32 %v2484, 7
        %v2486 = vsub.s32 0, %v2485
        %v2487 = vrot.slane %v2482, %v2486
        %v2488 = vlaneseq
        %v2489 = vshrl.u32 %v2488, 7
        %v2490 = vsub.s32 1, %v2489
        %v2491 = vrot.slane %v2482, %v2490
        %v2492 = vlaneseq
        %v2493 = vshrl.u32 %v2492, 7
        %v2494 = vsub.s32 2, %v2493
        %v2495 = vrot.slane %v2482, %v2494
        %v2496 = vlaneseq
        %v2497 = vshrl.u32 %v2496, 7
        %v2498 = vsub.s32 3, %v2497
        %v2499 = vrot.slane %v2482, %v2498
        %v2500 = vlaneseq
        %v2501 = vshrl.u32 %v2500, 7
        %v2502 = vsub.s32 4, %v2501
        %v2503 = vrot.slane %v2482, %v2502
        %v2504 = vlaneseq
        %v2505 = vshrl.u32 %v2504, 7
        %v2506 = vsub.s32 5, %v2505
        %v2507 = vrot.slane %v2482, %v2506
        %v2508 = vlaneseq
        %v2509 = vshrl.u32 %v2508, 7
        %v2510 = vsub.s32 6, %v2509
        %v2511 = vrot.slane %v2482, %v2510
        %v2512 = vlaneseq
        %v2513 = vshrl.u32 %v2512, 7
        %v2514 = vsub.s32 7, %v2513
        %v2515 = vrot.slane %v2482, %v2514
        %v2556 = vunpack.c.l.b16 %v2449
        %v2557 = vunpack.c.h.b16 %v2449
        %v2558 = vunpack.c.l.b16 %v2450
        %v2559 = vunpack.c.h.b16 %v2450
        %v2560 = vunpack.c.l.b16 %v2451
        %v2561 = vunpack.c.h.b16 %v2451
        %v2562 = vunpack.c.l.b16 %v2452
        %v2563 = vunpack.c.h.b16 %v2452
        %v2564 = vunpack.c.l.b16 %v2453
        %v2565 = vunpack.c.h.b16 %v2453
        %v2566 = vunpack.c.l.b16 %v2454
        %v2567 = vunpack.c.h.b16 %v2454
        %v2568 = vunpack.c.l.b16 %v2455
        %v2569 = vunpack.c.h.b16 %v2455
        %v2570 = vunpack.c.l.b16 %v2456
        %v2571 = vunpack.c.h.b16 %v2456
        %v2572 = vunpack.c.l.b16 %v2457
        %v2573 = vunpack.c.h.b16 %v2457
        %v2574 = vunpack.c.l.b16 %v2458
        %v2575 = vunpack.c.h.b16 %v2458
        %v2576 = vunpack.c.l.b16 %v2459
        %v2577 = vunpack.c.h.b16 %v2459
        %v2578 = vunpack.c.l.b16 %v2460
        %v2579 = vunpack.c.h.b16 %v2460
        %v2580 = vunpack.c.l.b16 %v2461
        %v2581 = vunpack.c.h.b16 %v2461
        %v2582 = vunpack.c.l.b16 %v2462
        %v2583 = vunpack.c.h.b16 %v2462
        %v2584 = vunpack.c.l.b16 %v2463
        %v2585 = vunpack.c.h.b16 %v2463
        %v2586 = vunpack.c.l.b16 %v2464
        %v2587 = vunpack.c.h.b16 %v2464
        %v2588 = vunpack.c.l.b16 %v2465
        %v2589 = vunpack.c.h.b16 %v2465
        %v2590 = vunpack.c.l.b16 %v2466
        %v2591 = vunpack.c.h.b16 %v2466
        %v2592 = vunpack.c.l.b16 %v2467
        %v2593 = vunpack.c.h.b16 %v2467
        %v2594 = vunpack.c.l.b16 %v2468
        %v2595 = vunpack.c.h.b16 %v2468
        %v2596 = vunpack.c.l.b16 %v2469
        %v2597 = vunpack.c.h.b16 %v2469
        %v2598 = vunpack.c.l.b16 %v2470
        %v2599 = vunpack.c.h.b16 %v2470
        %v2600 = vunpack.c.l.b16 %v2471
        %v2601 = vunpack.c.h.b16 %v2471
        %v2602 = vunpack.c.l.b16 %v2472
        %v2603 = vunpack.c.h.b16 %v2472
        %v2604 = vunpack.c.l.b16 %v2473
        %v2605 = vunpack.c.h.b16 %v2473
        %v2606 = vunpack.c.l.b16 %v2474
        %v2607 = vunpack.c.h.b16 %v2474
        %v2608 = vunpack.c.l.b16 %v2475
        %v2609 = vunpack.c.h.b16 %v2475
        %v2610 = vunpack.c.l.b16 %v2476
        %v2611 = vunpack.c.h.b16 %v2476
        %v2612 = vunpack.c.l.b16 %v2477
        %v2613 = vunpack.c.h.b16 %v2477
        %v2614 = vunpack.c.l.b16 %v2478
        %v2615 = vunpack.c.h.b16 %v2478
        %v2616 = vunpack.c.l.b16 %v2479
        %v2617 = vunpack.c.h.b16 %v2479
        %v2618 = vunpack.c.l.b16 %v2480
        %v2619 = vunpack.c.h.b16 %v2480
        %v2620 = vpack.c.b16 %v2564, %v2556
        %v2621 = vpack.c.b16 %v2565, %v2557
        %v2622 = vpack.c.b16 %v2566, %v2558
        %v2623 = vpack.c.b16 %v2567, %v2559
        %v2624 = vpack.c.b16 %v2568, %v2560
        %v2625 = vpack.c.b16 %v2569, %v2561
        %v2626 = vpack.c.b16 %v2570, %v2562
        %v2627 = vpack.c.b16 %v2571, %v2563
        %v2628 = vpack.c.b16 %v2580, %v2572
        %v2629 = vpack.c.b16 %v2581, %v2573
        %v2630 = vpack.c.b16 %v2582, %v2574
        %v2631 = vpack.c.b16 %v2583, %v2575
        %v2632 = vpack.c.b16 %v2584, %v2576
        %v2633 = vpack.c.b16 %v2585, %v2577
        %v2634 = vpack.c.b16 %v2586, %v2578
        %v2635 = vpack.c.b16 %v2587, %v2579
        %v2636 = vpack.c.b16 %v2596, %v2588
        %v2637 = vpack.c.b16 %v2597, %v2589
        %v2638 = vpack.c.b16 %v2598, %v2590
        %v2639 = vpack.c.b16 %v2599, %v2591
        %v2640 = vpack.c.b16 %v2600, %v2592
        %v2641 = vpack.c.b16 %v2601, %v2593
        %v2642 = vpack.c.b16 %v2602, %v2594
        %v2643 = vpack.c.b16 %v2603, %v2595
        %v2644 = vpack.c.b16 %v2612, %v2604
        %v2645 = vpack.c.b16 %v2613, %v2605
        %v2646 = vpack.c.b16 %v2614, %v2606
        %v2647 = vpack.c.b16 %v2615, %v2607
        %v2648 = vpack.c.b16 %v2616, %v2608
        %v2649 = vpack.c.b16 %v2617, %v2609
        %v2650 = vpack.c.b16 %v2618, %v2610
        %v2651 = vpack.c.b16 %v2619, %v2611
        %v2685 = vsel %vm2270, %v2447, 0
        %2687 = vmatprep.subr.bf16.mxu0 %v2621
        %2688 = vmatpush1.bf16.msra.mxu0 %v2620
        %2689 = vmatprep.subr.bf16.mxu0 %v2629
        %2690 = vmatpush1.bf16.msra.mxu0 %v2628
        %2691 = vmatprep.subr.bf16.mxu0 %v2637
        %2692 = vmatpush1.bf16.msra.mxu0 %v2636
        %2693 = vmatprep.subr.bf16.mxu0 %v2645
        %2694 = vmatpush1.bf16.msra.mxu0 %v2644
        %2695 = vmatprep.subr.bf16.mxu0 0
        %2696 = vmatpush1.bf16.msra.mxu0 0
        %2697 = vmatprep.subr.bf16.mxu0 0
        %2698 = vmatpush1.bf16.msra.mxu0 0
        %2699 = vmatprep.subr.bf16.mxu0 0
        %2700 = vmatpush1.bf16.msra.mxu0 0
        %2701 = vmatprep.subr.bf16.mxu0 0
        %2702 = vmatpush1.bf16.msra.mxu0 0
        %2703 = vmatprep.subr.bf16.mxu0 0
        %2704 = vmatpush1.bf16.msra.mxu0 0
        %2705 = vmatprep.subr.bf16.mxu0 0
        %2706 = vmatpush1.bf16.msra.mxu0 0
        %2707 = vmatprep.subr.bf16.mxu0 0
        %2708 = vmatpush1.bf16.msra.mxu0 0
        %2709 = vmatprep.subr.bf16.mxu0 0
        %2710 = vmatpush1.bf16.msra.mxu0 0
        %2711 = vmatprep.subr.bf16.mxu0 0
        %2712 = vmatpush1.bf16.msra.mxu0 0
        %2713 = vmatprep.subr.bf16.mxu0 0
        %2714 = vmatpush1.bf16.msra.mxu0 0
        %2715 = vmatprep.subr.bf16.mxu0 0
        %2716 = vmatpush1.bf16.msra.mxu0 0
        %2717 = vmatprep.subr.bf16.mxu0 0
        %2718 = vmatpush1.bf16.msra.mxu0 0
        %2719 = vmatprep.mubr.bf16.mxu0 0
        %2720 = vmatmul.mubr.bf16.gmra.mrb[0].mxu0 %v2685
        %v2721 = vpop.f32.mrb[0].mxu0
        %v2722 = vadd.f32 %v2487, %v2721
        %v2723 = vpop.f32.mrb[0].mxu0
        %v2724 = vadd.f32 %v2491, %v2723
        %v2725 = vpop.f32.mrb[0].mxu0
        %v2726 = vadd.f32 %v2487, %v2725
        %v2727 = vpop.f32.mrb[0].mxu0
        %v2728 = vadd.f32 %v2491, %v2727
        %2729 = vdwg.mxu0
        %2730 = vmatprep.subr.bf16.mxu0 %v2623
        %2731 = vmatpush1.bf16.msra.mxu0 %v2622
        %2732 = vmatprep.subr.bf16.mxu0 %v2631
        %2733 = vmatpush1.bf16.msra.mxu0 %v2630
        %2734 = vmatprep.subr.bf16.mxu0 %v2639
        %2735 = vmatpush1.bf16.msra.mxu0 %v2638
        %2736 = vmatprep.subr.bf16.mxu0 %v2647
        %2737 = vmatpush1.bf16.msra.mxu0 %v2646
        %2738 = vmatprep.subr.bf16.mxu0 0
        %2739 = vmatpush1.bf16.msra.mxu0 0
        %2740 = vmatprep.subr.bf16.mxu0 0
        %2741 = vmatpush1.bf16.msra.mxu0 0
        %2742 = vmatprep.subr.bf16.mxu0 0
        %2743 = vmatpush1.bf16.msra.mxu0 0
        %2744 = vmatprep.subr.bf16.mxu0 0
        %2745 = vmatpush1.bf16.msra.mxu0 0
        %2746 = vmatprep.subr.bf16.mxu0 0
        %2747 = vmatpush1.bf16.msra.mxu0 0
        %2748 = vmatprep.subr.bf16.mxu0 0
        %2749 = vmatpush1.bf16.msra.mxu0 0
        %2750 = vmatprep.subr.bf16.mxu0 0
        %2751 = vmatpush1.bf16.msra.mxu0 0
        %2752 = vmatprep.subr.bf16.mxu0 0
        %2753 = vmatpush1.bf16.msra.mxu0 0
        %2754 = vmatprep.subr.bf16.mxu0 0
        %2755 = vmatpush1.bf16.msra.mxu0 0
        %2756 = vmatprep.subr.bf16.mxu0 0
        %2757 = vmatpush1.bf16.msra.mxu0 0
        %2758 = vmatprep.subr.bf16.mxu0 0
        %2759 = vmatpush1.bf16.msra.mxu0 0
        %2760 = vmatprep.subr.bf16.mxu0 0
        %2761 = vmatpush1.bf16.msra.mxu0 0
        %2762 = vmatprep.mubr.bf16.mxu0 0
        %2763 = vmatmul.mubr.bf16.gmra.mrb[0].mxu0 %v2685
        %v2764 = vpop.f32.mrb[0].mxu0
        %v2765 = vadd.f32 %v2495, %v2764
        %v2766 = vpop.f32.mrb[0].mxu0
        %v2767 = vadd.f32 %v2499, %v2766
        %v2768 = vpop.f32.mrb[0].mxu0
        %v2769 = vadd.f32 %v2495, %v2768
        %v2770 = vpop.f32.mrb[0].mxu0
        %v2771 = vadd.f32 %v2499, %v2770
        %2772 = vdwg.mxu0
        %2773 = vmatprep.subr.bf16.mxu0 %v2625
        %2774 = vmatpush1.bf16.msra.mxu0 %v2624
        %2775 = vmatprep.subr.bf16.mxu0 %v2633
        %2776 = vmatpush1.bf16.msra.mxu0 %v2632
        %2777 = vmatprep.subr.bf16.mxu0 %v2641
        %2778 = vmatpush1.bf16.msra.mxu0 %v2640
        %2779 = vmatprep.subr.bf16.mxu0 %v2649
        %2780 = vmatpush1.bf16.msra.mxu0 %v2648
        %2781 = vmatprep.subr.bf16.mxu0 0
        %2782 = vmatpush1.bf16.msra.mxu0 0
        %2783 = vmatprep.subr.bf16.mxu0 0
        %2784 = vmatpush1.bf16.msra.mxu0 0
        %2785 = vmatprep.subr.bf16.mxu0 0
        %2786 = vmatpush1.bf16.msra.mxu0 0
        %2787 = vmatprep.subr.bf16.mxu0 0
        %2788 = vmatpush1.bf16.msra.mxu0 0
        %2789 = vmatprep.subr.bf16.mxu0 0
        %2790 = vmatpush1.bf16.msra.mxu0 0
        %2791 = vmatprep.subr.bf16.mxu0 0
        %2792 = vmatpush1.bf16.msra.mxu0 0
        %2793 = vmatprep.subr.bf16.mxu0 0
        %2794 = vmatpush1.bf16.msra.mxu0 0
        %2795 = vmatprep.subr.bf16.mxu0 0
        %2796 = vmatpush1.bf16.msra.mxu0 0
        %2797 = vmatprep.subr.bf16.mxu0 0
        %2798 = vmatpush1.bf16.msra.mxu0 0
        %2799 = vmatprep.subr.bf16.mxu0 0
        %2800 = vmatpush1.bf16.msra.mxu0 0
        %2801 = vmatprep.subr.bf16.mxu0 0
        %2802 = vmatpush1.bf16.msra.mxu0 0
        %2803 = vmatprep.subr.bf16.mxu0 0
        %2804 = vmatpush1.bf16.msra.mxu0 0
        %2805 = vmatprep.mubr.bf16.mxu0 0
        %2806 = vmatmul.mubr.bf16.gmra.mrb[0].mxu0 %v2685
        %v2807 = vpop.f32.mrb[0].mxu0
        %v2808 = vadd.f32 %v2503, %v2807
        %v2809 = vpop.f32.mrb[0].mxu0
        %v2810 = vadd.f32 %v2507, %v2809
        %v2811 = vpop.f32.mrb[0].mxu0
        %v2812 = vadd.f32 %v2503, %v2811
        %v2813 = vpop.f32.mrb[0].mxu0
        %v2814 = vadd.f32 %v2507, %v2813
        %2815 = vdwg.mxu0
        %2816 = vmatprep.subr.bf16.mxu0 %v2627
        %2817 = vmatpush1.bf16.msra.mxu0 %v2626
        %2818 = vmatprep.subr.bf16.mxu0 %v2635
        %2819 = vmatpush1.bf16.msra.mxu0 %v2634
        %2820 = vmatprep.subr.bf16.mxu0 %v2643
        %2821 = vmatpush1.bf16.msra.mxu0 %v2642
        %2822 = vmatprep.subr.bf16.mxu0 %v2651
        %2823 = vmatpush1.bf16.msra.mxu0 %v2650
        %2824 = vmatprep.subr.bf16.mxu0 0
        %2825 = vmatpush1.bf16.msra.mxu0 0
        %2826 = vmatprep.subr.bf16.mxu0 0
        %2827 = vmatpush1.bf16.msra.mxu0 0
        %2828 = vmatprep.subr.bf16.mxu0 0
        %2829 = vmatpush1.bf16.msra.mxu0 0
        %2830 = vmatprep.subr.bf16.mxu0 0
        %2831 = vmatpush1.bf16.msra.mxu0 0
        %2832 = vmatprep.subr.bf16.mxu0 0
        %2833 = vmatpush1.bf16.msra.mxu0 0
        %2834 = vmatprep.subr.bf16.mxu0 0
        %2835 = vmatpush1.bf16.msra.mxu0 0
        %2836 = vmatprep.subr.bf16.mxu0 0
        %2837 = vmatpush1.bf16.msra.mxu0 0
        %2838 = vmatprep.subr.bf16.mxu0 0
        %2839 = vmatpush1.bf16.msra.mxu0 0
        %2840 = vmatprep.subr.bf16.mxu0 0
        %2841 = vmatpush1.bf16.msra.mxu0 0
        %2842 = vmatprep.subr.bf16.mxu0 0
        %2843 = vmatpush1.bf16.msra.mxu0 0
        %2844 = vmatprep.subr.bf16.mxu0 0
        %2845 = vmatpush1.bf16.msra.mxu0 0
        %2846 = vmatprep.subr.bf16.mxu0 0
        %2847 = vmatpush1.bf16.msra.mxu0 0
        %2848 = vmatprep.mubr.bf16.mxu0 0
        %2849 = vmatmul.mubr.bf16.gmra.mrb[0].mxu0 %v2685
        %v2850 = vpop.f32.mrb[0].mxu0
        %v2851 = vadd.f32 %v2511, %v2850
        %v2852 = vpop.f32.mrb[0].mxu0
        %v2853 = vadd.f32 %v2515, %v2852
        %v2854 = vpop.f32.mrb[0].mxu0
        %v2855 = vadd.f32 %v2511, %v2854
        %v2856 = vpop.f32.mrb[0].mxu0
        %v2857 = vadd.f32 %v2515, %v2856
        %2858 = vdwg.mxu0
        // Predicated region
        $region106: #{gflownet_forward.1} parent=92 // pred_check
          %p2859 = pneg %p488
        $region107: #{gflownet_forward.1} parent=92 // pred_check_branch
          %2861 = sbr.rel (%p2859) target = $region109
        $region108: #{gflownet_forward.1} parent=92 // pred_region
          %v2862 = vld [vmem:[#allocation3] sm:$0xff]
          %v2863 = vld [vmem:[#allocation3 + $0x8] sm:$0xff]
          %v2864 = vmax.f32 %v2309, %v2352
          %v2865 = vmax.f32 %v2311, %v2354
          %v2866 = vmax.f32 %v2864, %v2395
          %v2867 = vmax.f32 %v2865, %v2397
          %v2868 = vmax.f32 %v2866, %v2438
          %v2869 = vmax.f32 %v2867, %v2440
          %v2870 = vmax.f32 %v2868, %v2869
          %2871 = vmax.xlane.f32.xlu0 %v2870
          %v2872 = vpop.xlane.xlu0 %2871
          %v2873 = vmax.f32 %v2313, %v2356
          %v2874 = vmax.f32 %v2315, %v2358
          %v2875 = vmax.f32 %v2873, %v2399
          %v2876 = vmax.f32 %v2874, %v2401
          %v2877 = vmax.f32 %v2875, %v2442
          %v2878 = vmax.f32 %v2876, %v2444
          %v2879 = vmax.f32 %v2877, %v2878
          %2880 = vmax.xlane.f32.xlu0 %v2879
          %v2881 = vpop.xlane.xlu0 %2880
          %v2882 = vmax.f32 %v2862, %v2872
          %v2883 = vmax.f32 %v2863, %v2881
          %v2884 = vld [vmem:[#allocation4] sm:$0xff]
          %v2885 = vld [vmem:[#allocation4 + $0x8] sm:$0xff]
          %v2886 = vsub.f32 %v2862, %v2882
          %v2887 = vsub.f32 %v2863, %v2883
          %v2888 = vmul.f32 %v2886, 1.442695
          %v2889 = vpow.pop %v2888
          %v2890 = vmul.f32 %v2887, 1.442695
          %v2891 = vpow.pop %v2890
          %v2892 = vmul.f32 %v2884, %v2889
          %v2893 = vmul.f32 %v2885, %v2891
          %2895 = vset.pattern.permute.xlu0 0
          %2896 = vperm.xlu0 %2895, %v2882
          %v2897 = vpop.permute.xlu0 %2896
          %2900 = vset.pattern.permute.xlu0 0
          %2901 = vperm.xlu0 %2900, %v2883
          %v2902 = vpop.permute.xlu0 %2901
          %v2904 = vsub.f32 %v2309, %v2897
          %v2905 = vsub.f32 %v2311, %v2897
          %v2906 = vsub.f32 %v2352, %v2897
          %v2907 = vsub.f32 %v2354, %v2897
          %v2908 = vsub.f32 %v2395, %v2897
          %v2909 = vsub.f32 %v2397, %v2897
          %v2910 = vsub.f32 %v2438, %v2897
          %v2911 = vsub.f32 %v2440, %v2897
          %v2912 = vsub.f32 %v2313, %v2902
          %v2913 = vsub.f32 %v2315, %v2902
          %v2914 = vsub.f32 %v2356, %v2902
          %v2915 = vsub.f32 %v2358, %v2902
          %v2916 = vsub.f32 %v2399, %v2902
          %v2917 = vsub.f32 %v2401, %v2902
          %v2918 = vsub.f32 %v2442, %v2902
          %v2919 = vsub.f32 %v2444, %v2902
          %v2920 = vmul.f32 %v2904, 1.442695
          %v2921 = vpow.pop %v2920
          %v2922 = vmul.f32 %v2905, 1.442695
          %v2923 = vpow.pop %v2922
          %v2924 = vmul.f32 %v2906, 1.442695
          %v2925 = vpow.pop %v2924
          %v2926 = vmul.f32 %v2907, 1.442695
          %v2927 = vpow.pop %v2926
          %v2928 = vmul.f32 %v2908, 1.442695
          %v2929 = vpow.pop %v2928
          %v2930 = vmul.f32 %v2909, 1.442695
          %v2931 = vpow.pop %v2930
          %v2932 = vmul.f32 %v2910, 1.442695
          %v2933 = vpow.pop %v2932
          %v2934 = vmul.f32 %v2911, 1.442695
          %v2935 = vpow.pop %v2934
          %v2936 = vmul.f32 %v2912, 1.442695
          %v2937 = vpow.pop %v2936
          %v2938 = vmul.f32 %v2913, 1.442695
          %v2939 = vpow.pop %v2938
          %v2940 = vmul.f32 %v2914, 1.442695
          %v2941 = vpow.pop %v2940
          %v2942 = vmul.f32 %v2915, 1.442695
          %v2943 = vpow.pop %v2942
          %v2944 = vmul.f32 %v2916, 1.442695
          %v2945 = vpow.pop %v2944
          %v2946 = vmul.f32 %v2917, 1.442695
          %v2947 = vpow.pop %v2946
          %v2948 = vmul.f32 %v2918, 1.442695
          %v2949 = vpow.pop %v2948
          %v2950 = vmul.f32 %v2919, 1.442695
          %v2951 = vpow.pop %v2950
          %v2952 = vadd.f32 %v2921, %v2923
          %v2953 = vadd.f32 %v2952, %v2925
          %v2954 = vadd.f32 %v2953, %v2927
          %v2955 = vadd.f32 %v2954, %v2929
          %v2956 = vadd.f32 %v2955, %v2931
          %v2957 = vadd.f32 %v2956, %v2933
          %v2958 = vadd.f32 %v2957, %v2935
          %2959 = vadd.xlane.f32.xlu0 %v2958
          %v2960 = vpop.xlane.xlu0 %2959
          %v2961 = vadd.f32 %v2937, %v2939
          %v2962 = vadd.f32 %v2961, %v2941
          %v2963 = vadd.f32 %v2962, %v2943
          %v2964 = vadd.f32 %v2963, %v2945
          %v2965 = vadd.f32 %v2964, %v2947
          %v2966 = vadd.f32 %v2965, %v2949
          %v2967 = vadd.f32 %v2966, %v2951
          %2968 = vadd.xlane.f32.xlu0 %v2967
          %v2969 = vpop.xlane.xlu0 %2968
          %v2970 = vadd.f32 %v2892, %v2960
          %v2971 = vadd.f32 %v2893, %v2969
          %vm2972 = vcmask 7168
          %2973 = vst.msk [vmem:[#allocation4] sm:$0xff] %vm2972, %v2970
          %2974 = vst.msk [vmem:[#allocation4 + $0x8] sm:$0xff] %vm2972, %v2971
          %2975 = vst.msk [vmem:[#allocation3] sm:$0xff] %vm2972, %v2882
          %2976 = vst.msk [vmem:[#allocation3 + $0x8] sm:$0xff] %vm2972, %v2883
          %v2977 = vld [vmem:[#allocation5] sm:$0xff]
          %v2978 = vld [vmem:[#allocation5 + $0x8] sm:$0xff]
          %v2979 = vmax.f32 %v2722, %v2765
          %v2980 = vmax.f32 %v2724, %v2767
          %v2981 = vmax.f32 %v2979, %v2808
          %v2982 = vmax.f32 %v2980, %v2810
          %v2983 = vmax.f32 %v2981, %v2851
          %v2984 = vmax.f32 %v2982, %v2853
          %v2985 = vmax.f32 %v2983, %v2984
          %2986 = vmax.xlane.f32.xlu0 %v2985
          %v2987 = vpop.xlane.xlu0 %2986
          %v2988 = vmax.f32 %v2726, %v2769
          %v2989 = vmax.f32 %v2728, %v2771
          %v2990 = vmax.f32 %v2988, %v2812
          %v2991 = vmax.f32 %v2989, %v2814
          %v2992 = vmax.f32 %v2990, %v2855
          %v2993 = vmax.f32 %v2991, %v2857
          %v2994 = vmax.f32 %v2992, %v2993
          %2995 = vmax.xlane.f32.xlu0 %v2994
          %v2996 = vpop.xlane.xlu0 %2995
          %v2997 = vmax.f32 %v2977, %v2987
          %v2998 = vmax.f32 %v2978, %v2996
          %v2999 = vld [vmem:[#allocation6] sm:$0xff]
          %v3000 = vld [vmem:[#allocation6 + $0x8] sm:$0xff]
          %v3001 = vsub.f32 %v2977, %v2997
          %v3002 = vsub.f32 %v2978, %v2998
          %v3003 = vmul.f32 %v3001, 1.442695
          %v3004 = vpow.pop %v3003
          %v3005 = vmul.f32 %v3002, 1.442695
          %v3006 = vpow.pop %v3005
          %v3007 = vmul.f32 %v2999, %v3004
          %v3008 = vmul.f32 %v3000, %v3006
          %3010 = vset.pattern.permute.xlu0 0
          %3011 = vperm.xlu0 %3010, %v2997
          %v3012 = vpop.permute.xlu0 %3011
          %3015 = vset.pattern.permute.xlu0 0
          %3016 = vperm.xlu0 %3015, %v2998
          %v3017 = vpop.permute.xlu0 %3016
          %v3019 = vsub.f32 %v2722, %v3012
          %v3020 = vsub.f32 %v2724, %v3012
          %v3021 = vsub.f32 %v2765, %v3012
          %v3022 = vsub.f32 %v2767, %v3012
          %v3023 = vsub.f32 %v2808, %v3012
          %v3024 = vsub.f32 %v2810, %v3012
          %v3025 = vsub.f32 %v2851, %v3012
          %v3026 = vsub.f32 %v2853, %v3012
          %v3027 = vsub.f32 %v2726, %v3017
          %v3028 = vsub.f32 %v2728, %v3017
          %v3029 = vsub.f32 %v2769, %v3017
          %v3030 = vsub.f32 %v2771, %v3017
          %v3031 = vsub.f32 %v2812, %v3017
          %v3032 = vsub.f32 %v2814, %v3017
          %v3033 = vsub.f32 %v2855, %v3017
          %v3034 = vsub.f32 %v2857, %v3017
          %v3035 = vmul.f32 %v3019, 1.442695
          %v3036 = vpow.pop %v3035
          %v3037 = vmul.f32 %v3020, 1.442695
          %v3038 = vpow.pop %v3037
          %v3039 = vmul.f32 %v3021, 1.442695
          %v3040 = vpow.pop %v3039
          %v3041 = vmul.f32 %v3022, 1.442695
          %v3042 = vpow.pop %v3041
          %v3043 = vmul.f32 %v3023, 1.442695
          %v3044 = vpow.pop %v3043
          %v3045 = vmul.f32 %v3024, 1.442695
          %v3046 = vpow.pop %v3045
          %v3047 = vmul.f32 %v3025, 1.442695
          %v3048 = vpow.pop %v3047
          %v3049 = vmul.f32 %v3026, 1.442695
          %v3050 = vpow.pop %v3049
          %v3051 = vmul.f32 %v3027, 1.442695
          %v3052 = vpow.pop %v3051
          %v3053 = vmul.f32 %v3028, 1.442695
          %v3054 = vpow.pop %v3053
          %v3055 = vmul.f32 %v3029, 1.442695
          %v3056 = vpow.pop %v3055
          %v3057 = vmul.f32 %v3030, 1.442695
          %v3058 = vpow.pop %v3057
          %v3059 = vmul.f32 %v3031, 1.442695
          %v3060 = vpow.pop %v3059
          %v3061 = vmul.f32 %v3032, 1.442695
          %v3062 = vpow.pop %v3061
          %v3063 = vmul.f32 %v3033, 1.442695
          %v3064 = vpow.pop %v3063
          %v3065 = vmul.f32 %v3034, 1.442695
          %v3066 = vpow.pop %v3065
          %v3067 = vadd.f32 %v3036, %v3038
          %v3068 = vadd.f32 %v3067, %v3040
          %v3069 = vadd.f32 %v3068, %v3042
          %v3070 = vadd.f32 %v3069, %v3044
          %v3071 = vadd.f32 %v3070, %v3046
          %v3072 = vadd.f32 %v3071, %v3048
          %v3073 = vadd.f32 %v3072, %v3050
          %3074 = vadd.xlane.f32.xlu0 %v3073
          %v3075 = vpop.xlane.xlu0 %3074
          %v3076 = vadd.f32 %v3052, %v3054
          %v3077 = vadd.f32 %v3076, %v3056
          %v3078 = vadd.f32 %v3077, %v3058
          %v3079 = vadd.f32 %v3078, %v3060
          %v3080 = vadd.f32 %v3079, %v3062
          %v3081 = vadd.f32 %v3080, %v3064
          %v3082 = vadd.f32 %v3081, %v3066
          %3083 = vadd.xlane.f32.xlu0 %v3082
          %v3084 = vpop.xlane.xlu0 %3083
          %v3085 = vadd.f32 %v3007, %v3075
          %v3086 = vadd.f32 %v3008, %v3084
          %3087 = vst.msk [vmem:[#allocation6] sm:$0xff] %vm2972, %v3085
          %3088 = vst.msk [vmem:[#allocation6 + $0x8] sm:$0xff] %vm2972, %v3086
          %3089 = vst.msk [vmem:[#allocation5] sm:$0xff] %vm2972, %v2997
          %3090 = vst.msk [vmem:[#allocation5 + $0x8] sm:$0xff] %vm2972, %v2998
        $region109: #{gflownet_forward.1} parent=92 // pred_fallthru
          _
        %p3091 = scmp.eq.s32.totalorder %s28, 1
        // Predicated region
        $region110: #{gflownet_forward.1} parent=92 // pred_check
          %p3092 = pneg %p3091
        $region111: #{gflownet_forward.1} parent=92 // pred_check_branch
          %3094 = sbr.rel (%p3092) target = $region113
        $region112: #{gflownet_forward.1} parent=92 // pred_region
          %v3095 = vld [vmem:[#allocation3] sm:$0xff]
          %v3096 = vld [vmem:[#allocation3 + $0x8] sm:$0xff]
          %3098 = vset.pattern.permute.xlu0 0
          %3099 = vperm.xlu0 %3098, %v3095
          %v3100 = vpop.permute.xlu0 %3099
          %3103 = vset.pattern.permute.xlu0 0
          %3104 = vperm.xlu0 %3103, %v3096
          %v3105 = vpop.permute.xlu0 %3104
          %v3107 = vsub.f32 %v2309, %v3100
          %v3108 = vsub.f32 %v2311, %v3100
          %v3109 = vsub.f32 %v2352, %v3100
          %v3110 = vsub.f32 %v2354, %v3100
          %v3111 = vsub.f32 %v2395, %v3100
          %v3112 = vsub.f32 %v2397, %v3100
          %v3113 = vsub.f32 %v2438, %v3100
          %v3114 = vsub.f32 %v2440, %v3100
          %v3115 = vsub.f32 %v2313, %v3105
          %v3116 = vsub.f32 %v2315, %v3105
          %v3117 = vsub.f32 %v2356, %v3105
          %v3118 = vsub.f32 %v2358, %v3105
          %v3119 = vsub.f32 %v2399, %v3105
          %v3120 = vsub.f32 %v2401, %v3105
          %v3121 = vsub.f32 %v2442, %v3105
          %v3122 = vsub.f32 %v2444, %v3105
          %v3123 = vmul.f32 %v3107, 1.442695
          %v3124 = vpow.pop %v3123
          %v3125 = vmul.f32 %v3108, 1.442695
          %v3126 = vpow.pop %v3125
          %v3127 = vmul.f32 %v3109, 1.442695
          %v3128 = vpow.pop %v3127
          %v3129 = vmul.f32 %v3110, 1.442695
          %v3130 = vpow.pop %v3129
          %v3131 = vmul.f32 %v3111, 1.442695
          %v3132 = vpow.pop %v3131
          %v3133 = vmul.f32 %v3112, 1.442695
          %v3134 = vpow.pop %v3133
          %v3135 = vmul.f32 %v3113, 1.442695
          %v3136 = vpow.pop %v3135
          %v3137 = vmul.f32 %v3114, 1.442695
          %v3138 = vpow.pop %v3137
          %v3139 = vmul.f32 %v3115, 1.442695
          %v3140 = vpow.pop %v3139
          %v3141 = vmul.f32 %v3116, 1.442695
          %v3142 = vpow.pop %v3141
          %v3143 = vmul.f32 %v3117, 1.442695
          %v3144 = vpow.pop %v3143
          %v3145 = vmul.f32 %v3118, 1.442695
          %v3146 = vpow.pop %v3145
          %v3147 = vmul.f32 %v3119, 1.442695
          %v3148 = vpow.pop %v3147
          %v3149 = vmul.f32 %v3120, 1.442695
          %v3150 = vpow.pop %v3149
          %v3151 = vmul.f32 %v3121, 1.442695
          %v3152 = vpow.pop %v3151
          %v3153 = vmul.f32 %v3122, 1.442695
          %v3154 = vpow.pop %v3153
          %v3155 = vld [vmem:[#allocation4] sm:$0xff]
          %v3156 = vld [vmem:[#allocation4 + $0x8] sm:$0xff]
          %v3157 = vrcp.pop %v3155
          %v3158 = vrcp.pop %v3156
          %3160 = vset.pattern.permute.xlu0 0
          %3161 = vperm.xlu0 %3160, %v3157
          %v3162 = vpop.permute.xlu0 %3161
          %3165 = vset.pattern.permute.xlu0 0
          %3166 = vperm.xlu0 %3165, %v3158
          %v3167 = vpop.permute.xlu0 %3166
          %v3169 = vmul.f32 %v3124, %v3162
          %v3170 = vmul.f32 %v3126, %v3162
          %v3171 = vmul.f32 %v3128, %v3162
          %v3172 = vmul.f32 %v3130, %v3162
          %v3173 = vmul.f32 %v3132, %v3162
          %v3174 = vmul.f32 %v3134, %v3162
          %v3175 = vmul.f32 %v3136, %v3162
          %v3176 = vmul.f32 %v3138, %v3162
          %v3177 = vmul.f32 %v3140, %v3167
          %v3178 = vmul.f32 %v3142, %v3167
          %v3179 = vmul.f32 %v3144, %v3167
          %v3180 = vmul.f32 %v3146, %v3167
          %v3181 = vmul.f32 %v3148, %v3167
          %v3182 = vmul.f32 %v3150, %v3167
          %v3183 = vmul.f32 %v3152, %v3167
          %v3184 = vmul.f32 %v3154, %v3167
          %3185 = vst [vmem:[%s473] sm:$0xff] %v3169
          %3186 = vst [vmem:[%s473 + $0x8] sm:$0xff] %v3170
          %3187 = vst [vmem:[%s473 + $0x10] sm:$0xff] %v3171
          %3188 = vst [vmem:[%s473 + $0x18] sm:$0xff] %v3172
          %3189 = vst [vmem:[%s473 + $0x20] sm:$0xff] %v3173
          %3190 = vst [vmem:[%s473 + $0x28] sm:$0xff] %v3174
          %3191 = vst [vmem:[%s473 + $0x30] sm:$0xff] %v3175
          %3192 = vst [vmem:[%s473 + $0x38] sm:$0xff] %v3176
          %3193 = vst [vmem:[%s473 + $0x40] sm:$0xff] %v3177
          %3194 = vst [vmem:[%s473 + $0x48] sm:$0xff] %v3178
          %3195 = vst [vmem:[%s473 + $0x50] sm:$0xff] %v3179
          %3196 = vst [vmem:[%s473 + $0x58] sm:$0xff] %v3180
          %3197 = vst [vmem:[%s473 + $0x60] sm:$0xff] %v3181
          %3198 = vst [vmem:[%s473 + $0x68] sm:$0xff] %v3182
          %3199 = vst [vmem:[%s473 + $0x70] sm:$0xff] %v3183
          %3200 = vst [vmem:[%s473 + $0x78] sm:$0xff] %v3184
          %v3201 = vld [vmem:[#allocation5] sm:$0xff]
          %v3202 = vld [vmem:[#allocation5 + $0x8] sm:$0xff]
          %3204 = vset.pattern.permute.xlu0 0
          %3205 = vperm.xlu0 %3204, %v3201
          %v3206 = vpop.permute.xlu0 %3205
          %3209 = vset.pattern.permute.xlu0 0
          %3210 = vperm.xlu0 %3209, %v3202
          %v3211 = vpop.permute.xlu0 %3210
          %v3213 = vsub.f32 %v2722, %v3206
          %v3214 = vsub.f32 %v2724, %v3206
          %v3215 = vsub.f32 %v2765, %v3206
          %v3216 = vsub.f32 %v2767, %v3206
          %v3217 = vsub.f32 %v2808, %v3206
          %v3218 = vsub.f32 %v2810, %v3206
          %v3219 = vsub.f32 %v2851, %v3206
          %v3220 = vsub.f32 %v2853, %v3206
          %v3221 = vsub.f32 %v2726, %v3211
          %v3222 = vsub.f32 %v2728, %v3211
          %v3223 = vsub.f32 %v2769, %v3211
          %v3224 = vsub.f32 %v2771, %v3211
          %v3225 = vsub.f32 %v2812, %v3211
          %v3226 = vsub.f32 %v2814, %v3211
          %v3227 = vsub.f32 %v2855, %v3211
          %v3228 = vsub.f32 %v2857, %v3211
          %v3229 = vmul.f32 %v3213, 1.442695
          %v3230 = vpow.pop %v3229
          %v3231 = vmul.f32 %v3214, 1.442695
          %v3232 = vpow.pop %v3231
          %v3233 = vmul.f32 %v3215, 1.442695
          %v3234 = vpow.pop %v3233
          %v3235 = vmul.f32 %v3216, 1.442695
          %v3236 = vpow.pop %v3235
          %v3237 = vmul.f32 %v3217, 1.442695
          %v3238 = vpow.pop %v3237
          %v3239 = vmul.f32 %v3218, 1.442695
          %v3240 = vpow.pop %v3239
          %v3241 = vmul.f32 %v3219, 1.442695
          %v3242 = vpow.pop %v3241
          %v3243 = vmul.f32 %v3220, 1.442695
          %v3244 = vpow.pop %v3243
          %v3245 = vmul.f32 %v3221, 1.442695
          %v3246 = vpow.pop %v3245
          %v3247 = vmul.f32 %v3222, 1.442695
          %v3248 = vpow.pop %v3247
          %v3249 = vmul.f32 %v3223, 1.442695
          %v3250 = vpow.pop %v3249
          %v3251 = vmul.f32 %v3224, 1.442695
          %v3252 = vpow.pop %v3251
          %v3253 = vmul.f32 %v3225, 1.442695
          %v3254 = vpow.pop %v3253
          %v3255 = vmul.f32 %v3226, 1.442695
          %v3256 = vpow.pop %v3255
          %v3257 = vmul.f32 %v3227, 1.442695
          %v3258 = vpow.pop %v3257
          %v3259 = vmul.f32 %v3228, 1.442695
          %v3260 = vpow.pop %v3259
          %v3261 = vld [vmem:[#allocation6] sm:$0xff]
          %v3262 = vld [vmem:[#allocation6 + $0x8] sm:$0xff]
          %v3263 = vrcp.pop %v3261
          %v3264 = vrcp.pop %v3262
          %3266 = vset.pattern.permute.xlu0 0
          %3267 = vperm.xlu0 %3266, %v3263
          %v3268 = vpop.permute.xlu0 %3267
          %3271 = vset.pattern.permute.xlu0 0
          %3272 = vperm.xlu0 %3271, %v3264
          %v3273 = vpop.permute.xlu0 %3272
          %v3275 = vmul.f32 %v3230, %v3268
          %v3276 = vmul.f32 %v3232, %v3268
          %v3277 = vmul.f32 %v3234, %v3268
          %v3278 = vmul.f32 %v3236, %v3268
          %v3279 = vmul.f32 %v3238, %v3268
          %v3280 = vmul.f32 %v3240, %v3268
          %v3281 = vmul.f32 %v3242, %v3268
          %v3282 = vmul.f32 %v3244, %v3268
          %v3283 = vmul.f32 %v3246, %v3273
          %v3284 = vmul.f32 %v3248, %v3273
          %v3285 = vmul.f32 %v3250, %v3273
          %v3286 = vmul.f32 %v3252, %v3273
          %v3287 = vmul.f32 %v3254, %v3273
          %v3288 = vmul.f32 %v3256, %v3273
          %v3289 = vmul.f32 %v3258, %v3273
          %v3290 = vmul.f32 %v3260, %v3273
          %3291 = vst [vmem:[%s480] sm:$0xff] %v3275
          %3292 = vst [vmem:[%s480 + $0x8] sm:$0xff] %v3276
          %3293 = vst [vmem:[%s480 + $0x10] sm:$0xff] %v3277
          %3294 = vst [vmem:[%s480 + $0x18] sm:$0xff] %v3278
          %3295 = vst [vmem:[%s480 + $0x20] sm:$0xff] %v3279
          %3296 = vst [vmem:[%s480 + $0x28] sm:$0xff] %v3280
          %3297 = vst [vmem:[%s480 + $0x30] sm:$0xff] %v3281
          %3298 = vst [vmem:[%s480 + $0x38] sm:$0xff] %v3282
          %3299 = vst [vmem:[%s480 + $0x40] sm:$0xff] %v3283
          %3300 = vst [vmem:[%s480 + $0x48] sm:$0xff] %v3284
          %3301 = vst [vmem:[%s480 + $0x50] sm:$0xff] %v3285
          %3302 = vst [vmem:[%s480 + $0x58] sm:$0xff] %v3286
          %3303 = vst [vmem:[%s480 + $0x60] sm:$0xff] %v3287
          %3304 = vst [vmem:[%s480 + $0x68] sm:$0xff] %v3288
          %3305 = vst [vmem:[%s480 + $0x70] sm:$0xff] %v3289
          %3306 = vst [vmem:[%s480 + $0x78] sm:$0xff] %v3290
        $region113: #{gflownet_forward.1} parent=92 // pred_fallthru
          _
        %s3307 = sand.u32 %s161, 1
        %s3308 = scalar_lea.sflag [#allocation10], %s3307
        %s3309 = sand.u32 %s161, 1
        %s3310 = smul.addr %s3309, 128
        %s3311 = scalar_lea.vmem [#allocation9], %s3310
        %s3312 = sand.u32 %s189, 1
        %s3313 = scalar_lea.sflag [#allocation12], %s3312
        %s3314 = sand.u32 %s189, 1
        %s3315 = smul.addr %s3314, 128
        %s3316 = scalar_lea.vmem [#allocation11], %s3315
        // Predicated region
        $region114: #{gflownet_forward.1} parent=92 // pred_check
          %p3317 = pneg %p171
        $region115: #{gflownet_forward.1} parent=92 // pred_check_branch
          %3319 = sbr.rel (%p3317) target = $region117
        $region116: #{gflownet_forward.1} parent=92 // pred_region
          %s3320 = smul.u32 %s29, %s28
          %s3321 = smul.u32 8, %s3320
          %s3323 = ssub.s32 2048, 2048
          %3324 = vsyncadd %s3308, %s3323
          %s3325 = smul.addr %s3321, 128
          %s3326 = scalar_lea.hbm %s5, %s3325
          %s3327 = sshll.u32 %s3311, 4
          %s3328 = int_to_ptr.vmem [resolvable:$true] %s3327
          %3333 = dma.vmem_to_hbm [thread:$0]  %s3328, 2048, %s3326, %s3308, 1024, 2048, 64
        $region117: #{gflownet_forward.1} parent=92 // pred_fallthru
          _
        // Predicated region
        $region118: #{gflownet_forward.1} parent=92 // pred_check
          %p3334 = pneg %p199
        $region119: #{gflownet_forward.1} parent=92 // pred_check_branch
          %3336 = sbr.rel (%p3334) target = $region121
        $region120: #{gflownet_forward.1} parent=92 // pred_region
          %s3337 = smul.u32 %s29, %s28
          %s3338 = smul.u32 8, %s3337
          %s3340 = ssub.s32 2048, 2048
          %3341 = vsyncadd %s3313, %s3340
          %s3342 = smul.addr %s3338, 128
          %s3343 = scalar_lea.hbm %s6, %s3342
          %s3344 = sshll.u32 %s3316, 4
          %s3345 = int_to_ptr.vmem [resolvable:$true] %s3344
          %3350 = dma.vmem_to_hbm [thread:$0]  %s3345, 2048, %s3343, %s3313, 1024, 2048, 64
        $region121: #{gflownet_forward.1} parent=92 // pred_fallthru
          _
      $region93: #{gflownet_forward.1} parent=5 // pred_fallthru
        _
      %p3351 = scmp.le.s32.totalorder 2, %s19
      // Predicated region
      $region122: #{gflownet_forward.1} parent=5 // pred_check
        %p3352 = pneg %p3351
      $region123: #{gflownet_forward.1} parent=5 // pred_check_branch
        %3354 = sbr.rel (%p3352) target = $region125
      $region124: #{gflownet_forward.1} parent=5 // pred_region
        %s3355 = ssub.s32 %s19, 2
        // Predicated region
        $region126: #{gflownet_forward.1} parent=124 // pred_check
          %p3356 = pneg %p177
        $region127: #{gflownet_forward.1} parent=124 // pred_check_branch
          %3358 = sbr.rel (%p3356) target = $region129
        $region128: #{gflownet_forward.1} parent=124 // pred_region
          %s3359 = sand.u32 %s162, 1
          %s3360 = scalar_lea.sflag [#allocation10], %s3359
          %s3361 = sand.u32 %s162, 1
          %s3362 = smul.addr %s3361, 128
          %s3363 = scalar_lea.vmem [#allocation9], %s3362
          %3364 = dma.done %s3360, 2048
        $region129: #{gflownet_forward.1} parent=124 // pred_fallthru
          _
        // Predicated region
        $region130: #{gflownet_forward.1} parent=124 // pred_check
          %p3365 = pneg %p205
        $region131: #{gflownet_forward.1} parent=124 // pred_check_branch
          %3367 = sbr.rel (%p3365) target = $region133
        $region132: #{gflownet_forward.1} parent=124 // pred_region
          %s3368 = sand.u32 %s190, 1
          %s3369 = scalar_lea.sflag [#allocation12], %s3368
          %s3370 = sand.u32 %s190, 1
          %s3371 = smul.addr %s3370, 128
          %s3372 = scalar_lea.vmem [#allocation11], %s3371
          %3373 = dma.done %s3369, 2048
        $region133: #{gflownet_forward.1} parent=124 // pred_fallthru
          _
      $region125: #{gflownet_forward.1} parent=5 // pred_fallthru
        _
    $region6: #{gflownet_forward.1} parent=1 // loop_footer
      %s23 = sadd.s32 1, %s19
    $region7: #{gflownet_forward.1} parent=1 // loop_footer_branch
      %18 = sbr.rel target = $region3
    $region8: #{gflownet_forward.1} parent=1 // loop_exit
      _
    %3374 = vsyncpa [#allocation10], 1
    %s3375 = scalar_lea.sflag [#allocation10], 1
    %3376 = vsyncpa %s3375, 1
    %3377 = vsyncpa [#allocation12], 1
    %s3378 = scalar_lea.sflag [#allocation12], 1
    %3379 = vsyncpa %s3378, 1

</llo_original>
